<compile_context>
chip_gen: v7x
topology: tpu7x:2x2x1
jax: 0.10.0
libtpu: 0.0.40
codegen_flags: <defaults>
</compile_context>

<pallas_src>
import functools

import numpy as np
import jax
import jax.numpy as jnp
from jax.experimental import pallas as pl
from jax.experimental.pallas import tpu as pltpu

PAD_TOKEN = -1.0
UNROLL = 2


def _round_up(x, m):
    return ((x + m - 1) // m) * m


def _make_kernel(*, L, B, S, H, E, K, V, VPAD, TQ, mm_dtype):
    # packed driver column offsets
    C_SM = E                  # one-hot scope mask (S lanes)
    C_UM = E + S              # stack update mask (S lanes)
    C_ISID = E + 2 * S        # is_identifier
    C_LMASK = C_ISID + 1      # t < lengths[b]
    C_HASID = C_ISID + 2      # has_identifier
    C_TERM = C_ISID + 3       # terminal mask (K lanes)
    NEG_INF = float("-inf")   # python float literal only (no traced constant)

    def mm(a, w):
        # weights arrive already cast to mm_dtype (done once in the wrapper);
        # only the small activation operand is cast here.  f32 accumulation.
        return jnp.dot(a.astype(mm_dtype), w, preferred_element_type=jnp.float32)

    def kernel(seq_ref,
               drv_ref,
               st_w1, st_b1, st_w2, st_b2,
               w_lstm, b_lstm,
               w_no, b_no,
               w_top, w2h, b2h,
               h0, c0, stack0,
               out_ref,
               h_sc, c_sc, stack_sc):
        @pl.when(pl.program_id(0) == 0)
        def _init():
            h_sc[...] = h0[...]
            c_sc[...] = c0[...]
            stack_sc[...] = stack0[...]

        # number of valid timesteps in this chunk (skip padded tail steps)
        valid = jnp.minimum(seq_ref[0] - pl.program_id(0) * TQ, TQ)

        # loop-invariant constants (2 vregs, hoisted once)
        lane = jax.lax.broadcasted_iota(jnp.int32, (B, VPAD), 1)
        zpad = jnp.zeros((B, VPAD - K), jnp.float32) if VPAD > K else None

        def step(t):
            drv = drv_ref[t]                               # (B, DPAD)
            x = drv[:, 0:E]
            smask = drv[:, C_SM:C_SM + S]
            umask = drv[:, C_UM:C_UM + S]
            is_id = drv[:, C_ISID:C_ISID + 1]
            lmask = drv[:, C_LMASK:C_LMASK + 1]
            id_bad = drv[:, C_HASID:C_HASID + 1]
            kw_bad = drv[:, C_TERM:C_TERM + K]

            stack = stack_sc[...]                          # (B, S, H)

            # ---- _scoped_input: one-hot scope select + fused (2H,H) matmul ----
            now_scope = jnp.sum(smask[:, :, None] * stack, axis=1)      # (B, H)
            h1 = jnp.maximum(
                mm(jnp.concatenate([now_scope, x], axis=1), st_w1[...])
                + st_b1[...], 0.0)
            scoped = mm(h1, st_w2[...]) + st_b2[...]
            rnn_in = jnp.where(is_id > 0.5, scoped, x)

            # stack-top half of the scope-stack update (depends only on
            # stack_t, so it can be scheduled early / overlap the LSTM)
            top = mm(stack.reshape(B * S, H), w_top[...]).reshape(B, S, 2 * H)

            # ---- MultiRNNCell of LSTMCells (gate order i, f, g, o) ----
            inp = rnn_in
            for l in range(L):
                h_prev = h_sc[l]
                c_prev = c_sc[l]
                gates = mm(jnp.concatenate([inp, h_prev], axis=1),
                           w_lstm[l]) + b_lstm[l]          # (B, 4H)
                sg = jax.nn.sigmoid(gates)                 # full-vreg EUP pass
                th = jnp.tanh(gates)                       # full-vreg EUP pass
                i_g = sg[:, 0:H]
                f_g = sg[:, H:2 * H]
                g_g = th[:, 2 * H:3 * H]
                o_g = sg[:, 3 * H:4 * H]
                c_new = f_g * c_prev + i_g * g_g
                h_new = o_g * jnp.tanh(c_new)
                h_sc[l] = h_new
                c_sc[l] = c_new
                inp = h_new
            now_o = inp                                    # (B, H)

            # ---- fused now_o matmul: [head hidden (2H) | stack bottom (2H)] ----
            no_out = mm(now_o, w_no[...]) + b_no[...]      # (B, 4H)
            hid = jnp.maximum(no_out[:, 0:2 * H], 0.0)
            bot = no_out[:, 2 * H:4 * H]                   # incl. bv / bg biases

            # ---- output logits (block-diagonal (2H, VPAD) second layer) ----
            base = mm(hid, w2h[...]) + b2h[...]            # (B, VPAD)
            if zpad is not None:
                kw_bad_w = jnp.concatenate([kw_bad, zpad], axis=1)
            else:
                kw_bad_w = kw_bad
            # lanes < K use the terminal mask, lanes >= K use has_identifier
            # (lanes >= V are sliced off in the wrapper, so their value is moot)
            bad = jnp.where(lane < K, kw_bad_w, id_bad)
            logits = jnp.where(bad > 0.5, NEG_INF, base)
            out_ref[t] = jnp.where(lmask > 0.5, logits, PAD_TOKEN)

            # ---- _update_scope_stack (gate column pre-replicated to H lanes) ----
            comb = top + bot[:, None, :]                   # (B, S, 2H)
            val = jnp.tanh(comb[:, :, 0:H])
            gate = jax.nn.sigmoid(comb[:, :, H:2 * H])
            new_stack = stack * (1.0 - gate) + gate * val
            # random_init_stack_vector=False path: zero where mask is False
            stack_sc[...] = jnp.where(umask[:, :, None] > 0.5, new_stack, 0.0)

        @pl.loop(0, TQ // UNROLL)
        def _pair(p):
            for u in range(UNROLL):                        # manual 2x unroll
                t = p * UNROLL + u

                @pl.when(t < valid)
                def _():
                    step(t)

    return kernel


@functools.partial(
    jax.jit,
    static_argnames=("L", "S", "H", "E", "K", "V", "time_chunk", "mm_dtype"))
def scope_grammar_lm_forward(params, tokens, identifier_scope_mask, is_identifier,
                             update_mask, terminal_mask, has_identifier, lengths,
                             *, L, S, H, E, K, V, time_chunk=128,
                             mm_dtype=jnp.bfloat16):
    assert E == H, "reference masked_select .view requires embedding_dim == hidden_state_size"
    assert time_chunk % UNROLL == 0
    B, seq = tokens.shape
    f32 = jnp.float32
    wd = mm_dtype                                   # MXU operand dtype for weights

    VPAD = _round_up(V, 128)
    used = E + 2 * S + 3 + K
    DPAD = _round_up(used, 128)
    TQ = min(time_chunk, _round_up(seq, UNROLL))
    seq_pad = _round_up(seq, TQ)
    num_chunks = seq_pad // TQ

    # ---- glue: single packed, lane-dense driver built directly in (seq,B,.) ----
    x_emb = params["emb"][tokens.T].astype(f32)                       # (seq, B, E)
    tmask = (jnp.arange(seq)[:, None] < lengths[None, :]).astype(f32)  # (seq, B)
    drv = jnp.concatenate([
        x_emb,
        jnp.transpose(identifier_scope_mask, (1, 0, 2)).astype(f32),   # scope mask
        jnp.transpose(update_mask, (1, 0, 2)).astype(f32),             # update mask
        jnp.transpose(is_identifier, (1, 0)).astype(f32)[:, :, None],
        tmask[:, :, None],
        jnp.transpose(has_identifier, (1, 0)).astype(f32)[:, :, None],
        jnp.transpose(terminal_mask, (1, 0, 2)).astype(f32),           # K lanes
        jnp.zeros((seq, B, DPAD - used), f32),
    ], axis=-1)                                                        # (seq, B, DPAD)
    if seq_pad != seq:
        drv = jnp.pad(drv, ((0, seq_pad - seq), (0, 0), (0, 0)))

    seq_arr = jnp.full((1,), seq, jnp.int32)                           # scalar prefetch

    # ---- weight preprocessing: fusions + single bf16 cast ----
    st_w1 = params["st_w1"].astype(wd)                                 # (2H, H)
    st_b1 = params["st_b1"].astype(f32)
    st_w2 = params["st_w2"].astype(wd)                                 # (H, E)
    st_b2 = params["st_b2"].astype(f32)

    w_lstm = jnp.concatenate([params["wih"], params["whh"]], axis=1).astype(wd)  # (L,2H,4H)
    b_lstm = (params["bih"] + params["bhh"]).astype(f32)                          # (L,1,4H)

    # scope-stack gate column replicated H times -> gate already lane-broadcast
    wg_rep = jnp.tile(params["wg"], (1, H))                            # (2H, H)
    bg_rep = jnp.tile(params["bg"], (1, H))                            # (1, H)
    w_top = jnp.concatenate([params["wv"][:H], wg_rep[:H]], axis=1).astype(wd)    # (H, 2H)
    w_bot = jnp.concatenate([params["wv"][H:], wg_rep[H:]], axis=1)               # (H, 2H)
    b_vg = jnp.concatenate([params["bv"], bg_rep], axis=1)                        # (1, 2H)

    # fused now_o weight: [wk1 | wo1 | wv_bot | wg_bot]
    w1h = jnp.concatenate([params["wk1"], params["wo1"]], axis=1)                 # (H, 2H)
    b1h = jnp.concatenate([params["bk1"], params["bo1"]], axis=1)                 # (1, 2H)
    w_no = jnp.concatenate([w1h, w_bot], axis=1).astype(wd)                       # (H, 4H)
    b_no = jnp.concatenate([b1h, b_vg], axis=1).astype(f32)                       # (1, 4H)

    # block-diagonal second head layer over the padded vocab axis
    w2h = (jnp.zeros((2 * H, VPAD), f32)
           .at[0:H, 0:K].set(params["wk2"])
           .at[H:2 * H, K:V].set(params["wo2"])).astype(wd)
    b2h = (jnp.zeros((1, VPAD), f32)
           .at[:, 0:K].set(params["bk2"])
           .at[:, K:V].set(params["bo2"]))

    kernel = _make_kernel(L=L, B=B, S=S, H=H, E=E, K=K, V=V,
                          VPAD=VPAD, TQ=TQ, mm_dtype=mm_dtype)

    def chunk(d):
        return pl.BlockSpec((TQ, B, d), lambda c, s: (c, 0, 0))

    def w2(s0, s1):
        return pl.BlockSpec((s0, s1), lambda c, s: (0, 0))

    def w3(s0, s1, s2):
        return pl.BlockSpec((s0, s1, s2), lambda c, s: (0, 0, 0))

    in_specs = [
        chunk(DPAD),
        w2(2 * H, H), w2(1, H), w2(H, E), w2(1, E),
        w3(L, 2 * H, 4 * H), w3(L, 1, 4 * H),
        w2(H, 4 * H), w2(1, 4 * H),
        w2(H, 2 * H), w2(2 * H, VPAD), w2(1, VPAD),
        w3(L, B, H), w3(L, B, H), w3(B, S, H),
    ]

    out = pl.pallas_call(
        kernel,
        out_shape=jax.ShapeDtypeStruct((seq_pad, B, VPAD), jnp.float32),
        grid_spec=pltpu.PrefetchScalarGridSpec(
            num_scalar_prefetch=1,
            grid=(num_chunks,),
            in_specs=in_specs,
            out_specs=pl.BlockSpec((TQ, B, VPAD), lambda c, s: (c, 0, 0)),
            scratch_shapes=[
                pltpu.VMEM((L, B, H), jnp.float32),   # h state per layer
                pltpu.VMEM((L, B, H), jnp.float32),   # c state per layer
                pltpu.VMEM((B, S, H), jnp.float32),   # scope stack
            ],
        ),
        compiler_params=pltpu.CompilerParams(
            dimension_semantics=("arbitrary",)),      # sequential recurrence
    )(seq_arr, drv,
      st_w1, st_b1, st_w2, st_b2,
      w_lstm, b_lstm,
      w_no, b_no,
      w_top, w2h, b2h,
      params["h0"].astype(f32), params["c0"].astype(f32),
      params["stack0"].astype(f32))

    # back to batch-first, drop time/vocab padding
    return jnp.transpose(out, (1, 0, 2))[:, :seq, :V]


def init_params(key, *, L, B, S, H, E, K, V):
    ks = jax.random.split(key, 32)
    n = lambda i, shape, s=0.1: (s * jax.random.normal(ks[i], shape)).astype(jnp.float32)
    return {
        "emb":   n(0, (V, E), 1.0),
        # scope_transformer (weights stored transposed: (in, out); rows 0..H-1
        # multiply now_scope, rows H..2H-1 multiply the token embedding)
        "st_w1": n(1, (E + H, H)), "st_b1": n(2, (1, H)),
        "st_w2": n(3, (H, E)),     "st_b2": n(4, (1, E)),
        # LSTM cells, torch gate order i, f, g, o (E == H)
        "wih": n(5, (L, H, 4 * H)), "whh": n(6, (L, H, 4 * H)),
        "bih": n(7, (L, 1, 4 * H)), "bhh": n(8, (L, 1, 4 * H)),
        # scope_stack_update_gate / value (rows 0..H-1: stack, H..2H-1: rnn out)
        "wg": n(9, (2 * H, 1)), "bg": n(10, (1, 1)),
        "wv": n(11, (2 * H, H)), "bv": n(12, (1, H)),
        # output_keyword_mlp
        "wk1": n(13, (H, H)), "bk1": n(14, (1, H)),
        "wk2": n(15, (H, K)), "bk2": n(16, (1, K)),
        # output_mlp (identifier head)
        "wo1": n(17, (H, H)), "bo1": n(18, (1, H)),
        "wo2": n(19, (H, V - K)), "bo2": n(20, (1, V - K)),
        # initial recurrent state (randn parameters in the module)
        "h0": n(21, (L, B, H), 1.0), "c0": n(22, (L, B, H), 1.0),
        # begin stack: random_init_stack_vector=False -> zeros
        "stack0": jnp.zeros((B, S, H), jnp.float32),
    }


def reference_forward(params, tokens, identifier_scope_mask, is_identifier,
                      update_mask, terminal_mask, has_identifier, lengths,
                      *, L, S, H, E, K, V):
    """Plain-JAX port of the PyTorch module, used only as a self-check."""
    B, seq = tokens.shape
    f32 = jnp.float32
    x_all = params["emb"][tokens].astype(f32)
    h = params["h0"]
    c = params["c0"]
    stack = params["stack0"]
    outs = []
    for t in range(seq):
        x = x_all[:, t]
        sm = identifier_scope_mask[:, t].astype(f32)
        now_scope = jnp.einsum("bs,bsh->bh", sm, stack)
        cat = jnp.concatenate([now_scope, x], axis=1)
        h1 = jax.nn.relu(cat @ params["st_w1"] + params["st_b1"])
        scoped = h1 @ params["st_w2"] + params["st_b2"]
        rnn_in = jnp.where(is_identifier[:, t:t + 1] > 0.5, scoped, x)
        inp = rnn_in
        new_h, new_c = [], []
        for l in range(L):
            gates = (inp @ params["wih"][l] + params["bih"][l]
                     + h[l] @ params["whh"][l] + params["bhh"][l])
            i_g = jax.nn.sigmoid(gates[:, :H])
            f_g = jax.nn.sigmoid(gates[:, H:2 * H])
            g_g = jnp.tanh(gates[:, 2 * H:3 * H])
            o_g = jax.nn.sigmoid(gates[:, 3 * H:])
            c_n = f_g * c[l] + i_g * g_g
            h_n = o_g * jnp.tanh(c_n)
            new_h.append(h_n)
            new_c.append(c_n)
            inp = h_n
        h = jnp.stack(new_h)
        c = jnp.stack(new_c)
        now_o = inp
        kw = jax.nn.relu(now_o @ params["wk1"] + params["bk1"]) @ params["wk2"] + params["bk2"]
        kw = jnp.where(terminal_mask[:, t].astype(bool), -jnp.inf, kw)
        idp = jax.nn.relu(now_o @ params["wo1"] + params["bo1"]) @ params["wo2"] + params["bo2"]
        idp = jnp.where(has_identifier[:, t:t + 1].astype(bool), -jnp.inf, idp)
        outs.append(jnp.concatenate([kw, idp], axis=1))
        o_rep = jnp.broadcast_to(now_o[:, None, :], (B, S, H))
        cat2 = jnp.concatenate([stack, o_rep], axis=2)
        gate = jax.nn.sigmoid(cat2 @ params["wg"] + params["bg"])
        val = jnp.tanh(cat2 @ params["wv"] + params["bv"])
        stack = stack * (1.0 - gate) + gate * val
        stack = jnp.where(update_mask[:, t].astype(bool)[:, :, None], stack, 0.0)
    out = jnp.stack(outs, axis=1)
    valid = (jnp.arange(seq)[None, :] < lengths[:, None])[:, :, None]
    return jnp.where(valid, out, PAD_TOKEN)


if __name__ == "__main__":
    # small shapes consistent with the module's forward
    V = 48        # vocab_size
    K = 16        # keyword_size
    E = 32        # embedding_dim (== hidden_state_size, required by masked_select view)
    H = 32        # hidden_state_size
    L = 2         # rnn_num_layers
    S = 8         # stack_size
    B = 8         # batch_size
    SEQ = 10

    key = jax.random.PRNGKey(0)
    kp, kt, km, ki, ku, ktm, kh = jax.random.split(key, 7)

    params = init_params(kp, L=L, B=B, S=S, H=H, E=E, K=K, V=V)

    tokens = jax.random.randint(kt, (B, SEQ), 0, V, dtype=jnp.int32)
    scope_idx = jax.random.randint(km, (B, SEQ), 0, S, dtype=jnp.int32)
    identifier_scope_mask = jax.nn.one_hot(scope_idx, S, dtype=jnp.float32)   # (B,SEQ,S)
    is_identifier = jax.random.bernoulli(ki, 0.5, (B, SEQ)).astype(jnp.float32)
    update_mask = jax.random.bernoulli(ku, 0.5, (B, SEQ, S)).astype(jnp.float32)
    terminal_mask = jax.random.bernoulli(ktm, 0.2, (B, SEQ, K)).astype(jnp.float32)
    has_identifier = jax.random.bernoulli(kh, 0.3, (B, SEQ)).astype(jnp.float32)
    lengths = jnp.array([10, 10, 9, 8, 8, 7, 6, 5], dtype=jnp.int32)  # sorted descending

    out = scope_grammar_lm_forward(
        params, tokens, identifier_scope_mask, is_identifier, update_mask,
        terminal_mask, has_identifier, lengths,
        L=L, S=S, H=H, E=E, K=K, V=V)
    out = jax.block_until_ready(out)
    assert out.shape == (B, SEQ, V), out.shape

    with jax.default_matmul_precision("float32"):
        ref = reference_forward(
            params, tokens, identifier_scope_mask, is_identifier, update_mask,
            terminal_mask, has_identifier, lengths,
            L=L, S=S, H=H, E=E, K=K, V=V)
    ref = jax.block_until_ready(ref)

    got_np = np.asarray(out)
    ref_np = np.asarray(ref)
    # padded positions must be PAD_TOKEN
    assert np.all(got_np[-1, int(lengths[-1]):, :] == PAD_TOKEN)
    max_diff = float(np.nanmax(np.abs(np.where(np.isfinite(ref_np),
                                               got_np - ref_np, 0.0))))
    # kernel uses bf16 MXU operands (f32 accumulation); reference is full f32
    assert np.allclose(got_np, ref_np, rtol=5e-2, atol=5e-2), max_diff
    print("KERNEL_OK")
</pallas_src>

<mosaic_0001>
module attributes {stable_mosaic.version = 11 : i64} {
  func.func @kernel(%arg0: i32, %arg1: memref<1xi32, #tpu.memory_space<smem>>, %arg2: memref<10x8x128xf32, #tpu.memory_space<vmem>>, %arg3: memref<64x32xbf16, #tpu.memory_space<vmem>>, %arg4: memref<1x32xf32, #tpu.memory_space<vmem>>, %arg5: memref<32x32xbf16, #tpu.memory_space<vmem>>, %arg6: memref<1x32xf32, #tpu.memory_space<vmem>>, %arg7: memref<2x64x128xbf16, #tpu.memory_space<vmem>>, %arg8: memref<2x1x128xf32, #tpu.memory_space<vmem>>, %arg9: memref<32x128xbf16, #tpu.memory_space<vmem>>, %arg10: memref<1x128xf32, #tpu.memory_space<vmem>>, %arg11: memref<32x64xbf16, #tpu.memory_space<vmem>>, %arg12: memref<64x128xbf16, #tpu.memory_space<vmem>>, %arg13: memref<1x128xf32, #tpu.memory_space<vmem>>, %arg14: memref<2x8x32xf32, #tpu.memory_space<vmem>>, %arg15: memref<2x8x32xf32, #tpu.memory_space<vmem>>, %arg16: memref<8x8x32xf32, #tpu.memory_space<vmem>>, %arg17: memref<10x8x128xf32, #tpu.memory_space<vmem>>, %arg18: memref<2x8x32xf32, #tpu.memory_space<vmem>>, %arg19: memref<2x8x32xf32, #tpu.memory_space<vmem>>, %arg20: memref<8x8x32xf32, #tpu.memory_space<vmem>>) attributes {dimension_semantics = [#tpu.dimension_semantics<arbitrary>], iteration_bounds = array<i64: 1>, scalar_prefetch = 1 : i64, scratch_operands = 3 : i64, tpu.core_type = #tpu.core_type<tc>, window_params = [{transform_indices = @transform_0, window_bounds = array<i64: 10, 8, 128>}, {pipeline_mode = #tpu.pipeline_mode<synchronous>, transform_indices = @transform_1, window_bounds = array<i64: 64, 32>}, {pipeline_mode = #tpu.pipeline_mode<synchronous>, transform_indices = @transform_2, window_bounds = array<i64: 1, 32>}, {pipeline_mode = #tpu.pipeline_mode<synchronous>, transform_indices = @transform_3, window_bounds = array<i64: 32, 32>}, {pipeline_mode = #tpu.pipeline_mode<synchronous>, transform_indices = @transform_4, window_bounds = array<i64: 1, 32>}, {pipeline_mode = #tpu.pipeline_mode<synchronous>, transform_indices = @transform_5, window_bounds = array<i64: 2, 64, 128>}, {pipeline_mode = #tpu.pipeline_mode<synchronous>, transform_indices = @transform_6, window_bounds = array<i64: 2, 1, 128>}, {pipeline_mode = #tpu.pipeline_mode<synchronous>, transform_indices = @transform_7, window_bounds = array<i64: 32, 128>}, {pipeline_mode = #tpu.pipeline_mode<synchronous>, transform_indices = @transform_8, window_bounds = array<i64: 1, 128>}, {pipeline_mode = #tpu.pipeline_mode<synchronous>, transform_indices = @transform_9, window_bounds = array<i64: 32, 64>}, {pipeline_mode = #tpu.pipeline_mode<synchronous>, transform_indices = @transform_10, window_bounds = array<i64: 64, 128>}, {pipeline_mode = #tpu.pipeline_mode<synchronous>, transform_indices = @transform_11, window_bounds = array<i64: 1, 128>}, {pipeline_mode = #tpu.pipeline_mode<synchronous>, transform_indices = @transform_12, window_bounds = array<i64: 2, 8, 32>}, {pipeline_mode = #tpu.pipeline_mode<synchronous>, transform_indices = @transform_13, window_bounds = array<i64: 2, 8, 32>}, {pipeline_mode = #tpu.pipeline_mode<synchronous>, transform_indices = @transform_14, window_bounds = array<i64: 8, 8, 32>}, {transform_indices = @transform_15, window_bounds = array<i64: 10, 8, 128>}]} {
    %c0_i32 = arith.constant 0 : i32
    %0 = arith.cmpi eq, %arg0, %c0_i32 : i32
    %1 = arith.extui %0 : i1 to i32
    %c0_i32_0 = arith.constant 0 : i32
    %2 = arith.cmpi ne, %1, %c0_i32_0 : i32
    scf.if %2 {
      %c0_4 = arith.constant 0 : index
      %c0_5 = arith.constant 0 : index
      %c0_6 = arith.constant 0 : index
      %10 = vector.load %arg14[%c0_4, %c0_5, %c0_6] : memref<2x8x32xf32, #tpu.memory_space<vmem>>, vector<2x8x32xf32>
      %c0_7 = arith.constant 0 : index
      %c0_8 = arith.constant 0 : index
      %c0_9 = arith.constant 0 : index
      %11 = vector.load %arg18[%c0_7, %c0_8, %c0_9] : memref<2x8x32xf32, #tpu.memory_space<vmem>>, vector<2x8x32xf32>
      tpu.vector_store %arg18[%c0_7, %c0_8, %c0_9], %10 {strides = array<i32>} : memref<2x8x32xf32, #tpu.memory_space<vmem>>, vector<2x8x32xf32>,
      %c0_10 = arith.constant 0 : index
      %c0_11 = arith.constant 0 : index
      %c0_12 = arith.constant 0 : index
      %12 = vector.load %arg15[%c0_10, %c0_11, %c0_12] : memref<2x8x32xf32, #tpu.memory_space<vmem>>, vector<2x8x32xf32>
      %c0_13 = arith.constant 0 : index
      %c0_14 = arith.constant 0 : index
      %c0_15 = arith.constant 0 : index
      %13 = vector.load %arg19[%c0_13, %c0_14, %c0_15] : memref<2x8x32xf32, #tpu.memory_space<vmem>>, vector<2x8x32xf32>
      tpu.vector_store %arg19[%c0_13, %c0_14, %c0_15], %12 {strides = array<i32>} : memref<2x8x32xf32, #tpu.memory_space<vmem>>, vector<2x8x32xf32>,
      %c0_16 = arith.constant 0 : index
      %c0_17 = arith.constant 0 : index
      %c0_18 = arith.constant 0 : index
      %14 = vector.load %arg16[%c0_16, %c0_17, %c0_18] : memref<8x8x32xf32, #tpu.memory_space<vmem>>, vector<8x8x32xf32>
      %c0_19 = arith.constant 0 : index
      %c0_20 = arith.constant 0 : index
      %c0_21 = arith.constant 0 : index
      %15 = vector.load %arg20[%c0_19, %c0_20, %c0_21] : memref<8x8x32xf32, #tpu.memory_space<vmem>>, vector<8x8x32xf32>
      tpu.vector_store %arg20[%c0_19, %c0_20, %c0_21], %14 {strides = array<i32>} : memref<8x8x32xf32, #tpu.memory_space<vmem>>, vector<8x8x32xf32>,
    } else {
    }
    %c0 = arith.constant 0 : index
    %3 = memref.load %arg1[%c0] : memref<1xi32, #tpu.memory_space<smem>>
    %c10_i32 = arith.constant 10 : i32
    %4 = arith.muli %arg0, %c10_i32 : i32
    %5 = arith.subi %3, %4 : i32
    %c10_i32_1 = arith.constant 10 : i32
    %6 = arith.minsi %5, %c10_i32_1 : i32
    %7 = tpu.iota {dimensions = array<i32: 1>} : vector<8x128xi32>
    %cst = arith.constant 0.000000e+00 : f32
    %8 = vector.broadcast %cst : f32 to vector<8x112xf32>
    %c0_i32_2 = arith.constant 0 : i32
    %c5_i32 = arith.constant 5 : i32
    %9 = arith.addi %c0_i32_2, %c5_i32 : i32
    %c1_i32 = arith.constant 1 : i32
    scf.for %arg21 = %c0_i32_2 to %9 step %c1_i32  : i32 {
      %c1_i32_4 = arith.constant 1 : i32
      %10 = arith.muli %arg21, %c1_i32_4 : i32
      %c0_i32_5 = arith.constant 0 : i32
      %11 = arith.addi %c0_i32_5, %10 : i32
      %c2_i32 = arith.constant 2 : i32
      %12 = arith.muli %11, %c2_i32 : i32
      %c0_i32_6 = arith.constant 0 : i32
      %13 = arith.addi %12, %c0_i32_6 : i32
      %14 = arith.cmpi slt, %13, %6 : i32
      %15 = arith.extui %14 : i1 to i32
      %c0_i32_7 = arith.constant 0 : i32
      %16 = arith.cmpi ne, %15, %c0_i32_7 : i32
      scf.if %16 {
        %22 = arith.index_cast %13 : i32 to index
        %c0_11 = arith.constant 0 : index
        %c0_12 = arith.constant 0 : index
        %23 = vector.load %arg2[%22, %c0_11, %c0_12] : memref<10x8x128xf32, #tpu.memory_space<vmem>>, vector<1x8x128xf32>
        %24 = vector.shape_cast %23 : vector<1x8x128xf32> to vector<8x128xf32>
        %25 = vector.extract_strided_slice %24 {offsets = [0, 0], sizes = [8, 32], strides = [1, 1]} : vector<8x128xf32> to vector<8x32xf32>
        %26 = vector.extract_strided_slice %24 {offsets = [0, 32], sizes = [8, 8], strides = [1, 1]} : vector<8x128xf32> to vector<8x8xf32>
        %27 = vector.extract_strided_slice %24 {offsets = [0, 40], sizes = [8, 8], strides = [1, 1]} : vector<8x128xf32> to vector<8x8xf32>
        %28 = vector.extract_strided_slice %24 {offsets = [0, 48], sizes = [8, 1], strides = [1, 1]} : vector<8x128xf32> to vector<8x1xf32>
        %29 = vector.extract_strided_slice %24 {offsets = [0, 49], sizes = [8, 1], strides = [1, 1]} : vector<8x128xf32> to vector<8x1xf32>
        %30 = vector.extract_strided_slice %24 {offsets = [0, 50], sizes = [8, 1], strides = [1, 1]} : vector<8x128xf32> to vector<8x1xf32>
        %31 = vector.extract_strided_slice %24 {offsets = [0, 51], sizes = [8, 16], strides = [1, 1]} : vector<8x128xf32> to vector<8x16xf32>
        %c0_13 = arith.constant 0 : index
        %c0_14 = arith.constant 0 : index
        %c0_15 = arith.constant 0 : index
        %32 = vector.load %arg20[%c0_13, %c0_14, %c0_15] : memref<8x8x32xf32, #tpu.memory_space<vmem>>, vector<8x8x32xf32>
        %33 = vector.shape_cast %26 : vector<8x8xf32> to vector<8x8x1xf32>
        %34 = vector.broadcast %33 : vector<8x8x1xf32> to vector<8x8x32xf32>
        %35 = arith.mulf %34, %32 : vector<8x8x32xf32>
        %cst_16 = arith.constant dense<0.000000e+00> : vector<8x32xf32>
        %36 = vector.multi_reduction <add>, %35, %cst_16 [1] : vector<8x8x32xf32> to vector<8x32xf32>
        %37 = tpu.concatenate %36, %25 in 1 : vector<8x32xf32>, vector<8x32xf32> -> vector<8x64xf32>
        %c0_17 = arith.constant 0 : index
        %c0_18 = arith.constant 0 : index
        %38 = vector.load %arg3[%c0_17, %c0_18] : memref<64x32xbf16, #tpu.memory_space<vmem>>, vector<64x32xbf16>
        %39 = arith.truncf %37 : vector<8x64xf32> to vector<8x64xbf16>
        %cst_19 = arith.constant dense<0.000000e+00> : vector<8x32xf32>
        %40 = tpu.matmul %39, %38, %cst_19 {dimension_numbers = #tpu.dot_dimension_numbers<[1], [0], [0], [1], [0, 0, 1, 1], [], []>} : vector<8x64xbf16>, vector<64x32xbf16>, vector<8x32xf32> -> vector<8x32xf32>
        %c0_20 = arith.constant 0 : index
        %c0_21 = arith.constant 0 : index
        %41 = vector.load %arg4[%c0_20, %c0_21] : memref<1x32xf32, #tpu.memory_space<vmem>>, vector<1x32xf32>
        %42 = vector.broadcast %41 : vector<1x32xf32> to vector<8x32xf32>
        %43 = arith.addf %40, %42 : vector<8x32xf32>
        %cst_22 = arith.constant 0.000000e+00 : f32
        %44 = vector.broadcast %cst_22 : f32 to vector<8x32xf32>
        %45 = arith.maximumf %43, %44 : vector<8x32xf32>
        %c0_23 = arith.constant 0 : index
        %c0_24 = arith.constant 0 : index
        %46 = vector.load %arg5[%c0_23, %c0_24] : memref<32x32xbf16, #tpu.memory_space<vmem>>, vector<32x32xbf16>
        %47 = arith.truncf %45 : vector<8x32xf32> to vector<8x32xbf16>
        %cst_25 = arith.constant dense<0.000000e+00> : vector<8x32xf32>
        %48 = tpu.matmul %47, %46, %cst_25 {dimension_numbers = #tpu.dot_dimension_numbers<[1], [0], [0], [1], [0, 0, 1, 1], [], []>} : vector<8x32xbf16>, vector<32x32xbf16>, vector<8x32xf32> -> vector<8x32xf32>
        %c0_26 = arith.constant 0 : index
        %c0_27 = arith.constant 0 : index
        %49 = vector.load %arg6[%c0_26, %c0_27] : memref<1x32xf32, #tpu.memory_space<vmem>>, vector<1x32xf32>
        %50 = vector.broadcast %49 : vector<1x32xf32> to vector<8x32xf32>
        %51 = arith.addf %48, %50 : vector<8x32xf32>
        %cst_28 = arith.constant 5.000000e-01 : f32
        %52 = vector.broadcast %cst_28 : f32 to vector<8x1xf32>
        %53 = arith.cmpf ogt, %28, %52 : vector<8x1xf32>
        %54 = vector.shape_cast %53 : vector<8x1xi1> to vector<8x1xi1>
        %55 = vector.broadcast %54 : vector<8x1xi1> to vector<8x32xi1>
        %56 = arith.select %55, %51, %25 : vector<8x32xi1>, vector<8x32xf32>
        %57 = vector.shape_cast %32 : vector<8x8x32xf32> to vector<64x32xf32>
        %c0_29 = arith.constant 0 : index
        %c0_30 = arith.constant 0 : index
        %58 = vector.load %arg11[%c0_29, %c0_30] : memref<32x64xbf16, #tpu.memory_space<vmem>>, vector<32x64xbf16>
        %59 = arith.truncf %57 : vector<64x32xf32> to vector<64x32xbf16>
        %cst_31 = arith.constant dense<0.000000e+00> : vector<64x64xf32>
        %60 = tpu.matmul %59, %58, %cst_31 {dimension_numbers = #tpu.dot_dimension_numbers<[1], [0], [0], [1], [0, 0, 1, 1], [], []>} : vector<64x32xbf16>, vector<32x64xbf16>, vector<64x64xf32> -> vector<64x64xf32>
        %61 = vector.shape_cast %60 : vector<64x64xf32> to vector<8x8x64xf32>
        %c0_32 = arith.constant 0 : index
        %c0_33 = arith.constant 0 : index
        %c0_34 = arith.constant 0 : index
        %62 = vector.load %arg18[%c0_32, %c0_33, %c0_34] : memref<2x8x32xf32, #tpu.memory_space<vmem>>, vector<1x8x32xf32>
        %63 = vector.shape_cast %62 : vector<1x8x32xf32> to vector<8x32xf32>
        %c0_35 = arith.constant 0 : index
        %c0_36 = arith.constant 0 : index
        %c0_37 = arith.constant 0 : index
        %64 = vector.load %arg19[%c0_35, %c0_36, %c0_37] : memref<2x8x32xf32, #tpu.memory_space<vmem>>, vector<1x8x32xf32>
        %65 = vector.shape_cast %64 : vector<1x8x32xf32> to vector<8x32xf32>
        %66 = tpu.concatenate %56, %63 in 1 : vector<8x32xf32>, vector<8x32xf32> -> vector<8x64xf32>
        %c0_38 = arith.constant 0 : index
        %c0_39 = arith.constant 0 : index
        %c0_40 = arith.constant 0 : index
        %67 = vector.load %arg7[%c0_38, %c0_39, %c0_40] : memref<2x64x128xbf16, #tpu.memory_space<vmem>>, vector<1x64x128xbf16>
        %68 = vector.shape_cast %67 : vector<1x64x128xbf16> to vector<64x128xbf16>
        %69 = arith.truncf %66 : vector<8x64xf32> to vector<8x64xbf16>
        %cst_41 = arith.constant dense<0.000000e+00> : vector<8x128xf32>
        %70 = tpu.matmul %69, %68, %cst_41 {dimension_numbers = #tpu.dot_dimension_numbers<[1], [0], [0], [1], [0, 0, 1, 1], [], []>} : vector<8x64xbf16>, vector<64x128xbf16>, vector<8x128xf32> -> vector<8x128xf32>
        %c0_42 = arith.constant 0 : index
        %c0_43 = arith.constant 0 : index
        %c0_44 = arith.constant 0 : index
        %71 = vector.load %arg8[%c0_42, %c0_43, %c0_44] : memref<2x1x128xf32, #tpu.memory_space<vmem>>, vector<1x1x128xf32>
        %72 = vector.shape_cast %71 : vector<1x1x128xf32> to vector<1x128xf32>
        %73 = vector.broadcast %72 : vector<1x128xf32> to vector<8x128xf32>
        %74 = arith.addf %70, %73 : vector<8x128xf32>
        %75 = arith.negf %74 : vector<8x128xf32>
        %76 = math.exp %75 : vector<8x128xf32>
        %cst_45 = arith.constant 1.000000e+00 : f32
        %77 = vector.broadcast %cst_45 : f32 to vector<8x128xf32>
        %78 = arith.addf %77, %76 : vector<8x128xf32>
        %79 = arith.divf %77, %78 : vector<8x128xf32>
        %80 = math.tanh %74 : vector<8x128xf32>
        %81 = vector.extract_strided_slice %79 {offsets = [0, 0], sizes = [8, 32], strides = [1, 1]} : vector<8x128xf32> to vector<8x32xf32>
        %82 = vector.extract_strided_slice %79 {offsets = [0, 32], sizes = [8, 32], strides = [1, 1]} : vector<8x128xf32> to vector<8x32xf32>
        %83 = vector.extract_strided_slice %80 {offsets = [0, 64], sizes = [8, 32], strides = [1, 1]} : vector<8x128xf32> to vector<8x32xf32>
        %84 = vector.extract_strided_slice %79 {offsets = [0, 96], sizes = [8, 32], strides = [1, 1]} : vector<8x128xf32> to vector<8x32xf32>
        %85 = arith.mulf %82, %65 : vector<8x32xf32>
        %86 = arith.mulf %81, %83 : vector<8x32xf32>
        %87 = arith.addf %85, %86 : vector<8x32xf32>
        %88 = math.tanh %87 : vector<8x32xf32>
        %89 = arith.mulf %84, %88 : vector<8x32xf32>
        %c0_46 = arith.constant 0 : index
        %c0_47 = arith.constant 0 : index
        %c0_48 = arith.constant 0 : index
        %90 = vector.load %arg18[%c0_46, %c0_47, %c0_48] : memref<2x8x32xf32, #tpu.memory_space<vmem>>, vector<1x8x32xf32>
        %91 = vector.shape_cast %90 : vector<1x8x32xf32> to vector<8x32xf32>
        %92 = vector.shape_cast %89 : vector<8x32xf32> to vector<1x8x32xf32>
        tpu.vector_store %arg18[%c0_46, %c0_47, %c0_48], %92 {strides = array<i32>} : memref<2x8x32xf32, #tpu.memory_space<vmem>>, vector<1x8x32xf32>,
        %c0_49 = arith.constant 0 : index
        %c0_50 = arith.constant 0 : index
        %c0_51 = arith.constant 0 : index
        %93 = vector.load %arg19[%c0_49, %c0_50, %c0_51] : memref<2x8x32xf32, #tpu.memory_space<vmem>>, vector<1x8x32xf32>
        %94 = vector.shape_cast %93 : vector<1x8x32xf32> to vector<8x32xf32>
        %95 = vector.shape_cast %87 : vector<8x32xf32> to vector<1x8x32xf32>
        tpu.vector_store %arg19[%c0_49, %c0_50, %c0_51], %95 {strides = array<i32>} : memref<2x8x32xf32, #tpu.memory_space<vmem>>, vector<1x8x32xf32>,
        %c1 = arith.constant 1 : index
        %c0_52 = arith.constant 0 : index
        %c0_53 = arith.constant 0 : index
        %96 = vector.load %arg18[%c1, %c0_52, %c0_53] : memref<2x8x32xf32, #tpu.memory_space<vmem>>, vector<1x8x32xf32>
        %97 = vector.shape_cast %96 : vector<1x8x32xf32> to vector<8x32xf32>
        %c1_54 = arith.constant 1 : index
        %c0_55 = arith.constant 0 : index
        %c0_56 = arith.constant 0 : index
        %98 = vector.load %arg19[%c1_54, %c0_55, %c0_56] : memref<2x8x32xf32, #tpu.memory_space<vmem>>, vector<1x8x32xf32>
        %99 = vector.shape_cast %98 : vector<1x8x32xf32> to vector<8x32xf32>
        %100 = tpu.concatenate %89, %97 in 1 : vector<8x32xf32>, vector<8x32xf32> -> vector<8x64xf32>
        %c1_57 = arith.constant 1 : index
        %c0_58 = arith.constant 0 : index
        %c0_59 = arith.constant 0 : index
        %101 = vector.load %arg7[%c1_57, %c0_58, %c0_59] : memref<2x64x128xbf16, #tpu.memory_space<vmem>>, vector<1x64x128xbf16>
        %102 = vector.shape_cast %101 : vector<1x64x128xbf16> to vector<64x128xbf16>
        %103 = arith.truncf %100 : vector<8x64xf32> to vector<8x64xbf16>
        %cst_60 = arith.constant dense<0.000000e+00> : vector<8x128xf32>
        %104 = tpu.matmul %103, %102, %cst_60 {dimension_numbers = #tpu.dot_dimension_numbers<[1], [0], [0], [1], [0, 0, 1, 1], [], []>} : vector<8x64xbf16>, vector<64x128xbf16>, vector<8x128xf32> -> vector<8x128xf32>
        %c1_61 = arith.constant 1 : index
        %c0_62 = arith.constant 0 : index
        %c0_63 = arith.constant 0 : index
        %105 = vector.load %arg8[%c1_61, %c0_62, %c0_63] : memref<2x1x128xf32, #tpu.memory_space<vmem>>, vector<1x1x128xf32>
        %106 = vector.shape_cast %105 : vector<1x1x128xf32> to vector<1x128xf32>
        %107 = vector.broadcast %106 : vector<1x128xf32> to vector<8x128xf32>
        %108 = arith.addf %104, %107 : vector<8x128xf32>
        %109 = arith.negf %108 : vector<8x128xf32>
        %110 = math.exp %109 : vector<8x128xf32>
        %cst_64 = arith.constant 1.000000e+00 : f32
        %111 = vector.broadcast %cst_64 : f32 to vector<8x128xf32>
        %112 = arith.addf %111, %110 : vector<8x128xf32>
        %113 = arith.divf %111, %112 : vector<8x128xf32>
        %114 = math.tanh %108 : vector<8x128xf32>
        %115 = vector.extract_strided_slice %113 {offsets = [0, 0], sizes = [8, 32], strides = [1, 1]} : vector<8x128xf32> to vector<8x32xf32>
        %116 = vector.extract_strided_slice %113 {offsets = [0, 32], sizes = [8, 32], strides = [1, 1]} : vector<8x128xf32> to vector<8x32xf32>
        %117 = vector.extract_strided_slice %114 {offsets = [0, 64], sizes = [8, 32], strides = [1, 1]} : vector<8x128xf32> to vector<8x32xf32>
        %118 = vector.extract_strided_slice %113 {offsets = [0, 96], sizes = [8, 32], strides = [1, 1]} : vector<8x128xf32> to vector<8x32xf32>
        %119 = arith.mulf %116, %99 : vector<8x32xf32>
        %120 = arith.mulf %115, %117 : vector<8x32xf32>
        %121 = arith.addf %119, %120 : vector<8x32xf32>
        %122 = math.tanh %121 : vector<8x32xf32>
        %123 = arith.mulf %118, %122 : vector<8x32xf32>
        %c1_65 = arith.constant 1 : index
        %c0_66 = arith.constant 0 : index
        %c0_67 = arith.constant 0 : index
        %124 = vector.load %arg18[%c1_65, %c0_66, %c0_67] : memref<2x8x32xf32, #tpu.memory_space<vmem>>, vector<1x8x32xf32>
        %125 = vector.shape_cast %124 : vector<1x8x32xf32> to vector<8x32xf32>
        %126 = vector.shape_cast %123 : vector<8x32xf32> to vector<1x8x32xf32>
        tpu.vector_store %arg18[%c1_65, %c0_66, %c0_67], %126 {strides = array<i32>} : memref<2x8x32xf32, #tpu.memory_space<vmem>>, vector<1x8x32xf32>,
        %c1_68 = arith.constant 1 : index
        %c0_69 = arith.constant 0 : index
        %c0_70 = arith.constant 0 : index
        %127 = vector.load %arg19[%c1_68, %c0_69, %c0_70] : memref<2x8x32xf32, #tpu.memory_space<vmem>>, vector<1x8x32xf32>
        %128 = vector.shape_cast %127 : vector<1x8x32xf32> to vector<8x32xf32>
        %129 = vector.shape_cast %121 : vector<8x32xf32> to vector<1x8x32xf32>
        tpu.vector_store %arg19[%c1_68, %c0_69, %c0_70], %129 {strides = array<i32>} : memref<2x8x32xf32, #tpu.memory_space<vmem>>, vector<1x8x32xf32>,
        %c0_71 = arith.constant 0 : index
        %c0_72 = arith.constant 0 : index
        %130 = vector.load %arg9[%c0_71, %c0_72] : memref<32x128xbf16, #tpu.memory_space<vmem>>, vector<32x128xbf16>
        %131 = arith.truncf %123 : vector<8x32xf32> to vector<8x32xbf16>
        %cst_73 = arith.constant dense<0.000000e+00> : vector<8x128xf32>
        %132 = tpu.matmul %131, %130, %cst_73 {dimension_numbers = #tpu.dot_dimension_numbers<[1], [0], [0], [1], [0, 0, 1, 1], [], []>} : vector<8x32xbf16>, vector<32x128xbf16>, vector<8x128xf32> -> vector<8x128xf32>
        %c0_74 = arith.constant 0 : index
        %c0_75 = arith.constant 0 : index
        %133 = vector.load %arg10[%c0_74, %c0_75] : memref<1x128xf32, #tpu.memory_space<vmem>>, vector<1x128xf32>
        %134 = vector.broadcast %133 : vector<1x128xf32> to vector<8x128xf32>
        %135 = arith.addf %132, %134 : vector<8x128xf32>
        %136 = vector.extract_strided_slice %135 {offsets = [0, 0], sizes = [8, 64], strides = [1, 1]} : vector<8x128xf32> to vector<8x64xf32>
        %cst_76 = arith.constant 0.000000e+00 : f32
        %137 = vector.broadcast %cst_76 : f32 to vector<8x64xf32>
        %138 = arith.maximumf %136, %137 : vector<8x64xf32>
        %139 = vector.extract_strided_slice %135 {offsets = [0, 64], sizes = [8, 64], strides = [1, 1]} : vector<8x128xf32> to vector<8x64xf32>
        %c0_77 = arith.constant 0 : index
        %c0_78 = arith.constant 0 : index
        %140 = vector.load %arg12[%c0_77, %c0_78] : memref<64x128xbf16, #tpu.memory_space<vmem>>, vector<64x128xbf16>
        %141 = arith.truncf %138 : vector<8x64xf32> to vector<8x64xbf16>
        %cst_79 = arith.constant dense<0.000000e+00> : vector<8x128xf32>
        %142 = tpu.matmul %141, %140, %cst_79 {dimension_numbers = #tpu.dot_dimension_numbers<[1], [0], [0], [1], [0, 0, 1, 1], [], []>} : vector<8x64xbf16>, vector<64x128xbf16>, vector<8x128xf32> -> vector<8x128xf32>
        %c0_80 = arith.constant 0 : index
        %c0_81 = arith.constant 0 : index
        %143 = vector.load %arg13[%c0_80, %c0_81] : memref<1x128xf32, #tpu.memory_space<vmem>>, vector<1x128xf32>
        %144 = vector.broadcast %143 : vector<1x128xf32> to vector<8x128xf32>
        %145 = arith.addf %142, %144 : vector<8x128xf32>
        %146 = tpu.concatenate %31, %8 in 1 : vector<8x16xf32>, vector<8x112xf32> -> vector<8x128xf32>
        %c16_i32 = arith.constant 16 : i32
        %147 = vector.broadcast %c16_i32 : i32 to vector<8x128xi32>
        %148 = arith.cmpi slt, %7, %147 : vector<8x128xi32>
        %149 = vector.shape_cast %30 : vector<8x1xf32> to vector<8x1xf32>
        %150 = vector.broadcast %149 : vector<8x1xf32> to vector<8x128xf32>
        %151 = arith.select %148, %146, %150 : vector<8x128xi1>, vector<8x128xf32>
        %cst_82 = arith.constant 5.000000e-01 : f32
        %152 = vector.broadcast %cst_82 : f32 to vector<8x128xf32>
        %153 = arith.cmpf ogt, %151, %152 : vector<8x128xf32>
        %cst_83 = arith.constant 0xFF800000 : f32
        %154 = vector.broadcast %cst_83 : f32 to vector<8x128xf32>
        %155 = arith.select %153, %154, %145 : vector<8x128xi1>, vector<8x128xf32>
        %cst_84 = arith.constant 5.000000e-01 : f32
        %156 = vector.broadcast %cst_84 : f32 to vector<8x1xf32>
        %157 = arith.cmpf ogt, %29, %156 : vector<8x1xf32>
        %cst_85 = arith.constant -1.000000e+00 : f32
        %158 = vector.shape_cast %157 : vector<8x1xi1> to vector<8x1xi1>
        %159 = vector.broadcast %158 : vector<8x1xi1> to vector<8x128xi1>
        %160 = vector.broadcast %cst_85 : f32 to vector<8x128xf32>
        %161 = arith.select %159, %155, %160 : vector<8x128xi1>, vector<8x128xf32>
        %162 = arith.index_cast %13 : i32 to index
        %c0_86 = arith.constant 0 : index
        %c0_87 = arith.constant 0 : index
        %163 = vector.load %arg17[%162, %c0_86, %c0_87] : memref<10x8x128xf32, #tpu.memory_space<vmem>>, vector<1x8x128xf32>
        %164 = vector.shape_cast %163 : vector<1x8x128xf32> to vector<8x128xf32>
        %165 = vector.shape_cast %161 : vector<8x128xf32> to vector<1x8x128xf32>
        tpu.vector_store %arg17[%162, %c0_86, %c0_87], %165 {strides = array<i32>} : memref<10x8x128xf32, #tpu.memory_space<vmem>>, vector<1x8x128xf32>,
        %166 = vector.shape_cast %139 : vector<8x64xf32> to vector<8x1x64xf32>
        %167 = vector.broadcast %166 : vector<8x1x64xf32> to vector<8x8x64xf32>
        %168 = arith.addf %61, %167 : vector<8x8x64xf32>
        %169 = vector.extract_strided_slice %168 {offsets = [0, 0, 0], sizes = [8, 8, 32], strides = [1, 1, 1]} : vector<8x8x64xf32> to vector<8x8x32xf32>
        %170 = math.tanh %169 : vector<8x8x32xf32>
        %171 = vector.extract_strided_slice %168 {offsets = [0, 0, 32], sizes = [8, 8, 32], strides = [1, 1, 1]} : vector<8x8x64xf32> to vector<8x8x32xf32>
        %172 = arith.negf %171 : vector<8x8x32xf32>
        %173 = math.exp %172 : vector<8x8x32xf32>
        %cst_88 = arith.constant 1.000000e+00 : f32
        %174 = vector.broadcast %cst_88 : f32 to vector<8x8x32xf32>
        %175 = arith.addf %174, %173 : vector<8x8x32xf32>
        %176 = arith.divf %174, %175 : vector<8x8x32xf32>
        %cst_89 = arith.constant 1.000000e+00 : f32
        %177 = vector.broadcast %cst_89 : f32 to vector<8x8x32xf32>
        %178 = arith.subf %177, %176 : vector<8x8x32xf32>
        %179 = arith.mulf %32, %178 : vector<8x8x32xf32>
        %180 = arith.mulf %176, %170 : vector<8x8x32xf32>
        %181 = arith.addf %179, %180 : vector<8x8x32xf32>
        %182 = vector.shape_cast %27 : vector<8x8xf32> to vector<8x8x1xf32>
        %cst_90 = arith.constant 5.000000e-01 : f32
        %183 = vector.broadcast %cst_90 : f32 to vector<8x8x1xf32>
        %184 = arith.cmpf ogt, %182, %183 : vector<8x8x1xf32>
        %cst_91 = arith.constant 0.000000e+00 : f32
        %185 = vector.shape_cast %184 : vector<8x8x1xi1> to vector<8x8x1xi1>
        %186 = vector.broadcast %185 : vector<8x8x1xi1> to vector<8x8x32xi1>
        %187 = vector.broadcast %cst_91 : f32 to vector<8x8x32xf32>
        %188 = arith.select %186, %181, %187 : vector<8x8x32xi1>, vector<8x8x32xf32>
        %c0_92 = arith.constant 0 : index
        %c0_93 = arith.constant 0 : index
        %c0_94 = arith.constant 0 : index
        %189 = vector.load %arg20[%c0_92, %c0_93, %c0_94] : memref<8x8x32xf32, #tpu.memory_space<vmem>>, vector<8x8x32xf32>
        tpu.vector_store %arg20[%c0_92, %c0_93, %c0_94], %188 {strides = array<i32>} : memref<8x8x32xf32, #tpu.memory_space<vmem>>, vector<8x8x32xf32>,
      } else {
      }
      %c2_i32_8 = arith.constant 2 : i32
      %17 = arith.muli %11, %c2_i32_8 : i32
      %c1_i32_9 = arith.constant 1 : i32
      %18 = arith.addi %17, %c1_i32_9 : i32
      %19 = arith.cmpi slt, %18, %6 : i32
      %20 = arith.extui %19 : i1 to i32
      %c0_i32_10 = arith.constant 0 : i32
      %21 = arith.cmpi ne, %20, %c0_i32_10 : i32
      scf.if %21 {
        %22 = arith.index_cast %18 : i32 to index
        %c0_11 = arith.constant 0 : index
        %c0_12 = arith.constant 0 : index
        %23 = vector.load %arg2[%22, %c0_11, %c0_12] : memref<10x8x128xf32, #tpu.memory_space<vmem>>, vector<1x8x128xf32>
        %24 = vector.shape_cast %23 : vector<1x8x128xf32> to vector<8x128xf32>
        %25 = vector.extract_strided_slice %24 {offsets = [0, 0], sizes = [8, 32], strides = [1, 1]} : vector<8x128xf32> to vector<8x32xf32>
        %26 = vector.extract_strided_slice %24 {offsets = [0, 32], sizes = [8, 8], strides = [1, 1]} : vector<8x128xf32> to vector<8x8xf32>
        %27 = vector.extract_strided_slice %24 {offsets = [0, 40], sizes = [8, 8], strides = [1, 1]} : vector<8x128xf32> to vector<8x8xf32>
        %28 = vector.extract_strided_slice %24 {offsets = [0, 48], sizes = [8, 1], strides = [1, 1]} : vector<8x128xf32> to vector<8x1xf32>
        %29 = vector.extract_strided_slice %24 {offsets = [0, 49], sizes = [8, 1], strides = [1, 1]} : vector<8x128xf32> to vector<8x1xf32>
        %30 = vector.extract_strided_slice %24 {offsets = [0, 50], sizes = [8, 1], strides = [1, 1]} : vector<8x128xf32> to vector<8x1xf32>
        %31 = vector.extract_strided_slice %24 {offsets = [0, 51], sizes = [8, 16], strides = [1, 1]} : vector<8x128xf32> to vector<8x16xf32>
        %c0_13 = arith.constant 0 : index
        %c0_14 = arith.constant 0 : index
        %c0_15 = arith.constant 0 : index
        %32 = vector.load %arg20[%c0_13, %c0_14, %c0_15] : memref<8x8x32xf32, #tpu.memory_space<vmem>>, vector<8x8x32xf32>
        %33 = vector.shape_cast %26 : vector<8x8xf32> to vector<8x8x1xf32>
        %34 = vector.broadcast %33 : vector<8x8x1xf32> to vector<8x8x32xf32>
        %35 = arith.mulf %34, %32 : vector<8x8x32xf32>
        %cst_16 = arith.constant dense<0.000000e+00> : vector<8x32xf32>
        %36 = vector.multi_reduction <add>, %35, %cst_16 [1] : vector<8x8x32xf32> to vector<8x32xf32>
        %37 = tpu.concatenate %36, %25 in 1 : vector<8x32xf32>, vector<8x32xf32> -> vector<8x64xf32>
        %c0_17 = arith.constant 0 : index
        %c0_18 = arith.constant 0 : index
        %38 = vector.load %arg3[%c0_17, %c0_18] : memref<64x32xbf16, #tpu.memory_space<vmem>>, vector<64x32xbf16>
        %39 = arith.truncf %37 : vector<8x64xf32> to vector<8x64xbf16>
        %cst_19 = arith.constant dense<0.000000e+00> : vector<8x32xf32>
        %40 = tpu.matmul %39, %38, %cst_19 {dimension_numbers = #tpu.dot_dimension_numbers<[1], [0], [0], [1], [0, 0, 1, 1], [], []>} : vector<8x64xbf16>, vector<64x32xbf16>, vector<8x32xf32> -> vector<8x32xf32>
        %c0_20 = arith.constant 0 : index
        %c0_21 = arith.constant 0 : index
        %41 = vector.load %arg4[%c0_20, %c0_21] : memref<1x32xf32, #tpu.memory_space<vmem>>, vector<1x32xf32>
        %42 = vector.broadcast %41 : vector<1x32xf32> to vector<8x32xf32>
        %43 = arith.addf %40, %42 : vector<8x32xf32>
        %cst_22 = arith.constant 0.000000e+00 : f32
        %44 = vector.broadcast %cst_22 : f32 to vector<8x32xf32>
        %45 = arith.maximumf %43, %44 : vector<8x32xf32>
        %c0_23 = arith.constant 0 : index
        %c0_24 = arith.constant 0 : index
        %46 = vector.load %arg5[%c0_23, %c0_24] : memref<32x32xbf16, #tpu.memory_space<vmem>>, vector<32x32xbf16>
        %47 = arith.truncf %45 : vector<8x32xf32> to vector<8x32xbf16>
        %cst_25 = arith.constant dense<0.000000e+00> : vector<8x32xf32>
        %48 = tpu.matmul %47, %46, %cst_25 {dimension_numbers = #tpu.dot_dimension_numbers<[1], [0], [0], [1], [0, 0, 1, 1], [], []>} : vector<8x32xbf16>, vector<32x32xbf16>, vector<8x32xf32> -> vector<8x32xf32>
        %c0_26 = arith.constant 0 : index
        %c0_27 = arith.constant 0 : index
        %49 = vector.load %arg6[%c0_26, %c0_27] : memref<1x32xf32, #tpu.memory_space<vmem>>, vector<1x32xf32>
        %50 = vector.broadcast %49 : vector<1x32xf32> to vector<8x32xf32>
        %51 = arith.addf %48, %50 : vector<8x32xf32>
        %cst_28 = arith.constant 5.000000e-01 : f32
        %52 = vector.broadcast %cst_28 : f32 to vector<8x1xf32>
        %53 = arith.cmpf ogt, %28, %52 : vector<8x1xf32>
        %54 = vector.shape_cast %53 : vector<8x1xi1> to vector<8x1xi1>
        %55 = vector.broadcast %54 : vector<8x1xi1> to vector<8x32xi1>
        %56 = arith.select %55, %51, %25 : vector<8x32xi1>, vector<8x32xf32>
        %57 = vector.shape_cast %32 : vector<8x8x32xf32> to vector<64x32xf32>
        %c0_29 = arith.constant 0 : index
        %c0_30 = arith.constant 0 : index
        %58 = vector.load %arg11[%c0_29, %c0_30] : memref<32x64xbf16, #tpu.memory_space<vmem>>, vector<32x64xbf16>
        %59 = arith.truncf %57 : vector<64x32xf32> to vector<64x32xbf16>
        %cst_31 = arith.constant dense<0.000000e+00> : vector<64x64xf32>
        %60 = tpu.matmul %59, %58, %cst_31 {dimension_numbers = #tpu.dot_dimension_numbers<[1], [0], [0], [1], [0, 0, 1, 1], [], []>} : vector<64x32xbf16>, vector<32x64xbf16>, vector<64x64xf32> -> vector<64x64xf32>
        %61 = vector.shape_cast %60 : vector<64x64xf32> to vector<8x8x64xf32>
        %c0_32 = arith.constant 0 : index
        %c0_33 = arith.constant 0 : index
        %c0_34 = arith.constant 0 : index
        %62 = vector.load %arg18[%c0_32, %c0_33, %c0_34] : memref<2x8x32xf32, #tpu.memory_space<vmem>>, vector<1x8x32xf32>
        %63 = vector.shape_cast %62 : vector<1x8x32xf32> to vector<8x32xf32>
        %c0_35 = arith.constant 0 : index
        %c0_36 = arith.constant 0 : index
        %c0_37 = arith.constant 0 : index
        %64 = vector.load %arg19[%c0_35, %c0_36, %c0_37] : memref<2x8x32xf32, #tpu.memory_space<vmem>>, vector<1x8x32xf32>
        %65 = vector.shape_cast %64 : vector<1x8x32xf32> to vector<8x32xf32>
        %66 = tpu.concatenate %56, %63 in 1 : vector<8x32xf32>, vector<8x32xf32> -> vector<8x64xf32>
        %c0_38 = arith.constant 0 : index
        %c0_39 = arith.constant 0 : index
        %c0_40 = arith.constant 0 : index
        %67 = vector.load %arg7[%c0_38, %c0_39, %c0_40] : memref<2x64x128xbf16, #tpu.memory_space<vmem>>, vector<1x64x128xbf16>
        %68 = vector.shape_cast %67 : vector<1x64x128xbf16> to vector<64x128xbf16>
        %69 = arith.truncf %66 : vector<8x64xf32> to vector<8x64xbf16>
        %cst_41 = arith.constant dense<0.000000e+00> : vector<8x128xf32>
        %70 = tpu.matmul %69, %68, %cst_41 {dimension_numbers = #tpu.dot_dimension_numbers<[1], [0], [0], [1], [0, 0, 1, 1], [], []>} : vector<8x64xbf16>, vector<64x128xbf16>, vector<8x128xf32> -> vector<8x128xf32>
        %c0_42 = arith.constant 0 : index
        %c0_43 = arith.constant 0 : index
        %c0_44 = arith.constant 0 : index
        %71 = vector.load %arg8[%c0_42, %c0_43, %c0_44] : memref<2x1x128xf32, #tpu.memory_space<vmem>>, vector<1x1x128xf32>
        %72 = vector.shape_cast %71 : vector<1x1x128xf32> to vector<1x128xf32>
        %73 = vector.broadcast %72 : vector<1x128xf32> to vector<8x128xf32>
        %74 = arith.addf %70, %73 : vector<8x128xf32>
        %75 = arith.negf %74 : vector<8x128xf32>
        %76 = math.exp %75 : vector<8x128xf32>
        %cst_45 = arith.constant 1.000000e+00 : f32
        %77 = vector.broadcast %cst_45 : f32 to vector<8x128xf32>
        %78 = arith.addf %77, %76 : vector<8x128xf32>
        %79 = arith.divf %77, %78 : vector<8x128xf32>
        %80 = math.tanh %74 : vector<8x128xf32>
        %81 = vector.extract_strided_slice %79 {offsets = [0, 0], sizes = [8, 32], strides = [1, 1]} : vector<8x128xf32> to vector<8x32xf32>
        %82 = vector.extract_strided_slice %79 {offsets = [0, 32], sizes = [8, 32], strides = [1, 1]} : vector<8x128xf32> to vector<8x32xf32>
        %83 = vector.extract_strided_slice %80 {offsets = [0, 64], sizes = [8, 32], strides = [1, 1]} : vector<8x128xf32> to vector<8x32xf32>
        %84 = vector.extract_strided_slice %79 {offsets = [0, 96], sizes = [8, 32], strides = [1, 1]} : vector<8x128xf32> to vector<8x32xf32>
        %85 = arith.mulf %82, %65 : vector<8x32xf32>
        %86 = arith.mulf %81, %83 : vector<8x32xf32>
        %87 = arith.addf %85, %86 : vector<8x32xf32>
        %88 = math.tanh %87 : vector<8x32xf32>
        %89 = arith.mulf %84, %88 : vector<8x32xf32>
        %c0_46 = arith.constant 0 : index
        %c0_47 = arith.constant 0 : index
        %c0_48 = arith.constant 0 : index
        %90 = vector.load %arg18[%c0_46, %c0_47, %c0_48] : memref<2x8x32xf32, #tpu.memory_space<vmem>>, vector<1x8x32xf32>
        %91 = vector.shape_cast %90 : vector<1x8x32xf32> to vector<8x32xf32>
        %92 = vector.shape_cast %89 : vector<8x32xf32> to vector<1x8x32xf32>
        tpu.vector_store %arg18[%c0_46, %c0_47, %c0_48], %92 {strides = array<i32>} : memref<2x8x32xf32, #tpu.memory_space<vmem>>, vector<1x8x32xf32>,
        %c0_49 = arith.constant 0 : index
        %c0_50 = arith.constant 0 : index
        %c0_51 = arith.constant 0 : index
        %93 = vector.load %arg19[%c0_49, %c0_50, %c0_51] : memref<2x8x32xf32, #tpu.memory_space<vmem>>, vector<1x8x32xf32>
        %94 = vector.shape_cast %93 : vector<1x8x32xf32> to vector<8x32xf32>
        %95 = vector.shape_cast %87 : vector<8x32xf32> to vector<1x8x32xf32>
        tpu.vector_store %arg19[%c0_49, %c0_50, %c0_51], %95 {strides = array<i32>} : memref<2x8x32xf32, #tpu.memory_space<vmem>>, vector<1x8x32xf32>,
        %c1 = arith.constant 1 : index
        %c0_52 = arith.constant 0 : index
        %c0_53 = arith.constant 0 : index
        %96 = vector.load %arg18[%c1, %c0_52, %c0_53] : memref<2x8x32xf32, #tpu.memory_space<vmem>>, vector<1x8x32xf32>
        %97 = vector.shape_cast %96 : vector<1x8x32xf32> to vector<8x32xf32>
        %c1_54 = arith.constant 1 : index
        %c0_55 = arith.constant 0 : index
        %c0_56 = arith.constant 0 : index
        %98 = vector.load %arg19[%c1_54, %c0_55, %c0_56] : memref<2x8x32xf32, #tpu.memory_space<vmem>>, vector<1x8x32xf32>
        %99 = vector.shape_cast %98 : vector<1x8x32xf32> to vector<8x32xf32>
        %100 = tpu.concatenate %89, %97 in 1 : vector<8x32xf32>, vector<8x32xf32> -> vector<8x64xf32>
        %c1_57 = arith.constant 1 : index
        %c0_58 = arith.constant 0 : index
        %c0_59 = arith.constant 0 : index
        %101 = vector.load %arg7[%c1_57, %c0_58, %c0_59] : memref<2x64x128xbf16, #tpu.memory_space<vmem>>, vector<1x64x128xbf16>
        %102 = vector.shape_cast %101 : vector<1x64x128xbf16> to vector<64x128xbf16>
        %103 = arith.truncf %100 : vector<8x64xf32> to vector<8x64xbf16>
        %cst_60 = arith.constant dense<0.000000e+00> : vector<8x128xf32>
        %104 = tpu.matmul %103, %102, %cst_60 {dimension_numbers = #tpu.dot_dimension_numbers<[1], [0], [0], [1], [0, 0, 1, 1], [], []>} : vector<8x64xbf16>, vector<64x128xbf16>, vector<8x128xf32> -> vector<8x128xf32>
        %c1_61 = arith.constant 1 : index
        %c0_62 = arith.constant 0 : index
        %c0_63 = arith.constant 0 : index
        %105 = vector.load %arg8[%c1_61, %c0_62, %c0_63] : memref<2x1x128xf32, #tpu.memory_space<vmem>>, vector<1x1x128xf32>
        %106 = vector.shape_cast %105 : vector<1x1x128xf32> to vector<1x128xf32>
        %107 = vector.broadcast %106 : vector<1x128xf32> to vector<8x128xf32>
        %108 = arith.addf %104, %107 : vector<8x128xf32>
        %109 = arith.negf %108 : vector<8x128xf32>
        %110 = math.exp %109 : vector<8x128xf32>
        %cst_64 = arith.constant 1.000000e+00 : f32
        %111 = vector.broadcast %cst_64 : f32 to vector<8x128xf32>
        %112 = arith.addf %111, %110 : vector<8x128xf32>
        %113 = arith.divf %111, %112 : vector<8x128xf32>
        %114 = math.tanh %108 : vector<8x128xf32>
        %115 = vector.extract_strided_slice %113 {offsets = [0, 0], sizes = [8, 32], strides = [1, 1]} : vector<8x128xf32> to vector<8x32xf32>
        %116 = vector.extract_strided_slice %113 {offsets = [0, 32], sizes = [8, 32], strides = [1, 1]} : vector<8x128xf32> to vector<8x32xf32>
        %117 = vector.extract_strided_slice %114 {offsets = [0, 64], sizes = [8, 32], strides = [1, 1]} : vector<8x128xf32> to vector<8x32xf32>
        %118 = vector.extract_strided_slice %113 {offsets = [0, 96], sizes = [8, 32], strides = [1, 1]} : vector<8x128xf32> to vector<8x32xf32>
        %119 = arith.mulf %116, %99 : vector<8x32xf32>
        %120 = arith.mulf %115, %117 : vector<8x32xf32>
        %121 = arith.addf %119, %120 : vector<8x32xf32>
        %122 = math.tanh %121 : vector<8x32xf32>
        %123 = arith.mulf %118, %122 : vector<8x32xf32>
        %c1_65 = arith.constant 1 : index
        %c0_66 = arith.constant 0 : index
        %c0_67 = arith.constant 0 : index
        %124 = vector.load %arg18[%c1_65, %c0_66, %c0_67] : memref<2x8x32xf32, #tpu.memory_space<vmem>>, vector<1x8x32xf32>
        %125 = vector.shape_cast %124 : vector<1x8x32xf32> to vector<8x32xf32>
        %126 = vector.shape_cast %123 : vector<8x32xf32> to vector<1x8x32xf32>
        tpu.vector_store %arg18[%c1_65, %c0_66, %c0_67], %126 {strides = array<i32>} : memref<2x8x32xf32, #tpu.memory_space<vmem>>, vector<1x8x32xf32>,
        %c1_68 = arith.constant 1 : index
        %c0_69 = arith.constant 0 : index
        %c0_70 = arith.constant 0 : index
        %127 = vector.load %arg19[%c1_68, %c0_69, %c0_70] : memref<2x8x32xf32, #tpu.memory_space<vmem>>, vector<1x8x32xf32>
        %128 = vector.shape_cast %127 : vector<1x8x32xf32> to vector<8x32xf32>
        %129 = vector.shape_cast %121 : vector<8x32xf32> to vector<1x8x32xf32>
        tpu.vector_store %arg19[%c1_68, %c0_69, %c0_70], %129 {strides = array<i32>} : memref<2x8x32xf32, #tpu.memory_space<vmem>>, vector<1x8x32xf32>,
        %c0_71 = arith.constant 0 : index
        %c0_72 = arith.constant 0 : index
        %130 = vector.load %arg9[%c0_71, %c0_72] : memref<32x128xbf16, #tpu.memory_space<vmem>>, vector<32x128xbf16>
        %131 = arith.truncf %123 : vector<8x32xf32> to vector<8x32xbf16>
        %cst_73 = arith.constant dense<0.000000e+00> : vector<8x128xf32>
        %132 = tpu.matmul %131, %130, %cst_73 {dimension_numbers = #tpu.dot_dimension_numbers<[1], [0], [0], [1], [0, 0, 1, 1], [], []>} : vector<8x32xbf16>, vector<32x128xbf16>, vector<8x128xf32> -> vector<8x128xf32>
        %c0_74 = arith.constant 0 : index
        %c0_75 = arith.constant 0 : index
        %133 = vector.load %arg10[%c0_74, %c0_75] : memref<1x128xf32, #tpu.memory_space<vmem>>, vector<1x128xf32>
        %134 = vector.broadcast %133 : vector<1x128xf32> to vector<8x128xf32>
        %135 = arith.addf %132, %134 : vector<8x128xf32>
        %136 = vector.extract_strided_slice %135 {offsets = [0, 0], sizes = [8, 64], strides = [1, 1]} : vector<8x128xf32> to vector<8x64xf32>
        %cst_76 = arith.constant 0.000000e+00 : f32
        %137 = vector.broadcast %cst_76 : f32 to vector<8x64xf32>
        %138 = arith.maximumf %136, %137 : vector<8x64xf32>
        %139 = vector.extract_strided_slice %135 {offsets = [0, 64], sizes = [8, 64], strides = [1, 1]} : vector<8x128xf32> to vector<8x64xf32>
        %c0_77 = arith.constant 0 : index
        %c0_78 = arith.constant 0 : index
        %140 = vector.load %arg12[%c0_77, %c0_78] : memref<64x128xbf16, #tpu.memory_space<vmem>>, vector<64x128xbf16>
        %141 = arith.truncf %138 : vector<8x64xf32> to vector<8x64xbf16>
        %cst_79 = arith.constant dense<0.000000e+00> : vector<8x128xf32>
        %142 = tpu.matmul %141, %140, %cst_79 {dimension_numbers = #tpu.dot_dimension_numbers<[1], [0], [0], [1], [0, 0, 1, 1], [], []>} : vector<8x64xbf16>, vector<64x128xbf16>, vector<8x128xf32> -> vector<8x128xf32>
        %c0_80 = arith.constant 0 : index
        %c0_81 = arith.constant 0 : index
        %143 = vector.load %arg13[%c0_80, %c0_81] : memref<1x128xf32, #tpu.memory_space<vmem>>, vector<1x128xf32>
        %144 = vector.broadcast %143 : vector<1x128xf32> to vector<8x128xf32>
        %145 = arith.addf %142, %144 : vector<8x128xf32>
        %146 = tpu.concatenate %31, %8 in 1 : vector<8x16xf32>, vector<8x112xf32> -> vector<8x128xf32>
        %c16_i32 = arith.constant 16 : i32
        %147 = vector.broadcast %c16_i32 : i32 to vector<8x128xi32>
        %148 = arith.cmpi slt, %7, %147 : vector<8x128xi32>
        %149 = vector.shape_cast %30 : vector<8x1xf32> to vector<8x1xf32>
        %150 = vector.broadcast %149 : vector<8x1xf32> to vector<8x128xf32>
        %151 = arith.select %148, %146, %150 : vector<8x128xi1>, vector<8x128xf32>
        %cst_82 = arith.constant 5.000000e-01 : f32
        %152 = vector.broadcast %cst_82 : f32 to vector<8x128xf32>
        %153 = arith.cmpf ogt, %151, %152 : vector<8x128xf32>
        %cst_83 = arith.constant 0xFF800000 : f32
        %154 = vector.broadcast %cst_83 : f32 to vector<8x128xf32>
        %155 = arith.select %153, %154, %145 : vector<8x128xi1>, vector<8x128xf32>
        %cst_84 = arith.constant 5.000000e-01 : f32
        %156 = vector.broadcast %cst_84 : f32 to vector<8x1xf32>
        %157 = arith.cmpf ogt, %29, %156 : vector<8x1xf32>
        %cst_85 = arith.constant -1.000000e+00 : f32
        %158 = vector.shape_cast %157 : vector<8x1xi1> to vector<8x1xi1>
        %159 = vector.broadcast %158 : vector<8x1xi1> to vector<8x128xi1>
        %160 = vector.broadcast %cst_85 : f32 to vector<8x128xf32>
        %161 = arith.select %159, %155, %160 : vector<8x128xi1>, vector<8x128xf32>
        %162 = arith.index_cast %18 : i32 to index
        %c0_86 = arith.constant 0 : index
        %c0_87 = arith.constant 0 : index
        %163 = vector.load %arg17[%162, %c0_86, %c0_87] : memref<10x8x128xf32, #tpu.memory_space<vmem>>, vector<1x8x128xf32>
        %164 = vector.shape_cast %163 : vector<1x8x128xf32> to vector<8x128xf32>
        %165 = vector.shape_cast %161 : vector<8x128xf32> to vector<1x8x128xf32>
        tpu.vector_store %arg17[%162, %c0_86, %c0_87], %165 {strides = array<i32>} : memref<10x8x128xf32, #tpu.memory_space<vmem>>, vector<1x8x128xf32>,
        %166 = vector.shape_cast %139 : vector<8x64xf32> to vector<8x1x64xf32>
        %167 = vector.broadcast %166 : vector<8x1x64xf32> to vector<8x8x64xf32>
        %168 = arith.addf %61, %167 : vector<8x8x64xf32>
        %169 = vector.extract_strided_slice %168 {offsets = [0, 0, 0], sizes = [8, 8, 32], strides = [1, 1, 1]} : vector<8x8x64xf32> to vector<8x8x32xf32>
        %170 = math.tanh %169 : vector<8x8x32xf32>
        %171 = vector.extract_strided_slice %168 {offsets = [0, 0, 32], sizes = [8, 8, 32], strides = [1, 1, 1]} : vector<8x8x64xf32> to vector<8x8x32xf32>
        %172 = arith.negf %171 : vector<8x8x32xf32>
        %173 = math.exp %172 : vector<8x8x32xf32>
        %cst_88 = arith.constant 1.000000e+00 : f32
        %174 = vector.broadcast %cst_88 : f32 to vector<8x8x32xf32>
        %175 = arith.addf %174, %173 : vector<8x8x32xf32>
        %176 = arith.divf %174, %175 : vector<8x8x32xf32>
        %cst_89 = arith.constant 1.000000e+00 : f32
        %177 = vector.broadcast %cst_89 : f32 to vector<8x8x32xf32>
        %178 = arith.subf %177, %176 : vector<8x8x32xf32>
        %179 = arith.mulf %32, %178 : vector<8x8x32xf32>
        %180 = arith.mulf %176, %170 : vector<8x8x32xf32>
        %181 = arith.addf %179, %180 : vector<8x8x32xf32>
        %182 = vector.shape_cast %27 : vector<8x8xf32> to vector<8x8x1xf32>
        %cst_90 = arith.constant 5.000000e-01 : f32
        %183 = vector.broadcast %cst_90 : f32 to vector<8x8x1xf32>
        %184 = arith.cmpf ogt, %182, %183 : vector<8x8x1xf32>
        %cst_91 = arith.constant 0.000000e+00 : f32
        %185 = vector.shape_cast %184 : vector<8x8x1xi1> to vector<8x8x1xi1>
        %186 = vector.broadcast %185 : vector<8x8x1xi1> to vector<8x8x32xi1>
        %187 = vector.broadcast %cst_91 : f32 to vector<8x8x32xf32>
        %188 = arith.select %186, %181, %187 : vector<8x8x32xi1>, vector<8x8x32xf32>
        %c0_92 = arith.constant 0 : index
        %c0_93 = arith.constant 0 : index
        %c0_94 = arith.constant 0 : index
        %189 = vector.load %arg20[%c0_92, %c0_93, %c0_94] : memref<8x8x32xf32, #tpu.memory_space<vmem>>, vector<8x8x32xf32>
        tpu.vector_store %arg20[%c0_92, %c0_93, %c0_94], %188 {strides = array<i32>} : memref<8x8x32xf32, #tpu.memory_space<vmem>>, vector<8x8x32xf32>,
      } else {
      }
    }
    %c5_i32_3 = arith.constant 5 : i32
    return
  }
  func.func @transform_0(%arg0: i32, %arg1: memref<1xi32, #tpu.memory_space<smem>>) -> (i32, i32, i32) {
    %c0_i32 = arith.constant 0 : i32
    %c0_i32_0 = arith.constant 0 : i32
    %c0_i32_1 = arith.constant 0 : i32
    return %arg0, %c0_i32, %c0_i32_0 : i32, i32, i32
  }
  func.func @transform_1(%arg0: i32, %arg1: memref<1xi32, #tpu.memory_space<smem>>) -> (i32, i32) {
    %c0_i32 = arith.constant 0 : i32
    %c0_i32_0 = arith.constant 0 : i32
    %c0_i32_1 = arith.constant 0 : i32
    return %c0_i32, %c0_i32_0 : i32, i32
  }
  func.func @transform_2(%arg0: i32, %arg1: memref<1xi32, #tpu.memory_space<smem>>) -> (i32, i32) {
    %c0_i32 = arith.constant 0 : i32
    %c0_i32_0 = arith.constant 0 : i32
    %c0_i32_1 = arith.constant 0 : i32
    return %c0_i32, %c0_i32_0 : i32, i32
  }
  func.func @transform_3(%arg0: i32, %arg1: memref<1xi32, #tpu.memory_space<smem>>) -> (i32, i32) {
    %c0_i32 = arith.constant 0 : i32
    %c0_i32_0 = arith.constant 0 : i32
    %c0_i32_1 = arith.constant 0 : i32
    return %c0_i32, %c0_i32_0 : i32, i32
  }
  func.func @transform_4(%arg0: i32, %arg1: memref<1xi32, #tpu.memory_space<smem>>) -> (i32, i32) {
    %c0_i32 = arith.constant 0 : i32
    %c0_i32_0 = arith.constant 0 : i32
    %c0_i32_1 = arith.constant 0 : i32
    return %c0_i32, %c0_i32_0 : i32, i32
  }
  func.func @transform_5(%arg0: i32, %arg1: memref<1xi32, #tpu.memory_space<smem>>) -> (i32, i32, i32) {
    %c0_i32 = arith.constant 0 : i32
    %c0_i32_0 = arith.constant 0 : i32
    %c0_i32_1 = arith.constant 0 : i32
    %c0_i32_2 = arith.constant 0 : i32
    return %c0_i32, %c0_i32_0, %c0_i32_1 : i32, i32, i32
  }
  func.func @transform_6(%arg0: i32, %arg1: memref<1xi32, #tpu.memory_space<smem>>) -> (i32, i32, i32) {
    %c0_i32 = arith.constant 0 : i32
    %c0_i32_0 = arith.constant 0 : i32
    %c0_i32_1 = arith.constant 0 : i32
    %c0_i32_2 = arith.constant 0 : i32
    return %c0_i32, %c0_i32_0, %c0_i32_1 : i32, i32, i32
  }
  func.func @transform_7(%arg0: i32, %arg1: memref<1xi32, #tpu.memory_space<smem>>) -> (i32, i32) {
    %c0_i32 = arith.constant 0 : i32
    %c0_i32_0 = arith.constant 0 : i32
    %c0_i32_1 = arith.constant 0 : i32
    return %c0_i32, %c0_i32_0 : i32, i32
  }
  func.func @transform_8(%arg0: i32, %arg1: memref<1xi32, #tpu.memory_space<smem>>) -> (i32, i32) {
    %c0_i32 = arith.constant 0 : i32
    %c0_i32_0 = arith.constant 0 : i32
    %c0_i32_1 = arith.constant 0 : i32
    return %c0_i32, %c0_i32_0 : i32, i32
  }
  func.func @transform_9(%arg0: i32, %arg1: memref<1xi32, #tpu.memory_space<smem>>) -> (i32, i32) {
    %c0_i32 = arith.constant 0 : i32
    %c0_i32_0 = arith.constant 0 : i32
    %c0_i32_1 = arith.constant 0 : i32
    return %c0_i32, %c0_i32_0 : i32, i32
  }
  func.func @transform_10(%arg0: i32, %arg1: memref<1xi32, #tpu.memory_space<smem>>) -> (i32, i32) {
    %c0_i32 = arith.constant 0 : i32
    %c0_i32_0 = arith.constant 0 : i32
    %c0_i32_1 = arith.constant 0 : i32
    return %c0_i32, %c0_i32_0 : i32, i32
  }
  func.func @transform_11(%arg0: i32, %arg1: memref<1xi32, #tpu.memory_space<smem>>) -> (i32, i32) {
    %c0_i32 = arith.constant 0 : i32
    %c0_i32_0 = arith.constant 0 : i32
    %c0_i32_1 = arith.constant 0 : i32
    return %c0_i32, %c0_i32_0 : i32, i32
  }
  func.func @transform_12(%arg0: i32, %arg1: memref<1xi32, #tpu.memory_space<smem>>) -> (i32, i32, i32) {
    %c0_i32 = arith.constant 0 : i32
    %c0_i32_0 = arith.constant 0 : i32
    %c0_i32_1 = arith.constant 0 : i32
    %c0_i32_2 = arith.constant 0 : i32
    return %c0_i32, %c0_i32_0, %c0_i32_1 : i32, i32, i32
  }
  func.func @transform_13(%arg0: i32, %arg1: memref<1xi32, #tpu.memory_space<smem>>) -> (i32, i32, i32) {
    %c0_i32 = arith.constant 0 : i32
    %c0_i32_0 = arith.constant 0 : i32
    %c0_i32_1 = arith.constant 0 : i32
    %c0_i32_2 = arith.constant 0 : i32
    return %c0_i32, %c0_i32_0, %c0_i32_1 : i32, i32, i32
  }
  func.func @transform_14(%arg0: i32, %arg1: memref<1xi32, #tpu.memory_space<smem>>) -> (i32, i32, i32) {
    %c0_i32 = arith.constant 0 : i32
    %c0_i32_0 = arith.constant 0 : i32
    %c0_i32_1 = arith.constant 0 : i32
    %c0_i32_2 = arith.constant 0 : i32
    return %c0_i32, %c0_i32_0, %c0_i32_1 : i32, i32, i32
  }
  func.func @transform_15(%arg0: i32, %arg1: memref<1xi32, #tpu.memory_space<smem>>) -> (i32, i32, i32) {
    %c0_i32 = arith.constant 0 : i32
    %c0_i32_0 = arith.constant 0 : i32
    %c0_i32_1 = arith.constant 0 : i32
    return %arg0, %c0_i32, %c0_i32_0 : i32, i32, i32
  }
}

</mosaic_0001>

<llo_original>
// kernel: scope_grammar_lm_forward.1
$region0: #{scope_grammar_lm_forward.1}
  #allocation0 [shape = 'u32[]', space=smem, size = 0x4, offset = 0x4, fixed_abs, tag = 'smem constant byte address 0x4 - core index']
  #allocation1 [shape = 'u32[144,128]{1,0:T(1,128)}', space=vmem, size = 0x12000, scoped, tag = 'internal scratch']
  #allocation2 [shape = 'f32[2,8,32]{2,1,0:T(8,128)}', space=vmem, size = 0x2000, scoped, tag = 'scratch operand']
  #allocation3 [shape = 'f32[2,8,32]{2,1,0:T(8,128)}', space=vmem, size = 0x2000, scoped, tag = 'scratch operand']
  #allocation4 [shape = 'f32[8,8,32]{2,1,0:T(8,128)}', space=vmem, size = 0x8000, scoped, tag = 'scratch operand']
  #allocation5 [shape = 's32[1]{0}', space=sflag, size = 0x4, scoped, tag = 'scoped memory for scope_grammar_lm_forward.1']
  #allocation6 [shape = 's32[1]{0:T(128)S(6)}', space=smem, size = 0x200, scoped, tag = 'prefetched SMEM operand 0']
  %s0 = inlined_call_operand.<no memory space> [shape: s32[1], index: 0, kind: input, shape index: {}]
  %s1 = inlined_call_operand.vmem [shape: f32[10,8,128], index: 1, kind: input, shape index: {}]
  %s2 = inlined_call_operand.vmem [shape: bf16[64,32], index: 2, kind: input, shape index: {}]
  %s3 = inlined_call_operand.vmem [shape: f32[1,32], index: 3, kind: input, shape index: {}]
  %s4 = inlined_call_operand.vmem [shape: bf16[32,32], index: 4, kind: input, shape index: {}]
  %s5 = inlined_call_operand.vmem [shape: f32[1,32], index: 5, kind: input, shape index: {}]
  %s6 = inlined_call_operand.vmem [shape: bf16[2,64,128], index: 6, kind: input, shape index: {}]
  %s7 = inlined_call_operand.vmem [shape: f32[2,1,128], index: 7, kind: input, shape index: {}]
  %s8 = inlined_call_operand.vmem [shape: bf16[32,128], index: 8, kind: input, shape index: {}]
  %s9 = inlined_call_operand.vmem [shape: f32[1,128], index: 9, kind: input, shape index: {}]
  %s10 = inlined_call_operand.vmem [shape: bf16[32,64], index: 10, kind: input, shape index: {}]
  %s11 = inlined_call_operand.vmem [shape: bf16[64,128], index: 11, kind: input, shape index: {}]
  %s12 = inlined_call_operand.vmem [shape: f32[1,128], index: 12, kind: input, shape index: {}]
  %s13 = inlined_call_operand.vmem [shape: f32[2,8,32], index: 13, kind: input, shape index: {}]
  %s14 = inlined_call_operand.vmem [shape: f32[2,8,32], index: 14, kind: input, shape index: {}]
  %s15 = inlined_call_operand.vmem [shape: f32[8,8,32], index: 15, kind: input, shape index: {}]
  %s16 = inlined_call_operand.hbm [shape: f32[10,8,128], index: 16, kind: output, shape index: {}]
  %s17 = sld [smem:[#allocation0]]
  $region89: #{scope_grammar_lm_forward.1} parent=0
    _
  %s19 = ssub.s32 1, %s17
  %s20 = scalar_select 0, %s19, %s17
  %21 = sst [smem:[#allocation6]] %s0
  $region1: #{scope_grammar_lm_forward.1} parent=0
    #allocation7 [shape = 'u8[40960]{0}', space=vmem, size = 0xa000, scoped, tag = 'output window, operand 0, single buffered']
    #allocation8 [shape = 's32[1]{0}', space=sflag, size = 0x4, scoped, tag = 'scoped memory for scope_grammar_lm_forward.1']
    %22 = vsyncpa [#allocation8], 0
    // Predicated region
    $region2: #{scope_grammar_lm_forward.1} parent=1 // pred_check
      _
    $region3: #{scope_grammar_lm_forward.1} parent=1 // pred_check_branch
      %24 = sbr.rel (0) target = $region5
    $region4: #{scope_grammar_lm_forward.1} parent=1 // pred_region
      _
    $region5: #{scope_grammar_lm_forward.1} parent=1 // pred_fallthru
      _
    // Predicated region
    $region6: #{scope_grammar_lm_forward.1} parent=1 // pred_check
      _
    $region7: #{scope_grammar_lm_forward.1} parent=1 // pred_check_branch
      %26 = sbr.rel (0) target = $region9
    $region8: #{scope_grammar_lm_forward.1} parent=1 // pred_region
      _
    $region9: #{scope_grammar_lm_forward.1} parent=1 // pred_fallthru
      _
    // Predicated region
    $region10: #{scope_grammar_lm_forward.1} parent=1 // pred_check
      _
    $region11: #{scope_grammar_lm_forward.1} parent=1 // pred_check_branch
      %28 = sbr.rel (0) target = $region13
    $region12: #{scope_grammar_lm_forward.1} parent=1 // pred_region
      _
    $region13: #{scope_grammar_lm_forward.1} parent=1 // pred_fallthru
      _
    // Predicated region
    $region14: #{scope_grammar_lm_forward.1} parent=1 // pred_check
      _
    $region15: #{scope_grammar_lm_forward.1} parent=1 // pred_check_branch
      %30 = sbr.rel (0) target = $region17
    $region16: #{scope_grammar_lm_forward.1} parent=1 // pred_region
      _
    $region17: #{scope_grammar_lm_forward.1} parent=1 // pred_fallthru
      _
    // Predicated region
    $region18: #{scope_grammar_lm_forward.1} parent=1 // pred_check
      _
    $region19: #{scope_grammar_lm_forward.1} parent=1 // pred_check_branch
      %32 = sbr.rel (0) target = $region21
    $region20: #{scope_grammar_lm_forward.1} parent=1 // pred_region
      _
    $region21: #{scope_grammar_lm_forward.1} parent=1 // pred_fallthru
      _
    // Predicated region
    $region22: #{scope_grammar_lm_forward.1} parent=1 // pred_check
      _
    $region23: #{scope_grammar_lm_forward.1} parent=1 // pred_check_branch
      %34 = sbr.rel (0) target = $region25
    $region24: #{scope_grammar_lm_forward.1} parent=1 // pred_region
      _
    $region25: #{scope_grammar_lm_forward.1} parent=1 // pred_fallthru
      _
    // Predicated region
    $region26: #{scope_grammar_lm_forward.1} parent=1 // pred_check
      _
    $region27: #{scope_grammar_lm_forward.1} parent=1 // pred_check_branch
      %36 = sbr.rel (0) target = $region29
    $region28: #{scope_grammar_lm_forward.1} parent=1 // pred_region
      _
    $region29: #{scope_grammar_lm_forward.1} parent=1 // pred_fallthru
      _
    // Predicated region
    $region30: #{scope_grammar_lm_forward.1} parent=1 // pred_check
      _
    $region31: #{scope_grammar_lm_forward.1} parent=1 // pred_check_branch
      %38 = sbr.rel (0) target = $region33
    $region32: #{scope_grammar_lm_forward.1} parent=1 // pred_region
      _
    $region33: #{scope_grammar_lm_forward.1} parent=1 // pred_fallthru
      _
    // Predicated region
    $region34: #{scope_grammar_lm_forward.1} parent=1 // pred_check
      _
    $region35: #{scope_grammar_lm_forward.1} parent=1 // pred_check_branch
      %40 = sbr.rel (0) target = $region37
    $region36: #{scope_grammar_lm_forward.1} parent=1 // pred_region
      _
    $region37: #{scope_grammar_lm_forward.1} parent=1 // pred_fallthru
      _
    // Predicated region
    $region38: #{scope_grammar_lm_forward.1} parent=1 // pred_check
      _
    $region39: #{scope_grammar_lm_forward.1} parent=1 // pred_check_branch
      %42 = sbr.rel (0) target = $region41
    $region40: #{scope_grammar_lm_forward.1} parent=1 // pred_region
      _
    $region41: #{scope_grammar_lm_forward.1} parent=1 // pred_fallthru
      _
    // Predicated region
    $region42: #{scope_grammar_lm_forward.1} parent=1 // pred_check
      _
    $region43: #{scope_grammar_lm_forward.1} parent=1 // pred_check_branch
      %44 = sbr.rel (0) target = $region45
    $region44: #{scope_grammar_lm_forward.1} parent=1 // pred_region
      _
    $region45: #{scope_grammar_lm_forward.1} parent=1 // pred_fallthru
      _
    // Predicated region
    $region46: #{scope_grammar_lm_forward.1} parent=1 // pred_check
      _
    $region47: #{scope_grammar_lm_forward.1} parent=1 // pred_check_branch
      %46 = sbr.rel (0) target = $region49
    $region48: #{scope_grammar_lm_forward.1} parent=1 // pred_region
      _
    $region49: #{scope_grammar_lm_forward.1} parent=1 // pred_fallthru
      _
    // Predicated region
    $region50: #{scope_grammar_lm_forward.1} parent=1 // pred_check
      _
    $region51: #{scope_grammar_lm_forward.1} parent=1 // pred_check_branch
      %48 = sbr.rel (0) target = $region53
    $region52: #{scope_grammar_lm_forward.1} parent=1 // pred_region
      _
    $region53: #{scope_grammar_lm_forward.1} parent=1 // pred_fallthru
      _
    // Predicated region
    $region54: #{scope_grammar_lm_forward.1} parent=1 // pred_check
      _
    $region55: #{scope_grammar_lm_forward.1} parent=1 // pred_check_branch
      %50 = sbr.rel (0) target = $region57
    $region56: #{scope_grammar_lm_forward.1} parent=1 // pred_region
      _
    $region57: #{scope_grammar_lm_forward.1} parent=1 // pred_fallthru
      _
    // Predicated region
    $region58: #{scope_grammar_lm_forward.1} parent=1 // pred_check
      _
    $region59: #{scope_grammar_lm_forward.1} parent=1 // pred_check_branch
      %52 = sbr.rel (0) target = $region61
    $region60: #{scope_grammar_lm_forward.1} parent=1 // pred_region
      _
    $region61: #{scope_grammar_lm_forward.1} parent=1 // pred_fallthru
      _
    %p54 = scmp.eq.s32.totalorder 0, 0
    // Predicated region
    $region62: #{scope_grammar_lm_forward.1} parent=1 // pred_check
      %p55 = pneg %p54
    $region63: #{scope_grammar_lm_forward.1} parent=1 // pred_check_branch
      %57 = sbr.rel (%p55) target = $region65
    $region64: #{scope_grammar_lm_forward.1} parent=1 // pred_region
      %v58 = vld [vmem:[%s13] sm:$0xff]
      %v59 = vld [vmem:[%s13 + $0x8] sm:$0xff]
      %vm60 = vcmask 261120
      %61 = vst.msk [vmem:[#allocation2] sm:$0xff] %vm60, %v58
      %62 = vst.msk [vmem:[#allocation2 + $0x8] sm:$0xff] %vm60, %v59
      %v63 = vld [vmem:[%s14] sm:$0xff]
      %v64 = vld [vmem:[%s14 + $0x8] sm:$0xff]
      %65 = vst.msk [vmem:[#allocation3] sm:$0xff] %vm60, %v63
      %66 = vst.msk [vmem:[#allocation3 + $0x8] sm:$0xff] %vm60, %v64
      %v67 = vld [vmem:[%s15] sm:$0xff]
      %v68 = vld [vmem:[%s15 + $0x8] sm:$0xff]
      %v69 = vld [vmem:[%s15 + $0x10] sm:$0xff]
      %v70 = vld [vmem:[%s15 + $0x18] sm:$0xff]
      %v71 = vld [vmem:[%s15 + $0x20] sm:$0xff]
      %v72 = vld [vmem:[%s15 + $0x28] sm:$0xff]
      %v73 = vld [vmem:[%s15 + $0x30] sm:$0xff]
      %v74 = vld [vmem:[%s15 + $0x38] sm:$0xff]
      %75 = vst.msk [vmem:[#allocation4] sm:$0xff] %vm60, %v67
      %76 = vst.msk [vmem:[#allocation4 + $0x8] sm:$0xff] %vm60, %v68
      %77 = vst.msk [vmem:[#allocation4 + $0x10] sm:$0xff] %vm60, %v69
      %78 = vst.msk [vmem:[#allocation4 + $0x18] sm:$0xff] %vm60, %v70
      %79 = vst.msk [vmem:[#allocation4 + $0x20] sm:$0xff] %vm60, %v71
      %80 = vst.msk [vmem:[#allocation4 + $0x28] sm:$0xff] %vm60, %v72
      %81 = vst.msk [vmem:[#allocation4 + $0x30] sm:$0xff] %vm60, %v73
      %82 = vst.msk [vmem:[#allocation4 + $0x38] sm:$0xff] %vm60, %v74
    $region65: #{scope_grammar_lm_forward.1} parent=1 // pred_fallthru
      _
    %s83 = sld [smem:[#allocation6]]
    %s84 = smul.u32 0, 10
    %s85 = ssub.s32 %s83, %s84
    %p86 = scmp.lt.s32.totalorder %s85, 10
    %s87 = scalar_select %p86, %s85, 10
    %v88 = vlaneseq
    %v89 = vand.u32 %v88, 127
    loop: start=0, step=1, limit=5
    $region66: #{scope_grammar_lm_forward.1} parent=1 // loop_pre_header
      _
    $region67: #{scope_grammar_lm_forward.1} parent=1 // loop_header
      %s91 = sphi 0, %s95
      %p92 = scmp.ge.s32.totalorder %s91, 5
    $region68: #{scope_grammar_lm_forward.1} parent=1 // loop_header_branch
      %94 = sbr.rel (%p92) target = $region72
    $region69: #{scope_grammar_lm_forward.1} parent=1 // loop_body
      %s96 = smul.u32 %s91, 2
      %p97 = scmp.lt.s32.totalorder %s96, %s87
      // Predicated region
      $region73: #{scope_grammar_lm_forward.1} parent=69 // pred_check
        %p98 = pneg %p97
      $region74: #{scope_grammar_lm_forward.1} parent=69 // pred_check_branch
        %100 = sbr.rel (%p98) target = $region76
      $region75: #{scope_grammar_lm_forward.1} parent=69 // pred_region
        %s101 = smul.u32 %s96, 8
        %s102 = scalar_lea.vmem %s1, %s101
        %v103 = vld [vmem:[%s102] sm:$0xff]
        %v104 = vld [vmem:[#allocation4] sm:$0xff]
        %v105 = vld [vmem:[#allocation4 + $0x8] sm:$0xff]
        %v106 = vld [vmem:[#allocation4 + $0x10] sm:$0xff]
        %v107 = vld [vmem:[#allocation4 + $0x18] sm:$0xff]
        %v108 = vld [vmem:[#allocation4 + $0x20] sm:$0xff]
        %v109 = vld [vmem:[#allocation4 + $0x28] sm:$0xff]
        %v110 = vld [vmem:[#allocation4 + $0x30] sm:$0xff]
        %v111 = vld [vmem:[#allocation4 + $0x38] sm:$0xff]
        %v112 = vlaneseq
        %v113 = vshrl.u32 %v112, 7
        %v114 = vsub.s32 0, %v113
        %v115 = vrot.slane %v103, %v114
        %s117 = sor.u32 256, 32
        %118 = vbcast.lane.b32.xlu0 %v115, %s117
        %v119 = vpop.permute.xlu0 %118
        %v120 = vlaneseq
        %v121 = vshrl.u32 %v120, 7
        %v122 = vsub.s32 1, %v121
        %v123 = vrot.slane %v103, %v122
        %s125 = sor.u32 256, 32
        %126 = vbcast.lane.b32.xlu0 %v123, %s125
        %v127 = vpop.permute.xlu0 %126
        %v128 = vlaneseq
        %v129 = vshrl.u32 %v128, 7
        %v130 = vsub.s32 2, %v129
        %v131 = vrot.slane %v103, %v130
        %s133 = sor.u32 256, 32
        %134 = vbcast.lane.b32.xlu0 %v131, %s133
        %v135 = vpop.permute.xlu0 %134
        %v136 = vlaneseq
        %v137 = vshrl.u32 %v136, 7
        %v138 = vsub.s32 3, %v137
        %v139 = vrot.slane %v103, %v138
        %s141 = sor.u32 256, 32
        %142 = vbcast.lane.b32.xlu0 %v139, %s141
        %v143 = vpop.permute.xlu0 %142
        %v144 = vlaneseq
        %v145 = vshrl.u32 %v144, 7
        %v146 = vsub.s32 4, %v145
        %v147 = vrot.slane %v103, %v146
        %s149 = sor.u32 256, 32
        %150 = vbcast.lane.b32.xlu0 %v147, %s149
        %v151 = vpop.permute.xlu0 %150
        %v152 = vlaneseq
        %v153 = vshrl.u32 %v152, 7
        %v154 = vsub.s32 5, %v153
        %v155 = vrot.slane %v103, %v154
        %s157 = sor.u32 256, 32
        %158 = vbcast.lane.b32.xlu0 %v155, %s157
        %v159 = vpop.permute.xlu0 %158
        %v160 = vlaneseq
        %v161 = vshrl.u32 %v160, 7
        %v162 = vsub.s32 6, %v161
        %v163 = vrot.slane %v103, %v162
        %s165 = sor.u32 256, 32
        %166 = vbcast.lane.b32.xlu0 %v163, %s165
        %v167 = vpop.permute.xlu0 %166
        %v168 = vlaneseq
        %v169 = vshrl.u32 %v168, 7
        %v170 = vsub.s32 7, %v169
        %v171 = vrot.slane %v103, %v170
        %s173 = sor.u32 256, 32
        %174 = vbcast.lane.b32.xlu0 %v171, %s173
        %v175 = vpop.permute.xlu0 %174
        %v176 = vmul.f32 %v119, %v104
        %v177 = vmul.f32 %v127, %v105
        %v178 = vmul.f32 %v135, %v106
        %v179 = vmul.f32 %v143, %v107
        %v180 = vmul.f32 %v151, %v108
        %v181 = vmul.f32 %v159, %v109
        %v182 = vmul.f32 %v167, %v110
        %v183 = vmul.f32 %v175, %v111
        %vm184 = vcmask 261120
        %v185 = vsel %vm184, %v176, 0.0
        %v186 = vrot.slane %v185, 4
        %v187 = vadd.f32 %v185, %v186
        %v188 = vrot.slane %v187, 2
        %v189 = vadd.f32 %v187, %v188
        %v190 = vrot.slane %v189, 1
        %v191 = vadd.f32 %v189, %v190
        %v192 = vsel %vm184, %v177, 0.0
        %v193 = vrot.slane %v192, 4
        %v194 = vadd.f32 %v192, %v193
        %v195 = vrot.slane %v194, 2
        %v196 = vadd.f32 %v194, %v195
        %v197 = vrot.slane %v196, 1
        %v198 = vadd.f32 %v196, %v197
        %v199 = vsel %vm184, %v178, 0.0
        %v200 = vrot.slane %v199, 4
        %v201 = vadd.f32 %v199, %v200
        %v202 = vrot.slane %v201, 2
        %v203 = vadd.f32 %v201, %v202
        %v204 = vrot.slane %v203, 1
        %v205 = vadd.f32 %v203, %v204
        %v206 = vsel %vm184, %v179, 0.0
        %v207 = vrot.slane %v206, 4
        %v208 = vadd.f32 %v206, %v207
        %v209 = vrot.slane %v208, 2
        %v210 = vadd.f32 %v208, %v209
        %v211 = vrot.slane %v210, 1
        %v212 = vadd.f32 %v210, %v211
        %v213 = vsel %vm184, %v180, 0.0
        %v214 = vrot.slane %v213, 4
        %v215 = vadd.f32 %v213, %v214
        %v216 = vrot.slane %v215, 2
        %v217 = vadd.f32 %v215, %v216
        %v218 = vrot.slane %v217, 1
        %v219 = vadd.f32 %v217, %v218
        %v220 = vsel %vm184, %v181, 0.0
        %v221 = vrot.slane %v220, 4
        %v222 = vadd.f32 %v220, %v221
        %v223 = vrot.slane %v222, 2
        %v224 = vadd.f32 %v222, %v223
        %v225 = vrot.slane %v224, 1
        %v226 = vadd.f32 %v224, %v225
        %v227 = vsel %vm184, %v182, 0.0
        %v228 = vrot.slane %v227, 4
        %v229 = vadd.f32 %v227, %v228
        %v230 = vrot.slane %v229, 2
        %v231 = vadd.f32 %v229, %v230
        %v232 = vrot.slane %v231, 1
        %v233 = vadd.f32 %v231, %v232
        %v234 = vsel %vm184, %v183, 0.0
        %v235 = vrot.slane %v234, 4
        %v236 = vadd.f32 %v234, %v235
        %v237 = vrot.slane %v236, 2
        %v238 = vadd.f32 %v236, %v237
        %v239 = vrot.slane %v238, 1
        %v240 = vadd.f32 %v238, %v239
        %vm249 = vcmask 1041409
        %v250 = vsel %vm249, %v198, %v191
        %vm251 = vcmask 1042434
        %v252 = vsel %vm251, %v205, %v250
        %vm253 = vcmask 1043459
        %v254 = vsel %vm253, %v212, %v252
        %vm255 = vcmask 1044484
        %v256 = vsel %vm255, %v219, %v254
        %vm257 = vcmask 1045509
        %v258 = vsel %vm257, %v226, %v256
        %vm259 = vcmask 1046534
        %v260 = vsel %vm259, %v233, %v258
        %vm261 = vcmask 1047559
        %v262 = vsel %vm261, %v240, %v260
        %265 = vrot.lane.b32.xlu0 %v103, 32
        %v266 = vpop.permute.xlu0 %265
        %v268 = vsel %vm184, %v262, %v266
        %v269 = vld [vmem:[%s2] sm:$0xf]
        %v270 = vld [vmem:[%s2 + $0x4] sm:$0xf]
        %v271 = vld [vmem:[%s2 + $0x8] sm:$0xf]
        %v272 = vld [vmem:[%s2 + $0xc] sm:$0xf]
        %v273 = vld [vmem:[%s2 + $0x10] sm:$0xf]
        %v274 = vld [vmem:[%s2 + $0x14] sm:$0xf]
        %v275 = vld [vmem:[%s2 + $0x18] sm:$0xf]
        %v276 = vld [vmem:[%s2 + $0x1c] sm:$0xf]
        %v277 = vpack.c.bf16 %v268, %v268
        %v278 = vld [vmem:[%s3] sm:$0x1]
        %v280 = vlaneseq
        %v281 = vshrl.u32 %v280, 7
        %v282 = vsub.s32 0, %v281
        %v283 = vrot.slane %v278, %v282
        %v293 = vunpack.c.l.b16 %v269
        %v294 = vunpack.c.l.b16 %v270
        %v295 = vunpack.c.l.b16 %v271
        %v296 = vunpack.c.l.b16 %v272
        %v297 = vunpack.c.l.b16 %v273
        %v298 = vunpack.c.l.b16 %v274
        %v299 = vunpack.c.l.b16 %v275
        %v300 = vunpack.c.l.b16 %v276
        %v301 = vpack.c.b16 %v294, %v293
        %v302 = vpack.c.b16 %v296, %v295
        %v303 = vpack.c.b16 %v298, %v297
        %v304 = vpack.c.b16 %v300, %v299
        %vm309 = vcmask 523264
        %v311 = vsel %vm309, %v277, 0
        %313 = vmatprep.subr.bf16.mxu0 0
        %314 = vmatpush1.bf16.msra.mxu0 %v301
        %315 = vmatprep.subr.bf16.mxu0 0
        %316 = vmatpush1.bf16.msra.mxu0 %v302
        %317 = vmatprep.subr.bf16.mxu0 0
        %318 = vmatpush1.bf16.msra.mxu0 %v303
        %319 = vmatprep.subr.bf16.mxu0 0
        %320 = vmatpush1.bf16.msra.mxu0 %v304
        %321 = vmatprep.subr.bf16.mxu0 0
        %322 = vmatpush1.bf16.msra.mxu0 0
        %323 = vmatprep.subr.bf16.mxu0 0
        %324 = vmatpush1.bf16.msra.mxu0 0
        %325 = vmatprep.subr.bf16.mxu0 0
        %326 = vmatpush1.bf16.msra.mxu0 0
        %327 = vmatprep.subr.bf16.mxu0 0
        %328 = vmatpush1.bf16.msra.mxu0 0
        %329 = vmatprep.subr.bf16.mxu0 0
        %330 = vmatpush1.bf16.msra.mxu0 0
        %331 = vmatprep.subr.bf16.mxu0 0
        %332 = vmatpush1.bf16.msra.mxu0 0
        %333 = vmatprep.subr.bf16.mxu0 0
        %334 = vmatpush1.bf16.msra.mxu0 0
        %335 = vmatprep.subr.bf16.mxu0 0
        %336 = vmatpush1.bf16.msra.mxu0 0
        %337 = vmatprep.subr.bf16.mxu0 0
        %338 = vmatpush1.bf16.msra.mxu0 0
        %339 = vmatprep.subr.bf16.mxu0 0
        %340 = vmatpush1.bf16.msra.mxu0 0
        %341 = vmatprep.subr.bf16.mxu0 0
        %342 = vmatpush1.bf16.msra.mxu0 0
        %343 = vmatprep.subr.bf16.mxu0 0
        %344 = vmatpush1.bf16.msra.mxu0 0
        %345 = vmatprep.mubr.bf16.mxu0 0
        %346 = vmatmul.mubr.bf16.gmra.mrb[0].mxu0 %v311
        %v347 = vpop.f32.mrb[0].mxu0
        %v348 = vadd.f32 %v283, %v347
        %v349 = vpop.f32.mrb[0].mxu0
        %v350 = vpop.f32.mrb[0].mxu0
        %v351 = vpop.f32.mrb[0].mxu0
        %352 = vdwg.mxu0
        %v353 = vmax.f32 %v348, 0.0
        %v354 = vld [vmem:[%s4] sm:$0xf]
        %v355 = vld [vmem:[%s4 + $0x4] sm:$0xf]
        %v356 = vld [vmem:[%s4 + $0x8] sm:$0xf]
        %v357 = vld [vmem:[%s4 + $0xc] sm:$0xf]
        %v358 = vpack.c.bf16 %v353, %v353
        %v359 = vld [vmem:[%s5] sm:$0x1]
        %v361 = vlaneseq
        %v362 = vshrl.u32 %v361, 7
        %v363 = vsub.s32 0, %v362
        %v364 = vrot.slane %v359, %v363
        %v370 = vunpack.c.l.b16 %v354
        %v371 = vunpack.c.l.b16 %v355
        %v372 = vunpack.c.l.b16 %v356
        %v373 = vunpack.c.l.b16 %v357
        %v374 = vpack.c.b16 %v371, %v370
        %v375 = vpack.c.b16 %v373, %v372
        %v379 = vsel %vm184, %v358, 0
        %381 = vmatprep.subr.bf16.mxu0 0
        %382 = vmatpush1.bf16.msra.mxu0 %v374
        %383 = vmatprep.subr.bf16.mxu0 0
        %384 = vmatpush1.bf16.msra.mxu0 %v375
        %385 = vmatprep.subr.bf16.mxu0 0
        %386 = vmatpush1.bf16.msra.mxu0 0
        %387 = vmatprep.subr.bf16.mxu0 0
        %388 = vmatpush1.bf16.msra.mxu0 0
        %389 = vmatprep.subr.bf16.mxu0 0
        %390 = vmatpush1.bf16.msra.mxu0 0
        %391 = vmatprep.subr.bf16.mxu0 0
        %392 = vmatpush1.bf16.msra.mxu0 0
        %393 = vmatprep.subr.bf16.mxu0 0
        %394 = vmatpush1.bf16.msra.mxu0 0
        %395 = vmatprep.subr.bf16.mxu0 0
        %396 = vmatpush1.bf16.msra.mxu0 0
        %397 = vmatprep.subr.bf16.mxu0 0
        %398 = vmatpush1.bf16.msra.mxu0 0
        %399 = vmatprep.subr.bf16.mxu0 0
        %400 = vmatpush1.bf16.msra.mxu0 0
        %401 = vmatprep.subr.bf16.mxu0 0
        %402 = vmatpush1.bf16.msra.mxu0 0
        %403 = vmatprep.subr.bf16.mxu0 0
        %404 = vmatpush1.bf16.msra.mxu0 0
        %405 = vmatprep.subr.bf16.mxu0 0
        %406 = vmatpush1.bf16.msra.mxu0 0
        %407 = vmatprep.subr.bf16.mxu0 0
        %408 = vmatpush1.bf16.msra.mxu0 0
        %409 = vmatprep.subr.bf16.mxu0 0
        %410 = vmatpush1.bf16.msra.mxu0 0
        %411 = vmatprep.subr.bf16.mxu0 0
        %412 = vmatpush1.bf16.msra.mxu0 0
        %413 = vmatprep.mubr.bf16.mxu0 0
        %414 = vmatmul.mubr.bf16.gmra.mrb[0].mxu0 %v379
        %v415 = vpop.f32.mrb[0].mxu0
        %v416 = vadd.f32 %v364, %v415
        %v417 = vpop.f32.mrb[0].mxu0
        %v418 = vpop.f32.mrb[0].mxu0
        %v419 = vpop.f32.mrb[0].mxu0
        %420 = vdwg.mxu0
        %vm421 = vcmp.gt.f32.partialorder %v103, 0.5
        %v422 = vsel %vm421, 1, 0
        %423 = vset.pattern.permute.xlu0 48
        %424 = vperm.xlu0 %423, %v422
        %v425 = vpop.permute.xlu0 %424
        %vm426 = vcmp.eq.s32.totalorder %v425, 1
        %v427 = vsel %vm426, %v416, %v103
        %v428 = vld [vmem:[%s10] sm:$0xf]
        %v429 = vld [vmem:[%s10 + $0x4] sm:$0xf]
        %v430 = vld [vmem:[%s10 + $0x8] sm:$0xf]
        %v431 = vld [vmem:[%s10 + $0xc] sm:$0xf]
        %v432 = vpack.c.bf16 %v105, %v104
        %v433 = vpack.c.bf16 %v107, %v106
        %v434 = vpack.c.bf16 %v109, %v108
        %v435 = vpack.c.bf16 %v111, %v110
        %v440 = vunpack.c.l.b16 %v428
        %v441 = vunpack.c.l.b16 %v429
        %v442 = vunpack.c.l.b16 %v430
        %v443 = vunpack.c.l.b16 %v431
        %v444 = vpack.c.b16 %v441, %v440
        %v445 = vpack.c.b16 %v443, %v442
        %v449 = vsel %vm184, %v432, 0
        %v452 = vsel %vm184, %v433, 0
        %v455 = vsel %vm184, %v434, 0
        %v458 = vsel %vm184, %v435, 0
        %460 = vmatprep.subr.bf16.mxu0 0
        %461 = vmatpush1.bf16.msra.mxu0 %v444
        %462 = vmatprep.subr.bf16.mxu0 0
        %463 = vmatpush1.bf16.msra.mxu0 %v445
        %464 = vmatprep.subr.bf16.mxu0 0
        %465 = vmatpush1.bf16.msra.mxu0 0
        %466 = vmatprep.subr.bf16.mxu0 0
        %467 = vmatpush1.bf16.msra.mxu0 0
        %468 = vmatprep.subr.bf16.mxu0 0
        %469 = vmatpush1.bf16.msra.mxu0 0
        %470 = vmatprep.subr.bf16.mxu0 0
        %471 = vmatpush1.bf16.msra.mxu0 0
        %472 = vmatprep.subr.bf16.mxu0 0
        %473 = vmatpush1.bf16.msra.mxu0 0
        %474 = vmatprep.subr.bf16.mxu0 0
        %475 = vmatpush1.bf16.msra.mxu0 0
        %476 = vmatprep.subr.bf16.mxu0 0
        %477 = vmatpush1.bf16.msra.mxu0 0
        %478 = vmatprep.subr.bf16.mxu0 0
        %479 = vmatpush1.bf16.msra.mxu0 0
        %480 = vmatprep.subr.bf16.mxu0 0
        %481 = vmatpush1.bf16.msra.mxu0 0
        %482 = vmatprep.subr.bf16.mxu0 0
        %483 = vmatpush1.bf16.msra.mxu0 0
        %484 = vmatprep.subr.bf16.mxu0 0
        %485 = vmatpush1.bf16.msra.mxu0 0
        %486 = vmatprep.subr.bf16.mxu0 0
        %487 = vmatpush1.bf16.msra.mxu0 0
        %488 = vmatprep.subr.bf16.mxu0 0
        %489 = vmatpush1.bf16.msra.mxu0 0
        %490 = vmatprep.subr.bf16.mxu0 0
        %491 = vmatpush1.bf16.msra.mxu0 0
        %492 = vmatprep.mubr.bf16.mxu0 0
        %493 = vmatmul.mubr.bf16.gmra.mrb[0].mxu0 %v449
        %v494 = vpop.f32.mrb[0].mxu0
        %v495 = vadd.f32 0.0, %v494
        %v496 = vpop.f32.mrb[0].mxu0
        %v497 = vpop.f32.mrb[0].mxu0
        %v498 = vadd.f32 0.0, %v497
        %v499 = vpop.f32.mrb[0].mxu0
        %500 = vmatprep.mubr.bf16.mxu0 0
        %501 = vmatmul.mubr.bf16.gmra.mrb[0].mxu0 %v452
        %v502 = vpop.f32.mrb[0].mxu0
        %v503 = vadd.f32 0.0, %v502
        %v504 = vpop.f32.mrb[0].mxu0
        %v505 = vpop.f32.mrb[0].mxu0
        %v506 = vadd.f32 0.0, %v505
        %v507 = vpop.f32.mrb[0].mxu0
        %508 = vmatprep.mubr.bf16.mxu0 0
        %509 = vmatmul.mubr.bf16.gmra.mrb[0].mxu0 %v455
        %v510 = vpop.f32.mrb[0].mxu0
        %v511 = vadd.f32 0.0, %v510
        %v512 = vpop.f32.mrb[0].mxu0
        %v513 = vpop.f32.mrb[0].mxu0
        %v514 = vadd.f32 0.0, %v513
        %v515 = vpop.f32.mrb[0].mxu0
        %516 = vmatprep.mubr.bf16.mxu0 0
        %517 = vmatmul.mubr.bf16.gmra.mrb[0].mxu0 %v458
        %v518 = vpop.f32.mrb[0].mxu0
        %v519 = vadd.f32 0.0, %v518
        %v520 = vpop.f32.mrb[0].mxu0
        %v521 = vpop.f32.mrb[0].mxu0
        %v522 = vadd.f32 0.0, %v521
        %v523 = vpop.f32.mrb[0].mxu0
        %524 = vdwg.mxu0
        %v525 = vld [vmem:[#allocation2] sm:$0xff]
        %v526 = vld [vmem:[#allocation3] sm:$0xff]
        %528 = vrot.lane.b32.xlu0 %v525, 32
        %v529 = vpop.permute.xlu0 %528
        %v531 = vsel %vm184, %v427, %v529
        %v532 = vld [vmem:[%s6] sm:$0xf]
        %v533 = vld [vmem:[%s6 + $0x4] sm:$0xf]
        %v534 = vld [vmem:[%s6 + $0x8] sm:$0xf]
        %v535 = vld [vmem:[%s6 + $0xc] sm:$0xf]
        %v536 = vld [vmem:[%s6 + $0x10] sm:$0xf]
        %v537 = vld [vmem:[%s6 + $0x14] sm:$0xf]
        %v538 = vld [vmem:[%s6 + $0x18] sm:$0xf]
        %v539 = vld [vmem:[%s6 + $0x1c] sm:$0xf]
        %v540 = vpack.c.bf16 %v531, %v531
        %v541 = vld [vmem:[%s7] sm:$0x1]
        %v543 = vlaneseq
        %v544 = vshrl.u32 %v543, 7
        %v545 = vsub.s32 0, %v544
        %v546 = vrot.slane %v541, %v545
        %v556 = vunpack.c.l.b16 %v532
        %v557 = vunpack.c.l.b16 %v533
        %v558 = vunpack.c.l.b16 %v534
        %v559 = vunpack.c.l.b16 %v535
        %v560 = vunpack.c.l.b16 %v536
        %v561 = vunpack.c.l.b16 %v537
        %v562 = vunpack.c.l.b16 %v538
        %v563 = vunpack.c.l.b16 %v539
        %v564 = vpack.c.b16 %v557, %v556
        %v565 = vpack.c.b16 %v559, %v558
        %v566 = vpack.c.b16 %v561, %v560
        %v567 = vpack.c.b16 %v563, %v562
        %v573 = vsel %vm309, %v540, 0
        %575 = vmatprep.subr.bf16.mxu0 0
        %576 = vmatpush1.bf16.msra.mxu0 %v564
        %577 = vmatprep.subr.bf16.mxu0 0
        %578 = vmatpush1.bf16.msra.mxu0 %v565
        %579 = vmatprep.subr.bf16.mxu0 0
        %580 = vmatpush1.bf16.msra.mxu0 %v566
        %581 = vmatprep.subr.bf16.mxu0 0
        %582 = vmatpush1.bf16.msra.mxu0 %v567
        %583 = vmatprep.subr.bf16.mxu0 0
        %584 = vmatpush1.bf16.msra.mxu0 0
        %585 = vmatprep.subr.bf16.mxu0 0
        %586 = vmatpush1.bf16.msra.mxu0 0
        %587 = vmatprep.subr.bf16.mxu0 0
        %588 = vmatpush1.bf16.msra.mxu0 0
        %589 = vmatprep.subr.bf16.mxu0 0
        %590 = vmatpush1.bf16.msra.mxu0 0
        %591 = vmatprep.subr.bf16.mxu0 0
        %592 = vmatpush1.bf16.msra.mxu0 0
        %593 = vmatprep.subr.bf16.mxu0 0
        %594 = vmatpush1.bf16.msra.mxu0 0
        %595 = vmatprep.subr.bf16.mxu0 0
        %596 = vmatpush1.bf16.msra.mxu0 0
        %597 = vmatprep.subr.bf16.mxu0 0
        %598 = vmatpush1.bf16.msra.mxu0 0
        %599 = vmatprep.subr.bf16.mxu0 0
        %600 = vmatpush1.bf16.msra.mxu0 0
        %601 = vmatprep.subr.bf16.mxu0 0
        %602 = vmatpush1.bf16.msra.mxu0 0
        %603 = vmatprep.subr.bf16.mxu0 0
        %604 = vmatpush1.bf16.msra.mxu0 0
        %605 = vmatprep.subr.bf16.mxu0 0
        %606 = vmatpush1.bf16.msra.mxu0 0
        %607 = vmatprep.mubr.bf16.mxu0 0
        %608 = vmatmul.mubr.bf16.gmra.mrb[0].mxu0 %v573
        %v609 = vpop.f32.mrb[0].mxu0
        %v610 = vadd.f32 %v546, %v609
        %v611 = vpop.f32.mrb[0].mxu0
        %v612 = vpop.f32.mrb[0].mxu0
        %v613 = vpop.f32.mrb[0].mxu0
        %614 = vdwg.mxu0
        %v615 = vxor.u32 %v610, 2147483648
        %v616 = vmul.f32 %v615, 1.442695
        %v617 = vpow.pop %v616
        %v618 = vadd.f32 %v617, 1.0
        %v619 = vrcp.pop %v618
        %v620 = vmul.f32 1.0, %v619
        %v621 = vtanh.pop %v610
        %623 = vrot.lane.b32.xlu0 %v526, 32
        %v624 = vpop.permute.xlu0 %623
        %v626 = vmul.f32 %v620, %v624
        %628 = vrot.lane.b32.xlu0 %v621, 64
        %v629 = vpop.permute.xlu0 %628
        %v631 = vmul.f32 %v620, %v629
        %633 = vrot.lane.b32.xlu0 %v631, 32
        %v634 = vpop.permute.xlu0 %633
        %v636 = vadd.f32 %v626, %v634
        %v637 = vtanh.pop %v636
        %639 = vrot.lane.b32.xlu0 %v637, 64
        %v640 = vpop.permute.xlu0 %639
        %v642 = vmul.f32 %v620, %v640
        %644 = vrot.lane.b32.xlu0 %v642, 32
        %v645 = vpop.permute.xlu0 %644
        %647 = vst.msk [vmem:[#allocation2] sm:$0xff] %vm184, %v645
        %649 = vrot.lane.b32.xlu0 %v636, 96
        %v650 = vpop.permute.xlu0 %649
        %652 = vst.msk [vmem:[#allocation3] sm:$0xff] %vm184, %v650
        %s653 = scalar_lea.vmem [#allocation2], 8
        %v654 = vld [vmem:[%s653] sm:$0xff]
        %s655 = scalar_lea.vmem [#allocation3], 8
        %v656 = vld [vmem:[%s655] sm:$0xff]
        %658 = vrot.lane.b32.xlu0 %v654, 32
        %v659 = vpop.permute.xlu0 %658
        %v661 = vsel %vm184, %v645, %v659
        %s662 = scalar_lea.vmem %s6, 32
        %v663 = vld [vmem:[%s662] sm:$0xf]
        %v664 = vld [vmem:[%s662 + $0x4] sm:$0xf]
        %v665 = vld [vmem:[%s662 + $0x8] sm:$0xf]
        %v666 = vld [vmem:[%s662 + $0xc] sm:$0xf]
        %v667 = vld [vmem:[%s662 + $0x10] sm:$0xf]
        %v668 = vld [vmem:[%s662 + $0x14] sm:$0xf]
        %v669 = vld [vmem:[%s662 + $0x18] sm:$0xf]
        %v670 = vld [vmem:[%s662 + $0x1c] sm:$0xf]
        %v671 = vpack.c.bf16 %v661, %v661
        %s672 = scalar_lea.vmem %s7, 1
        %v673 = vld [vmem:[%s672] sm:$0x1]
        %v675 = vlaneseq
        %v676 = vshrl.u32 %v675, 7
        %v677 = vsub.s32 0, %v676
        %v678 = vrot.slane %v673, %v677
        %v688 = vunpack.c.l.b16 %v663
        %v689 = vunpack.c.l.b16 %v664
        %v690 = vunpack.c.l.b16 %v665
        %v691 = vunpack.c.l.b16 %v666
        %v692 = vunpack.c.l.b16 %v667
        %v693 = vunpack.c.l.b16 %v668
        %v694 = vunpack.c.l.b16 %v669
        %v695 = vunpack.c.l.b16 %v670
        %v696 = vpack.c.b16 %v689, %v688
        %v697 = vpack.c.b16 %v691, %v690
        %v698 = vpack.c.b16 %v693, %v692
        %v699 = vpack.c.b16 %v695, %v694
        %v705 = vsel %vm309, %v671, 0
        %707 = vmatprep.subr.bf16.mxu0 0
        %708 = vmatpush1.bf16.msra.mxu0 %v696
        %709 = vmatprep.subr.bf16.mxu0 0
        %710 = vmatpush1.bf16.msra.mxu0 %v697
        %711 = vmatprep.subr.bf16.mxu0 0
        %712 = vmatpush1.bf16.msra.mxu0 %v698
        %713 = vmatprep.subr.bf16.mxu0 0
        %714 = vmatpush1.bf16.msra.mxu0 %v699
        %715 = vmatprep.subr.bf16.mxu0 0
        %716 = vmatpush1.bf16.msra.mxu0 0
        %717 = vmatprep.subr.bf16.mxu0 0
        %718 = vmatpush1.bf16.msra.mxu0 0
        %719 = vmatprep.subr.bf16.mxu0 0
        %720 = vmatpush1.bf16.msra.mxu0 0
        %721 = vmatprep.subr.bf16.mxu0 0
        %722 = vmatpush1.bf16.msra.mxu0 0
        %723 = vmatprep.subr.bf16.mxu0 0
        %724 = vmatpush1.bf16.msra.mxu0 0
        %725 = vmatprep.subr.bf16.mxu0 0
        %726 = vmatpush1.bf16.msra.mxu0 0
        %727 = vmatprep.subr.bf16.mxu0 0
        %728 = vmatpush1.bf16.msra.mxu0 0
        %729 = vmatprep.subr.bf16.mxu0 0
        %730 = vmatpush1.bf16.msra.mxu0 0
        %731 = vmatprep.subr.bf16.mxu0 0
        %732 = vmatpush1.bf16.msra.mxu0 0
        %733 = vmatprep.subr.bf16.mxu0 0
        %734 = vmatpush1.bf16.msra.mxu0 0
        %735 = vmatprep.subr.bf16.mxu0 0
        %736 = vmatpush1.bf16.msra.mxu0 0
        %737 = vmatprep.subr.bf16.mxu0 0
        %738 = vmatpush1.bf16.msra.mxu0 0
        %739 = vmatprep.mubr.bf16.mxu0 0
        %740 = vmatmul.mubr.bf16.gmra.mrb[0].mxu0 %v705
        %v741 = vpop.f32.mrb[0].mxu0
        %v742 = vadd.f32 %v678, %v741
        %v743 = vpop.f32.mrb[0].mxu0
        %v744 = vpop.f32.mrb[0].mxu0
        %v745 = vpop.f32.mrb[0].mxu0
        %746 = vdwg.mxu0
        %v747 = vxor.u32 %v742, 2147483648
        %v748 = vmul.f32 %v747, 1.442695
        %v749 = vpow.pop %v748
        %v750 = vadd.f32 %v749, 1.0
        %v751 = vrcp.pop %v750
        %v752 = vmul.f32 1.0, %v751
        %v753 = vtanh.pop %v742
        %755 = vrot.lane.b32.xlu0 %v656, 32
        %v756 = vpop.permute.xlu0 %755
        %v758 = vmul.f32 %v752, %v756
        %760 = vrot.lane.b32.xlu0 %v753, 64
        %v761 = vpop.permute.xlu0 %760
        %v763 = vmul.f32 %v752, %v761
        %765 = vrot.lane.b32.xlu0 %v763, 32
        %v766 = vpop.permute.xlu0 %765
        %v768 = vadd.f32 %v758, %v766
        %v769 = vtanh.pop %v768
        %771 = vrot.lane.b32.xlu0 %v769, 64
        %v772 = vpop.permute.xlu0 %771
        %v774 = vmul.f32 %v752, %v772
        %776 = vrot.lane.b32.xlu0 %v774, 32
        %v777 = vpop.permute.xlu0 %776
        %779 = vst.msk [vmem:[%s653] sm:$0xff] %vm184, %v777
        %781 = vrot.lane.b32.xlu0 %v768, 96
        %v782 = vpop.permute.xlu0 %781
        %784 = vst.msk [vmem:[%s655] sm:$0xff] %vm184, %v782
        %v785 = vld [vmem:[%s8] sm:$0xf]
        %v786 = vld [vmem:[%s8 + $0x4] sm:$0xf]
        %v787 = vld [vmem:[%s8 + $0x8] sm:$0xf]
        %v788 = vld [vmem:[%s8 + $0xc] sm:$0xf]
        %v789 = vpack.c.bf16 %v774, %v774
        %v790 = vld [vmem:[%s9] sm:$0x1]
        %v792 = vlaneseq
        %v793 = vshrl.u32 %v792, 7
        %v794 = vsub.s32 0, %v793
        %v795 = vrot.slane %v790, %v794
        %798 = vrot.lane.b32.xlu0 %v789, 32
        %v799 = vpop.permute.xlu0 %798
        %v804 = vunpack.c.l.b16 %v785
        %v805 = vunpack.c.l.b16 %v786
        %v806 = vunpack.c.l.b16 %v787
        %v807 = vunpack.c.l.b16 %v788
        %v808 = vpack.c.b16 %v805, %v804
        %v809 = vpack.c.b16 %v807, %v806
        %v813 = vsel %vm184, %v799, 0
        %815 = vmatprep.subr.bf16.mxu0 0
        %816 = vmatpush1.bf16.msra.mxu0 %v808
        %817 = vmatprep.subr.bf16.mxu0 0
        %818 = vmatpush1.bf16.msra.mxu0 %v809
        %819 = vmatprep.subr.bf16.mxu0 0
        %820 = vmatpush1.bf16.msra.mxu0 0
        %821 = vmatprep.subr.bf16.mxu0 0
        %822 = vmatpush1.bf16.msra.mxu0 0
        %823 = vmatprep.subr.bf16.mxu0 0
        %824 = vmatpush1.bf16.msra.mxu0 0
        %825 = vmatprep.subr.bf16.mxu0 0
        %826 = vmatpush1.bf16.msra.mxu0 0
        %827 = vmatprep.subr.bf16.mxu0 0
        %828 = vmatpush1.bf16.msra.mxu0 0
        %829 = vmatprep.subr.bf16.mxu0 0
        %830 = vmatpush1.bf16.msra.mxu0 0
        %831 = vmatprep.subr.bf16.mxu0 0
        %832 = vmatpush1.bf16.msra.mxu0 0
        %833 = vmatprep.subr.bf16.mxu0 0
        %834 = vmatpush1.bf16.msra.mxu0 0
        %835 = vmatprep.subr.bf16.mxu0 0
        %836 = vmatpush1.bf16.msra.mxu0 0
        %837 = vmatprep.subr.bf16.mxu0 0
        %838 = vmatpush1.bf16.msra.mxu0 0
        %839 = vmatprep.subr.bf16.mxu0 0
        %840 = vmatpush1.bf16.msra.mxu0 0
        %841 = vmatprep.subr.bf16.mxu0 0
        %842 = vmatpush1.bf16.msra.mxu0 0
        %843 = vmatprep.subr.bf16.mxu0 0
        %844 = vmatpush1.bf16.msra.mxu0 0
        %845 = vmatprep.subr.bf16.mxu0 0
        %846 = vmatpush1.bf16.msra.mxu0 0
        %847 = vmatprep.mubr.bf16.mxu0 0
        %848 = vmatmul.mubr.bf16.gmra.mrb[0].mxu0 %v813
        %v849 = vpop.f32.mrb[0].mxu0
        %v850 = vadd.f32 %v795, %v849
        %v851 = vpop.f32.mrb[0].mxu0
        %v852 = vpop.f32.mrb[0].mxu0
        %v853 = vpop.f32.mrb[0].mxu0
        %854 = vdwg.mxu0
        %v855 = vmax.f32 %v850, 0.0
        %v856 = vld [vmem:[%s11] sm:$0xf]
        %v857 = vld [vmem:[%s11 + $0x4] sm:$0xf]
        %v858 = vld [vmem:[%s11 + $0x8] sm:$0xf]
        %v859 = vld [vmem:[%s11 + $0xc] sm:$0xf]
        %v860 = vld [vmem:[%s11 + $0x10] sm:$0xf]
        %v861 = vld [vmem:[%s11 + $0x14] sm:$0xf]
        %v862 = vld [vmem:[%s11 + $0x18] sm:$0xf]
        %v863 = vld [vmem:[%s11 + $0x1c] sm:$0xf]
        %v864 = vpack.c.bf16 %v855, %v855
        %v865 = vld [vmem:[%s12] sm:$0x1]
        %v867 = vlaneseq
        %v868 = vshrl.u32 %v867, 7
        %v869 = vsub.s32 0, %v868
        %v870 = vrot.slane %v865, %v869
        %v880 = vunpack.c.l.b16 %v856
        %v881 = vunpack.c.l.b16 %v857
        %v882 = vunpack.c.l.b16 %v858
        %v883 = vunpack.c.l.b16 %v859
        %v884 = vunpack.c.l.b16 %v860
        %v885 = vunpack.c.l.b16 %v861
        %v886 = vunpack.c.l.b16 %v862
        %v887 = vunpack.c.l.b16 %v863
        %v888 = vpack.c.b16 %v881, %v880
        %v889 = vpack.c.b16 %v883, %v882
        %v890 = vpack.c.b16 %v885, %v884
        %v891 = vpack.c.b16 %v887, %v886
        %v897 = vsel %vm309, %v864, 0
        %899 = vmatprep.subr.bf16.mxu0 0
        %900 = vmatpush1.bf16.msra.mxu0 %v888
        %901 = vmatprep.subr.bf16.mxu0 0
        %902 = vmatpush1.bf16.msra.mxu0 %v889
        %903 = vmatprep.subr.bf16.mxu0 0
        %904 = vmatpush1.bf16.msra.mxu0 %v890
        %905 = vmatprep.subr.bf16.mxu0 0
        %906 = vmatpush1.bf16.msra.mxu0 %v891
        %907 = vmatprep.subr.bf16.mxu0 0
        %908 = vmatpush1.bf16.msra.mxu0 0
        %909 = vmatprep.subr.bf16.mxu0 0
        %910 = vmatpush1.bf16.msra.mxu0 0
        %911 = vmatprep.subr.bf16.mxu0 0
        %912 = vmatpush1.bf16.msra.mxu0 0
        %913 = vmatprep.subr.bf16.mxu0 0
        %914 = vmatpush1.bf16.msra.mxu0 0
        %915 = vmatprep.subr.bf16.mxu0 0
        %916 = vmatpush1.bf16.msra.mxu0 0
        %917 = vmatprep.subr.bf16.mxu0 0
        %918 = vmatpush1.bf16.msra.mxu0 0
        %919 = vmatprep.subr.bf16.mxu0 0
        %920 = vmatpush1.bf16.msra.mxu0 0
        %921 = vmatprep.subr.bf16.mxu0 0
        %922 = vmatpush1.bf16.msra.mxu0 0
        %923 = vmatprep.subr.bf16.mxu0 0
        %924 = vmatpush1.bf16.msra.mxu0 0
        %925 = vmatprep.subr.bf16.mxu0 0
        %926 = vmatpush1.bf16.msra.mxu0 0
        %927 = vmatprep.subr.bf16.mxu0 0
        %928 = vmatpush1.bf16.msra.mxu0 0
        %929 = vmatprep.subr.bf16.mxu0 0
        %930 = vmatpush1.bf16.msra.mxu0 0
        %931 = vmatprep.mubr.bf16.mxu0 0
        %932 = vmatmul.mubr.bf16.gmra.mrb[0].mxu0 %v897
        %v933 = vpop.f32.mrb[0].mxu0
        %v934 = vadd.f32 %v870, %v933
        %v935 = vpop.f32.mrb[0].mxu0
        %v936 = vpop.f32.mrb[0].mxu0
        %v937 = vpop.f32.mrb[0].mxu0
        %938 = vdwg.mxu0
        %939 = vrot.lane.b32.xlu0 %v103, 77
        %v940 = vpop.permute.xlu0 %939
        %vm942 = vcmask 130048
        %v943 = vsel %vm942, %v940, 0.0
        %vm944 = vcmp.lt.s32.totalorder %v89, 16
        %945 = vset.pattern.permute.xlu0 50
        %946 = vperm.xlu0 %945, %v103
        %v947 = vpop.permute.xlu0 %946
        %v949 = vsel %vm944, %v943, %v947
        %vm950 = vcmp.gt.f32.partialorder %v949, 0.5
        %v951 = vsel %vm950, -inf, %v934
        %952 = vset.pattern.permute.xlu0 49
        %953 = vperm.xlu0 %952, %v422
        %v954 = vpop.permute.xlu0 %953
        %vm955 = vcmp.eq.s32.totalorder %v954, 1
        %v956 = vsel %vm955, %v951, -1.0
        %s957 = scalar_lea.vmem [#allocation7], %s101
        %958 = vst [vmem:[%s957] sm:$0xff] %v956
        %v960 = vcombine.high %v850, %v850
        %v962 = vunpack.c.l.s4 1966171168
        %v963 = vunpack.c.0.s8 %v962
        %v964 = vlaneseq
        %v965 = vshrl.u32 %v964, 7
        %v966 = vsub.s32 %v963, %v965
        %v967 = vrot.slane %v850, %v966
        %v969 = vunpack.c.l.s4 1966171168
        %v970 = vunpack.c.0.s8 %v969
        %v971 = vlaneseq
        %v972 = vshrl.u32 %v971, 7
        %v973 = vsub.s32 %v970, %v972
        %v974 = vrot.slane %v960, %v973
        %v975 = vcombine.high %v967, %v967
        %v976 = vcombine.high %v974, %v974
        %v978 = vunpack.c.l.s4 1966171168
        %v979 = vunpack.c.0.s8 %v978
        %v980 = vlaneseq
        %v981 = vshrl.u32 %v980, 7
        %v982 = vsub.s32 %v979, %v981
        %v983 = vrot.slane %v967, %v982
        %v985 = vunpack.c.l.s4 1966171168
        %v986 = vunpack.c.0.s8 %v985
        %v987 = vlaneseq
        %v988 = vshrl.u32 %v987, 7
        %v989 = vsub.s32 %v986, %v988
        %v990 = vrot.slane %v974, %v989
        %v992 = vunpack.c.l.s4 1966171168
        %v993 = vunpack.c.0.s8 %v992
        %v994 = vlaneseq
        %v995 = vshrl.u32 %v994, 7
        %v996 = vsub.s32 %v993, %v995
        %v997 = vrot.slane %v975, %v996
        %v999 = vunpack.c.l.s4 1966171168
        %v1000 = vunpack.c.0.s8 %v999
        %v1001 = vlaneseq
        %v1002 = vshrl.u32 %v1001, 7
        %v1003 = vsub.s32 %v1000, %v1002
        %v1004 = vrot.slane %v976, %v1003
        %v1005 = vcombine.high %v983, %v983
        %v1006 = vcombine.high %v990, %v990
        %v1007 = vcombine.high %v997, %v997
        %v1008 = vcombine.high %v1004, %v1004
        %v1009 = vlaneseq
        %v1010 = vshrl.u32 %v1009, 7
        %v1011 = vsub.s32 0, %v1010
        %v1012 = vrot.slane %v983, %v1011
        %v1013 = vlaneseq
        %v1014 = vshrl.u32 %v1013, 7
        %v1015 = vsub.s32 0, %v1014
        %v1016 = vrot.slane %v997, %v1015
        %v1017 = vlaneseq
        %v1018 = vshrl.u32 %v1017, 7
        %v1019 = vsub.s32 0, %v1018
        %v1020 = vrot.slane %v1005, %v1019
        %v1021 = vlaneseq
        %v1022 = vshrl.u32 %v1021, 7
        %v1023 = vsub.s32 0, %v1022
        %v1024 = vrot.slane %v1007, %v1023
        %v1025 = vlaneseq
        %v1026 = vshrl.u32 %v1025, 7
        %v1027 = vsub.s32 0, %v1026
        %v1028 = vrot.slane %v990, %v1027
        %v1029 = vlaneseq
        %v1030 = vshrl.u32 %v1029, 7
        %v1031 = vsub.s32 0, %v1030
        %v1032 = vrot.slane %v1004, %v1031
        %v1033 = vlaneseq
        %v1034 = vshrl.u32 %v1033, 7
        %v1035 = vsub.s32 0, %v1034
        %v1036 = vrot.slane %v1006, %v1035
        %v1037 = vlaneseq
        %v1038 = vshrl.u32 %v1037, 7
        %v1039 = vsub.s32 0, %v1038
        %v1040 = vrot.slane %v1008, %v1039
        %1041 = vrot.lane.b32.xlu0 %v1012, 64
        %v1042 = vpop.permute.xlu0 %1041
        %1043 = vrot.lane.b32.xlu0 %v1016, 64
        %v1044 = vpop.permute.xlu0 %1043
        %1045 = vrot.lane.b32.xlu0 %v1020, 64
        %v1046 = vpop.permute.xlu0 %1045
        %1047 = vrot.lane.b32.xlu0 %v1024, 64
        %v1048 = vpop.permute.xlu0 %1047
        %1049 = vrot.lane.b32.xlu0 %v1028, 64
        %v1050 = vpop.permute.xlu0 %1049
        %1051 = vrot.lane.b32.xlu0 %v1032, 64
        %v1052 = vpop.permute.xlu0 %1051
        %1053 = vrot.lane.b32.xlu0 %v1036, 64
        %v1054 = vpop.permute.xlu0 %1053
        %1055 = vrot.lane.b32.xlu0 %v1040, 64
        %v1056 = vpop.permute.xlu0 %1055
        %v1065 = vadd.f32 %v495, %v1042
        %v1066 = vadd.f32 %v498, %v1044
        %v1067 = vadd.f32 %v503, %v1046
        %v1068 = vadd.f32 %v506, %v1048
        %v1069 = vadd.f32 %v511, %v1050
        %v1070 = vadd.f32 %v514, %v1052
        %v1071 = vadd.f32 %v519, %v1054
        %v1072 = vadd.f32 %v522, %v1056
        %v1073 = vtanh.pop %v1065
        %v1074 = vtanh.pop %v1066
        %v1075 = vtanh.pop %v1067
        %v1076 = vtanh.pop %v1068
        %v1077 = vtanh.pop %v1069
        %v1078 = vtanh.pop %v1070
        %v1079 = vtanh.pop %v1071
        %v1080 = vtanh.pop %v1072
        %v1081 = vxor.u32 %v1065, 2147483648
        %v1082 = vxor.u32 %v1066, 2147483648
        %v1083 = vxor.u32 %v1067, 2147483648
        %v1084 = vxor.u32 %v1068, 2147483648
        %v1085 = vxor.u32 %v1069, 2147483648
        %v1086 = vxor.u32 %v1070, 2147483648
        %v1087 = vxor.u32 %v1071, 2147483648
        %v1088 = vxor.u32 %v1072, 2147483648
        %v1089 = vmul.f32 %v1081, 1.442695
        %v1090 = vpow.pop %v1089
        %v1091 = vmul.f32 %v1082, 1.442695
        %v1092 = vpow.pop %v1091
        %v1093 = vmul.f32 %v1083, 1.442695
        %v1094 = vpow.pop %v1093
        %v1095 = vmul.f32 %v1084, 1.442695
        %v1096 = vpow.pop %v1095
        %v1097 = vmul.f32 %v1085, 1.442695
        %v1098 = vpow.pop %v1097
        %v1099 = vmul.f32 %v1086, 1.442695
        %v1100 = vpow.pop %v1099
        %v1101 = vmul.f32 %v1087, 1.442695
        %v1102 = vpow.pop %v1101
        %v1103 = vmul.f32 %v1088, 1.442695
        %v1104 = vpow.pop %v1103
        %v1105 = vadd.f32 %v1090, 1.0
        %v1106 = vadd.f32 %v1092, 1.0
        %v1107 = vadd.f32 %v1094, 1.0
        %v1108 = vadd.f32 %v1096, 1.0
        %v1109 = vadd.f32 %v1098, 1.0
        %v1110 = vadd.f32 %v1100, 1.0
        %v1111 = vadd.f32 %v1102, 1.0
        %v1112 = vadd.f32 %v1104, 1.0
        %v1113 = vrcp.pop %v1105
        %v1114 = vmul.f32 1.0, %v1113
        %v1115 = vrcp.pop %v1106
        %v1116 = vmul.f32 1.0, %v1115
        %v1117 = vrcp.pop %v1107
        %v1118 = vmul.f32 1.0, %v1117
        %v1119 = vrcp.pop %v1108
        %v1120 = vmul.f32 1.0, %v1119
        %v1121 = vrcp.pop %v1109
        %v1122 = vmul.f32 1.0, %v1121
        %v1123 = vrcp.pop %v1110
        %v1124 = vmul.f32 1.0, %v1123
        %v1125 = vrcp.pop %v1111
        %v1126 = vmul.f32 1.0, %v1125
        %v1127 = vrcp.pop %v1112
        %v1128 = vmul.f32 1.0, %v1127
        %v1129 = vsub.f32 1.0, %v1114
        %v1130 = vsub.f32 1.0, %v1116
        %v1131 = vsub.f32 1.0, %v1118
        %v1132 = vsub.f32 1.0, %v1120
        %v1133 = vsub.f32 1.0, %v1122
        %v1134 = vsub.f32 1.0, %v1124
        %v1135 = vsub.f32 1.0, %v1126
        %v1136 = vsub.f32 1.0, %v1128
        %1145 = vrot.lane.b32.xlu0 %v1129, 96
        %v1146 = vpop.permute.xlu0 %1145
        %1147 = vrot.lane.b32.xlu0 %v1130, 96
        %v1148 = vpop.permute.xlu0 %1147
        %1149 = vrot.lane.b32.xlu0 %v1131, 96
        %v1150 = vpop.permute.xlu0 %1149
        %1151 = vrot.lane.b32.xlu0 %v1132, 96
        %v1152 = vpop.permute.xlu0 %1151
        %1153 = vrot.lane.b32.xlu0 %v1133, 96
        %v1154 = vpop.permute.xlu0 %1153
        %1155 = vrot.lane.b32.xlu0 %v1134, 96
        %v1156 = vpop.permute.xlu0 %1155
        %1157 = vrot.lane.b32.xlu0 %v1135, 96
        %v1158 = vpop.permute.xlu0 %1157
        %1159 = vrot.lane.b32.xlu0 %v1136, 96
        %v1160 = vpop.permute.xlu0 %1159
        %v1169 = vmul.f32 %v104, %v1146
        %v1170 = vmul.f32 %v105, %v1148
        %v1171 = vmul.f32 %v106, %v1150
        %v1172 = vmul.f32 %v107, %v1152
        %v1173 = vmul.f32 %v108, %v1154
        %v1174 = vmul.f32 %v109, %v1156
        %v1175 = vmul.f32 %v110, %v1158
        %v1176 = vmul.f32 %v111, %v1160
        %1185 = vrot.lane.b32.xlu0 %v1073, 32
        %v1186 = vpop.permute.xlu0 %1185
        %1187 = vrot.lane.b32.xlu0 %v1074, 32
        %v1188 = vpop.permute.xlu0 %1187
        %1189 = vrot.lane.b32.xlu0 %v1075, 32
        %v1190 = vpop.permute.xlu0 %1189
        %1191 = vrot.lane.b32.xlu0 %v1076, 32
        %v1192 = vpop.permute.xlu0 %1191
        %1193 = vrot.lane.b32.xlu0 %v1077, 32
        %v1194 = vpop.permute.xlu0 %1193
        %1195 = vrot.lane.b32.xlu0 %v1078, 32
        %v1196 = vpop.permute.xlu0 %1195
        %1197 = vrot.lane.b32.xlu0 %v1079, 32
        %v1198 = vpop.permute.xlu0 %1197
        %1199 = vrot.lane.b32.xlu0 %v1080, 32
        %v1200 = vpop.permute.xlu0 %1199
        %v1209 = vmul.f32 %v1114, %v1186
        %v1210 = vmul.f32 %v1116, %v1188
        %v1211 = vmul.f32 %v1118, %v1190
        %v1212 = vmul.f32 %v1120, %v1192
        %v1213 = vmul.f32 %v1122, %v1194
        %v1214 = vmul.f32 %v1124, %v1196
        %v1215 = vmul.f32 %v1126, %v1198
        %v1216 = vmul.f32 %v1128, %v1200
        %1225 = vrot.lane.b32.xlu0 %v1209, 96
        %v1226 = vpop.permute.xlu0 %1225
        %1227 = vrot.lane.b32.xlu0 %v1210, 96
        %v1228 = vpop.permute.xlu0 %1227
        %1229 = vrot.lane.b32.xlu0 %v1211, 96
        %v1230 = vpop.permute.xlu0 %1229
        %1231 = vrot.lane.b32.xlu0 %v1212, 96
        %v1232 = vpop.permute.xlu0 %1231
        %1233 = vrot.lane.b32.xlu0 %v1213, 96
        %v1234 = vpop.permute.xlu0 %1233
        %1235 = vrot.lane.b32.xlu0 %v1214, 96
        %v1236 = vpop.permute.xlu0 %1235
        %1237 = vrot.lane.b32.xlu0 %v1215, 96
        %v1238 = vpop.permute.xlu0 %1237
        %1239 = vrot.lane.b32.xlu0 %v1216, 96
        %v1240 = vpop.permute.xlu0 %1239
        %v1249 = vadd.f32 %v1169, %v1226
        %v1250 = vadd.f32 %v1170, %v1228
        %v1251 = vadd.f32 %v1171, %v1230
        %v1252 = vadd.f32 %v1172, %v1232
        %v1253 = vadd.f32 %v1173, %v1234
        %v1254 = vadd.f32 %v1174, %v1236
        %v1255 = vadd.f32 %v1175, %v1238
        %v1256 = vadd.f32 %v1176, %v1240
        %s1258 = sor.u32 256, 40
        %1259 = vbcast.lane.b32.xlu0 %v115, %s1258
        %v1260 = vpop.permute.xlu0 %1259
        %s1262 = sor.u32 256, 40
        %1263 = vbcast.lane.b32.xlu0 %v123, %s1262
        %v1264 = vpop.permute.xlu0 %1263
        %s1266 = sor.u32 256, 40
        %1267 = vbcast.lane.b32.xlu0 %v131, %s1266
        %v1268 = vpop.permute.xlu0 %1267
        %s1270 = sor.u32 256, 40
        %1271 = vbcast.lane.b32.xlu0 %v139, %s1270
        %v1272 = vpop.permute.xlu0 %1271
        %s1274 = sor.u32 256, 40
        %1275 = vbcast.lane.b32.xlu0 %v147, %s1274
        %v1276 = vpop.permute.xlu0 %1275
        %s1278 = sor.u32 256, 40
        %1279 = vbcast.lane.b32.xlu0 %v155, %s1278
        %v1280 = vpop.permute.xlu0 %1279
        %s1282 = sor.u32 256, 40
        %1283 = vbcast.lane.b32.xlu0 %v163, %s1282
        %v1284 = vpop.permute.xlu0 %1283
        %s1286 = sor.u32 256, 40
        %1287 = vbcast.lane.b32.xlu0 %v171, %s1286
        %v1288 = vpop.permute.xlu0 %1287
        %vm1289 = vcmp.gt.f32.partialorder %v1260, 0.5
        %vm1290 = vcmp.gt.f32.partialorder %v1264, 0.5
        %vm1291 = vcmp.gt.f32.partialorder %v1268, 0.5
        %vm1292 = vcmp.gt.f32.partialorder %v1272, 0.5
        %vm1293 = vcmp.gt.f32.partialorder %v1276, 0.5
        %vm1294 = vcmp.gt.f32.partialorder %v1280, 0.5
        %vm1295 = vcmp.gt.f32.partialorder %v1284, 0.5
        %vm1296 = vcmp.gt.f32.partialorder %v1288, 0.5
        %v1297 = vsel %vm1289, 1, 0
        %v1298 = vsel %vm1290, 1, 0
        %v1299 = vsel %vm1291, 1, 0
        %v1300 = vsel %vm1292, 1, 0
        %v1301 = vsel %vm1293, 1, 0
        %v1302 = vsel %vm1294, 1, 0
        %v1303 = vsel %vm1295, 1, 0
        %v1304 = vsel %vm1296, 1, 0
        %vm1305 = vcmp.eq.s32.totalorder %v1297, 1
        %vm1306 = vcmp.eq.s32.totalorder %v1298, 1
        %vm1307 = vcmp.eq.s32.totalorder %v1299, 1
        %vm1308 = vcmp.eq.s32.totalorder %v1300, 1
        %vm1309 = vcmp.eq.s32.totalorder %v1301, 1
        %vm1310 = vcmp.eq.s32.totalorder %v1302, 1
        %vm1311 = vcmp.eq.s32.totalorder %v1303, 1
        %vm1312 = vcmp.eq.s32.totalorder %v1304, 1
        %v1313 = vsel %vm1305, %v1249, 0.0
        %v1314 = vsel %vm1306, %v1250, 0.0
        %v1315 = vsel %vm1307, %v1251, 0.0
        %v1316 = vsel %vm1308, %v1252, 0.0
        %v1317 = vsel %vm1309, %v1253, 0.0
        %v1318 = vsel %vm1310, %v1254, 0.0
        %v1319 = vsel %vm1311, %v1255, 0.0
        %v1320 = vsel %vm1312, %v1256, 0.0
        %1321 = vst.msk [vmem:[#allocation4] sm:$0xff] %vm184, %v1313
        %1322 = vst.msk [vmem:[#allocation4 + $0x8] sm:$0xff] %vm184, %v1314
        %1323 = vst.msk [vmem:[#allocation4 + $0x10] sm:$0xff] %vm184, %v1315
        %1324 = vst.msk [vmem:[#allocation4 + $0x18] sm:$0xff] %vm184, %v1316
        %1325 = vst.msk [vmem:[#allocation4 + $0x20] sm:$0xff] %vm184, %v1317
        %1326 = vst.msk [vmem:[#allocation4 + $0x28] sm:$0xff] %vm184, %v1318
        %1327 = vst.msk [vmem:[#allocation4 + $0x30] sm:$0xff] %vm184, %v1319
        %1328 = vst.msk [vmem:[#allocation4 + $0x38] sm:$0xff] %vm184, %v1320
      $region76: #{scope_grammar_lm_forward.1} parent=69 // pred_fallthru
        _
      %s1329 = sadd.s32 %s96, 1
      %p1330 = scmp.lt.s32.totalorder %s1329, %s87
      // Predicated region
      $region77: #{scope_grammar_lm_forward.1} parent=69 // pred_check
        %p1331 = pneg %p1330
      $region78: #{scope_grammar_lm_forward.1} parent=69 // pred_check_branch
        %1333 = sbr.rel (%p1331) target = $region80
      $region79: #{scope_grammar_lm_forward.1} parent=69 // pred_region
        %s1334 = smul.u32 %s1329, 8
        %s1335 = scalar_lea.vmem %s1, %s1334
        %v1336 = vld [vmem:[%s1335] sm:$0xff]
        %v1337 = vld [vmem:[#allocation4] sm:$0xff]
        %v1338 = vld [vmem:[#allocation4 + $0x8] sm:$0xff]
        %v1339 = vld [vmem:[#allocation4 + $0x10] sm:$0xff]
        %v1340 = vld [vmem:[#allocation4 + $0x18] sm:$0xff]
        %v1341 = vld [vmem:[#allocation4 + $0x20] sm:$0xff]
        %v1342 = vld [vmem:[#allocation4 + $0x28] sm:$0xff]
        %v1343 = vld [vmem:[#allocation4 + $0x30] sm:$0xff]
        %v1344 = vld [vmem:[#allocation4 + $0x38] sm:$0xff]
        %v1345 = vlaneseq
        %v1346 = vshrl.u32 %v1345, 7
        %v1347 = vsub.s32 0, %v1346
        %v1348 = vrot.slane %v1336, %v1347
        %s1350 = sor.u32 256, 32
        %1351 = vbcast.lane.b32.xlu0 %v1348, %s1350
        %v1352 = vpop.permute.xlu0 %1351
        %v1353 = vlaneseq
        %v1354 = vshrl.u32 %v1353, 7
        %v1355 = vsub.s32 1, %v1354
        %v1356 = vrot.slane %v1336, %v1355
        %s1358 = sor.u32 256, 32
        %1359 = vbcast.lane.b32.xlu0 %v1356, %s1358
        %v1360 = vpop.permute.xlu0 %1359
        %v1361 = vlaneseq
        %v1362 = vshrl.u32 %v1361, 7
        %v1363 = vsub.s32 2, %v1362
        %v1364 = vrot.slane %v1336, %v1363
        %s1366 = sor.u32 256, 32
        %1367 = vbcast.lane.b32.xlu0 %v1364, %s1366
        %v1368 = vpop.permute.xlu0 %1367
        %v1369 = vlaneseq
        %v1370 = vshrl.u32 %v1369, 7
        %v1371 = vsub.s32 3, %v1370
        %v1372 = vrot.slane %v1336, %v1371
        %s1374 = sor.u32 256, 32
        %1375 = vbcast.lane.b32.xlu0 %v1372, %s1374
        %v1376 = vpop.permute.xlu0 %1375
        %v1377 = vlaneseq
        %v1378 = vshrl.u32 %v1377, 7
        %v1379 = vsub.s32 4, %v1378
        %v1380 = vrot.slane %v1336, %v1379
        %s1382 = sor.u32 256, 32
        %1383 = vbcast.lane.b32.xlu0 %v1380, %s1382
        %v1384 = vpop.permute.xlu0 %1383
        %v1385 = vlaneseq
        %v1386 = vshrl.u32 %v1385, 7
        %v1387 = vsub.s32 5, %v1386
        %v1388 = vrot.slane %v1336, %v1387
        %s1390 = sor.u32 256, 32
        %1391 = vbcast.lane.b32.xlu0 %v1388, %s1390
        %v1392 = vpop.permute.xlu0 %1391
        %v1393 = vlaneseq
        %v1394 = vshrl.u32 %v1393, 7
        %v1395 = vsub.s32 6, %v1394
        %v1396 = vrot.slane %v1336, %v1395
        %s1398 = sor.u32 256, 32
        %1399 = vbcast.lane.b32.xlu0 %v1396, %s1398
        %v1400 = vpop.permute.xlu0 %1399
        %v1401 = vlaneseq
        %v1402 = vshrl.u32 %v1401, 7
        %v1403 = vsub.s32 7, %v1402
        %v1404 = vrot.slane %v1336, %v1403
        %s1406 = sor.u32 256, 32
        %1407 = vbcast.lane.b32.xlu0 %v1404, %s1406
        %v1408 = vpop.permute.xlu0 %1407
        %v1409 = vmul.f32 %v1352, %v1337
        %v1410 = vmul.f32 %v1360, %v1338
        %v1411 = vmul.f32 %v1368, %v1339
        %v1412 = vmul.f32 %v1376, %v1340
        %v1413 = vmul.f32 %v1384, %v1341
        %v1414 = vmul.f32 %v1392, %v1342
        %v1415 = vmul.f32 %v1400, %v1343
        %v1416 = vmul.f32 %v1408, %v1344
        %vm1417 = vcmask 261120
        %v1418 = vsel %vm1417, %v1409, 0.0
        %v1419 = vrot.slane %v1418, 4
        %v1420 = vadd.f32 %v1418, %v1419
        %v1421 = vrot.slane %v1420, 2
        %v1422 = vadd.f32 %v1420, %v1421
        %v1423 = vrot.slane %v1422, 1
        %v1424 = vadd.f32 %v1422, %v1423
        %v1425 = vsel %vm1417, %v1410, 0.0
        %v1426 = vrot.slane %v1425, 4
        %v1427 = vadd.f32 %v1425, %v1426
        %v1428 = vrot.slane %v1427, 2
        %v1429 = vadd.f32 %v1427, %v1428
        %v1430 = vrot.slane %v1429, 1
        %v1431 = vadd.f32 %v1429, %v1430
        %v1432 = vsel %vm1417, %v1411, 0.0
        %v1433 = vrot.slane %v1432, 4
        %v1434 = vadd.f32 %v1432, %v1433
        %v1435 = vrot.slane %v1434, 2
        %v1436 = vadd.f32 %v1434, %v1435
        %v1437 = vrot.slane %v1436, 1
        %v1438 = vadd.f32 %v1436, %v1437
        %v1439 = vsel %vm1417, %v1412, 0.0
        %v1440 = vrot.slane %v1439, 4
        %v1441 = vadd.f32 %v1439, %v1440
        %v1442 = vrot.slane %v1441, 2
        %v1443 = vadd.f32 %v1441, %v1442
        %v1444 = vrot.slane %v1443, 1
        %v1445 = vadd.f32 %v1443, %v1444
        %v1446 = vsel %vm1417, %v1413, 0.0
        %v1447 = vrot.slane %v1446, 4
        %v1448 = vadd.f32 %v1446, %v1447
        %v1449 = vrot.slane %v1448, 2
        %v1450 = vadd.f32 %v1448, %v1449
        %v1451 = vrot.slane %v1450, 1
        %v1452 = vadd.f32 %v1450, %v1451
        %v1453 = vsel %vm1417, %v1414, 0.0
        %v1454 = vrot.slane %v1453, 4
        %v1455 = vadd.f32 %v1453, %v1454
        %v1456 = vrot.slane %v1455, 2
        %v1457 = vadd.f32 %v1455, %v1456
        %v1458 = vrot.slane %v1457, 1
        %v1459 = vadd.f32 %v1457, %v1458
        %v1460 = vsel %vm1417, %v1415, 0.0
        %v1461 = vrot.slane %v1460, 4
        %v1462 = vadd.f32 %v1460, %v1461
        %v1463 = vrot.slane %v1462, 2
        %v1464 = vadd.f32 %v1462, %v1463
        %v1465 = vrot.slane %v1464, 1
        %v1466 = vadd.f32 %v1464, %v1465
        %v1467 = vsel %vm1417, %v1416, 0.0
        %v1468 = vrot.slane %v1467, 4
        %v1469 = vadd.f32 %v1467, %v1468
        %v1470 = vrot.slane %v1469, 2
        %v1471 = vadd.f32 %v1469, %v1470
        %v1472 = vrot.slane %v1471, 1
        %v1473 = vadd.f32 %v1471, %v1472
        %vm1482 = vcmask 1041409
        %v1483 = vsel %vm1482, %v1431, %v1424
        %vm1484 = vcmask 1042434
        %v1485 = vsel %vm1484, %v1438, %v1483
        %vm1486 = vcmask 1043459
        %v1487 = vsel %vm1486, %v1445, %v1485
        %vm1488 = vcmask 1044484
        %v1489 = vsel %vm1488, %v1452, %v1487
        %vm1490 = vcmask 1045509
        %v1491 = vsel %vm1490, %v1459, %v1489
        %vm1492 = vcmask 1046534
        %v1493 = vsel %vm1492, %v1466, %v1491
        %vm1494 = vcmask 1047559
        %v1495 = vsel %vm1494, %v1473, %v1493
        %1498 = vrot.lane.b32.xlu0 %v1336, 32
        %v1499 = vpop.permute.xlu0 %1498
        %v1501 = vsel %vm1417, %v1495, %v1499
        %v1502 = vld [vmem:[%s2] sm:$0xf]
        %v1503 = vld [vmem:[%s2 + $0x4] sm:$0xf]
        %v1504 = vld [vmem:[%s2 + $0x8] sm:$0xf]
        %v1505 = vld [vmem:[%s2 + $0xc] sm:$0xf]
        %v1506 = vld [vmem:[%s2 + $0x10] sm:$0xf]
        %v1507 = vld [vmem:[%s2 + $0x14] sm:$0xf]
        %v1508 = vld [vmem:[%s2 + $0x18] sm:$0xf]
        %v1509 = vld [vmem:[%s2 + $0x1c] sm:$0xf]
        %v1510 = vpack.c.bf16 %v1501, %v1501
        %v1511 = vld [vmem:[%s3] sm:$0x1]
        %v1513 = vlaneseq
        %v1514 = vshrl.u32 %v1513, 7
        %v1515 = vsub.s32 0, %v1514
        %v1516 = vrot.slane %v1511, %v1515
        %v1526 = vunpack.c.l.b16 %v1502
        %v1527 = vunpack.c.l.b16 %v1503
        %v1528 = vunpack.c.l.b16 %v1504
        %v1529 = vunpack.c.l.b16 %v1505
        %v1530 = vunpack.c.l.b16 %v1506
        %v1531 = vunpack.c.l.b16 %v1507
        %v1532 = vunpack.c.l.b16 %v1508
        %v1533 = vunpack.c.l.b16 %v1509
        %v1534 = vpack.c.b16 %v1527, %v1526
        %v1535 = vpack.c.b16 %v1529, %v1528
        %v1536 = vpack.c.b16 %v1531, %v1530
        %v1537 = vpack.c.b16 %v1533, %v1532
        %vm1542 = vcmask 523264
        %v1544 = vsel %vm1542, %v1510, 0
        %1546 = vmatprep.subr.bf16.mxu0 0
        %1547 = vmatpush1.bf16.msra.mxu0 %v1534
        %1548 = vmatprep.subr.bf16.mxu0 0
        %1549 = vmatpush1.bf16.msra.mxu0 %v1535
        %1550 = vmatprep.subr.bf16.mxu0 0
        %1551 = vmatpush1.bf16.msra.mxu0 %v1536
        %1552 = vmatprep.subr.bf16.mxu0 0
        %1553 = vmatpush1.bf16.msra.mxu0 %v1537
        %1554 = vmatprep.subr.bf16.mxu0 0
        %1555 = vmatpush1.bf16.msra.mxu0 0
        %1556 = vmatprep.subr.bf16.mxu0 0
        %1557 = vmatpush1.bf16.msra.mxu0 0
        %1558 = vmatprep.subr.bf16.mxu0 0
        %1559 = vmatpush1.bf16.msra.mxu0 0
        %1560 = vmatprep.subr.bf16.mxu0 0
        %1561 = vmatpush1.bf16.msra.mxu0 0
        %1562 = vmatprep.subr.bf16.mxu0 0
        %1563 = vmatpush1.bf16.msra.mxu0 0
        %1564 = vmatprep.subr.bf16.mxu0 0
        %1565 = vmatpush1.bf16.msra.mxu0 0
        %1566 = vmatprep.subr.bf16.mxu0 0
        %1567 = vmatpush1.bf16.msra.mxu0 0
        %1568 = vmatprep.subr.bf16.mxu0 0
        %1569 = vmatpush1.bf16.msra.mxu0 0
        %1570 = vmatprep.subr.bf16.mxu0 0
        %1571 = vmatpush1.bf16.msra.mxu0 0
        %1572 = vmatprep.subr.bf16.mxu0 0
        %1573 = vmatpush1.bf16.msra.mxu0 0
        %1574 = vmatprep.subr.bf16.mxu0 0
        %1575 = vmatpush1.bf16.msra.mxu0 0
        %1576 = vmatprep.subr.bf16.mxu0 0
        %1577 = vmatpush1.bf16.msra.mxu0 0
        %1578 = vmatprep.mubr.bf16.mxu0 0
        %1579 = vmatmul.mubr.bf16.gmra.mrb[0].mxu0 %v1544
        %v1580 = vpop.f32.mrb[0].mxu0
        %v1581 = vadd.f32 %v1516, %v1580
        %v1582 = vpop.f32.mrb[0].mxu0
        %v1583 = vpop.f32.mrb[0].mxu0
        %v1584 = vpop.f32.mrb[0].mxu0
        %1585 = vdwg.mxu0
        %v1586 = vmax.f32 %v1581, 0.0
        %v1587 = vld [vmem:[%s4] sm:$0xf]
        %v1588 = vld [vmem:[%s4 + $0x4] sm:$0xf]
        %v1589 = vld [vmem:[%s4 + $0x8] sm:$0xf]
        %v1590 = vld [vmem:[%s4 + $0xc] sm:$0xf]
        %v1591 = vpack.c.bf16 %v1586, %v1586
        %v1592 = vld [vmem:[%s5] sm:$0x1]
        %v1594 = vlaneseq
        %v1595 = vshrl.u32 %v1594, 7
        %v1596 = vsub.s32 0, %v1595
        %v1597 = vrot.slane %v1592, %v1596
        %v1603 = vunpack.c.l.b16 %v1587
        %v1604 = vunpack.c.l.b16 %v1588
        %v1605 = vunpack.c.l.b16 %v1589
        %v1606 = vunpack.c.l.b16 %v1590
        %v1607 = vpack.c.b16 %v1604, %v1603
        %v1608 = vpack.c.b16 %v1606, %v1605
        %v1612 = vsel %vm1417, %v1591, 0
        %1614 = vmatprep.subr.bf16.mxu0 0
        %1615 = vmatpush1.bf16.msra.mxu0 %v1607
        %1616 = vmatprep.subr.bf16.mxu0 0
        %1617 = vmatpush1.bf16.msra.mxu0 %v1608
        %1618 = vmatprep.subr.bf16.mxu0 0
        %1619 = vmatpush1.bf16.msra.mxu0 0
        %1620 = vmatprep.subr.bf16.mxu0 0
        %1621 = vmatpush1.bf16.msra.mxu0 0
        %1622 = vmatprep.subr.bf16.mxu0 0
        %1623 = vmatpush1.bf16.msra.mxu0 0
        %1624 = vmatprep.subr.bf16.mxu0 0
        %1625 = vmatpush1.bf16.msra.mxu0 0
        %1626 = vmatprep.subr.bf16.mxu0 0
        %1627 = vmatpush1.bf16.msra.mxu0 0
        %1628 = vmatprep.subr.bf16.mxu0 0
        %1629 = vmatpush1.bf16.msra.mxu0 0
        %1630 = vmatprep.subr.bf16.mxu0 0
        %1631 = vmatpush1.bf16.msra.mxu0 0
        %1632 = vmatprep.subr.bf16.mxu0 0
        %1633 = vmatpush1.bf16.msra.mxu0 0
        %1634 = vmatprep.subr.bf16.mxu0 0
        %1635 = vmatpush1.bf16.msra.mxu0 0
        %1636 = vmatprep.subr.bf16.mxu0 0
        %1637 = vmatpush1.bf16.msra.mxu0 0
        %1638 = vmatprep.subr.bf16.mxu0 0
        %1639 = vmatpush1.bf16.msra.mxu0 0
        %1640 = vmatprep.subr.bf16.mxu0 0
        %1641 = vmatpush1.bf16.msra.mxu0 0
        %1642 = vmatprep.subr.bf16.mxu0 0
        %1643 = vmatpush1.bf16.msra.mxu0 0
        %1644 = vmatprep.subr.bf16.mxu0 0
        %1645 = vmatpush1.bf16.msra.mxu0 0
        %1646 = vmatprep.mubr.bf16.mxu0 0
        %1647 = vmatmul.mubr.bf16.gmra.mrb[0].mxu0 %v1612
        %v1648 = vpop.f32.mrb[0].mxu0
        %v1649 = vadd.f32 %v1597, %v1648
        %v1650 = vpop.f32.mrb[0].mxu0
        %v1651 = vpop.f32.mrb[0].mxu0
        %v1652 = vpop.f32.mrb[0].mxu0
        %1653 = vdwg.mxu0
        %vm1654 = vcmp.gt.f32.partialorder %v1336, 0.5
        %v1655 = vsel %vm1654, 1, 0
        %1656 = vset.pattern.permute.xlu0 48
        %1657 = vperm.xlu0 %1656, %v1655
        %v1658 = vpop.permute.xlu0 %1657
        %vm1659 = vcmp.eq.s32.totalorder %v1658, 1
        %v1660 = vsel %vm1659, %v1649, %v1336
        %v1661 = vld [vmem:[%s10] sm:$0xf]
        %v1662 = vld [vmem:[%s10 + $0x4] sm:$0xf]
        %v1663 = vld [vmem:[%s10 + $0x8] sm:$0xf]
        %v1664 = vld [vmem:[%s10 + $0xc] sm:$0xf]
        %v1665 = vpack.c.bf16 %v1338, %v1337
        %v1666 = vpack.c.bf16 %v1340, %v1339
        %v1667 = vpack.c.bf16 %v1342, %v1341
        %v1668 = vpack.c.bf16 %v1344, %v1343
        %v1673 = vunpack.c.l.b16 %v1661
        %v1674 = vunpack.c.l.b16 %v1662
        %v1675 = vunpack.c.l.b16 %v1663
        %v1676 = vunpack.c.l.b16 %v1664
        %v1677 = vpack.c.b16 %v1674, %v1673
        %v1678 = vpack.c.b16 %v1676, %v1675
        %v1682 = vsel %vm1417, %v1665, 0
        %v1685 = vsel %vm1417, %v1666, 0
        %v1688 = vsel %vm1417, %v1667, 0
        %v1691 = vsel %vm1417, %v1668, 0
        %1693 = vmatprep.subr.bf16.mxu0 0
        %1694 = vmatpush1.bf16.msra.mxu0 %v1677
        %1695 = vmatprep.subr.bf16.mxu0 0
        %1696 = vmatpush1.bf16.msra.mxu0 %v1678
        %1697 = vmatprep.subr.bf16.mxu0 0
        %1698 = vmatpush1.bf16.msra.mxu0 0
        %1699 = vmatprep.subr.bf16.mxu0 0
        %1700 = vmatpush1.bf16.msra.mxu0 0
        %1701 = vmatprep.subr.bf16.mxu0 0
        %1702 = vmatpush1.bf16.msra.mxu0 0
        %1703 = vmatprep.subr.bf16.mxu0 0
        %1704 = vmatpush1.bf16.msra.mxu0 0
        %1705 = vmatprep.subr.bf16.mxu0 0
        %1706 = vmatpush1.bf16.msra.mxu0 0
        %1707 = vmatprep.subr.bf16.mxu0 0
        %1708 = vmatpush1.bf16.msra.mxu0 0
        %1709 = vmatprep.subr.bf16.mxu0 0
        %1710 = vmatpush1.bf16.msra.mxu0 0
        %1711 = vmatprep.subr.bf16.mxu0 0
        %1712 = vmatpush1.bf16.msra.mxu0 0
        %1713 = vmatprep.subr.bf16.mxu0 0
        %1714 = vmatpush1.bf16.msra.mxu0 0
        %1715 = vmatprep.subr.bf16.mxu0 0
        %1716 = vmatpush1.bf16.msra.mxu0 0
        %1717 = vmatprep.subr.bf16.mxu0 0
        %1718 = vmatpush1.bf16.msra.mxu0 0
        %1719 = vmatprep.subr.bf16.mxu0 0
        %1720 = vmatpush1.bf16.msra.mxu0 0
        %1721 = vmatprep.subr.bf16.mxu0 0
        %1722 = vmatpush1.bf16.msra.mxu0 0
        %1723 = vmatprep.subr.bf16.mxu0 0
        %1724 = vmatpush1.bf16.msra.mxu0 0
        %1725 = vmatprep.mubr.bf16.mxu0 0
        %1726 = vmatmul.mubr.bf16.gmra.mrb[0].mxu0 %v1682
        %v1727 = vpop.f32.mrb[0].mxu0
        %v1728 = vadd.f32 0.0, %v1727
        %v1729 = vpop.f32.mrb[0].mxu0
        %v1730 = vpop.f32.mrb[0].mxu0
        %v1731 = vadd.f32 0.0, %v1730
        %v1732 = vpop.f32.mrb[0].mxu0
        %1733 = vmatprep.mubr.bf16.mxu0 0
        %1734 = vmatmul.mubr.bf16.gmra.mrb[0].mxu0 %v1685
        %v1735 = vpop.f32.mrb[0].mxu0
        %v1736 = vadd.f32 0.0, %v1735
        %v1737 = vpop.f32.mrb[0].mxu0
        %v1738 = vpop.f32.mrb[0].mxu0
        %v1739 = vadd.f32 0.0, %v1738
        %v1740 = vpop.f32.mrb[0].mxu0
        %1741 = vmatprep.mubr.bf16.mxu0 0
        %1742 = vmatmul.mubr.bf16.gmra.mrb[0].mxu0 %v1688
        %v1743 = vpop.f32.mrb[0].mxu0
        %v1744 = vadd.f32 0.0, %v1743
        %v1745 = vpop.f32.mrb[0].mxu0
        %v1746 = vpop.f32.mrb[0].mxu0
        %v1747 = vadd.f32 0.0, %v1746
        %v1748 = vpop.f32.mrb[0].mxu0
        %1749 = vmatprep.mubr.bf16.mxu0 0
        %1750 = vmatmul.mubr.bf16.gmra.mrb[0].mxu0 %v1691
        %v1751 = vpop.f32.mrb[0].mxu0
        %v1752 = vadd.f32 0.0, %v1751
        %v1753 = vpop.f32.mrb[0].mxu0
        %v1754 = vpop.f32.mrb[0].mxu0
        %v1755 = vadd.f32 0.0, %v1754
        %v1756 = vpop.f32.mrb[0].mxu0
        %1757 = vdwg.mxu0
        %v1758 = vld [vmem:[#allocation2] sm:$0xff]
        %v1759 = vld [vmem:[#allocation3] sm:$0xff]
        %1761 = vrot.lane.b32.xlu0 %v1758, 32
        %v1762 = vpop.permute.xlu0 %1761
        %v1764 = vsel %vm1417, %v1660, %v1762
        %v1765 = vld [vmem:[%s6] sm:$0xf]
        %v1766 = vld [vmem:[%s6 + $0x4] sm:$0xf]
        %v1767 = vld [vmem:[%s6 + $0x8] sm:$0xf]
        %v1768 = vld [vmem:[%s6 + $0xc] sm:$0xf]
        %v1769 = vld [vmem:[%s6 + $0x10] sm:$0xf]
        %v1770 = vld [vmem:[%s6 + $0x14] sm:$0xf]
        %v1771 = vld [vmem:[%s6 + $0x18] sm:$0xf]
        %v1772 = vld [vmem:[%s6 + $0x1c] sm:$0xf]
        %v1773 = vpack.c.bf16 %v1764, %v1764
        %v1774 = vld [vmem:[%s7] sm:$0x1]
        %v1776 = vlaneseq
        %v1777 = vshrl.u32 %v1776, 7
        %v1778 = vsub.s32 0, %v1777
        %v1779 = vrot.slane %v1774, %v1778
        %v1789 = vunpack.c.l.b16 %v1765
        %v1790 = vunpack.c.l.b16 %v1766
        %v1791 = vunpack.c.l.b16 %v1767
        %v1792 = vunpack.c.l.b16 %v1768
        %v1793 = vunpack.c.l.b16 %v1769
        %v1794 = vunpack.c.l.b16 %v1770
        %v1795 = vunpack.c.l.b16 %v1771
        %v1796 = vunpack.c.l.b16 %v1772
        %v1797 = vpack.c.b16 %v1790, %v1789
        %v1798 = vpack.c.b16 %v1792, %v1791
        %v1799 = vpack.c.b16 %v1794, %v1793
        %v1800 = vpack.c.b16 %v1796, %v1795
        %v1806 = vsel %vm1542, %v1773, 0
        %1808 = vmatprep.subr.bf16.mxu0 0
        %1809 = vmatpush1.bf16.msra.mxu0 %v1797
        %1810 = vmatprep.subr.bf16.mxu0 0
        %1811 = vmatpush1.bf16.msra.mxu0 %v1798
        %1812 = vmatprep.subr.bf16.mxu0 0
        %1813 = vmatpush1.bf16.msra.mxu0 %v1799
        %1814 = vmatprep.subr.bf16.mxu0 0
        %1815 = vmatpush1.bf16.msra.mxu0 %v1800
        %1816 = vmatprep.subr.bf16.mxu0 0
        %1817 = vmatpush1.bf16.msra.mxu0 0
        %1818 = vmatprep.subr.bf16.mxu0 0
        %1819 = vmatpush1.bf16.msra.mxu0 0
        %1820 = vmatprep.subr.bf16.mxu0 0
        %1821 = vmatpush1.bf16.msra.mxu0 0
        %1822 = vmatprep.subr.bf16.mxu0 0
        %1823 = vmatpush1.bf16.msra.mxu0 0
        %1824 = vmatprep.subr.bf16.mxu0 0
        %1825 = vmatpush1.bf16.msra.mxu0 0
        %1826 = vmatprep.subr.bf16.mxu0 0
        %1827 = vmatpush1.bf16.msra.mxu0 0
        %1828 = vmatprep.subr.bf16.mxu0 0
        %1829 = vmatpush1.bf16.msra.mxu0 0
        %1830 = vmatprep.subr.bf16.mxu0 0
        %1831 = vmatpush1.bf16.msra.mxu0 0
        %1832 = vmatprep.subr.bf16.mxu0 0
        %1833 = vmatpush1.bf16.msra.mxu0 0
        %1834 = vmatprep.subr.bf16.mxu0 0
        %1835 = vmatpush1.bf16.msra.mxu0 0
        %1836 = vmatprep.subr.bf16.mxu0 0
        %1837 = vmatpush1.bf16.msra.mxu0 0
        %1838 = vmatprep.subr.bf16.mxu0 0
        %1839 = vmatpush1.bf16.msra.mxu0 0
        %1840 = vmatprep.mubr.bf16.mxu0 0
        %1841 = vmatmul.mubr.bf16.gmra.mrb[0].mxu0 %v1806
        %v1842 = vpop.f32.mrb[0].mxu0
        %v1843 = vadd.f32 %v1779, %v1842
        %v1844 = vpop.f32.mrb[0].mxu0
        %v1845 = vpop.f32.mrb[0].mxu0
        %v1846 = vpop.f32.mrb[0].mxu0
        %1847 = vdwg.mxu0
        %v1848 = vxor.u32 %v1843, 2147483648
        %v1849 = vmul.f32 %v1848, 1.442695
        %v1850 = vpow.pop %v1849
        %v1851 = vadd.f32 %v1850, 1.0
        %v1852 = vrcp.pop %v1851
        %v1853 = vmul.f32 1.0, %v1852
        %v1854 = vtanh.pop %v1843
        %1856 = vrot.lane.b32.xlu0 %v1759, 32
        %v1857 = vpop.permute.xlu0 %1856
        %v1859 = vmul.f32 %v1853, %v1857
        %1861 = vrot.lane.b32.xlu0 %v1854, 64
        %v1862 = vpop.permute.xlu0 %1861
        %v1864 = vmul.f32 %v1853, %v1862
        %1866 = vrot.lane.b32.xlu0 %v1864, 32
        %v1867 = vpop.permute.xlu0 %1866
        %v1869 = vadd.f32 %v1859, %v1867
        %v1870 = vtanh.pop %v1869
        %1872 = vrot.lane.b32.xlu0 %v1870, 64
        %v1873 = vpop.permute.xlu0 %1872
        %v1875 = vmul.f32 %v1853, %v1873
        %1877 = vrot.lane.b32.xlu0 %v1875, 32
        %v1878 = vpop.permute.xlu0 %1877
        %1880 = vst.msk [vmem:[#allocation2] sm:$0xff] %vm1417, %v1878
        %1882 = vrot.lane.b32.xlu0 %v1869, 96
        %v1883 = vpop.permute.xlu0 %1882
        %1885 = vst.msk [vmem:[#allocation3] sm:$0xff] %vm1417, %v1883
        %s1886 = scalar_lea.vmem [#allocation2], 8
        %v1887 = vld [vmem:[%s1886] sm:$0xff]
        %s1888 = scalar_lea.vmem [#allocation3], 8
        %v1889 = vld [vmem:[%s1888] sm:$0xff]
        %1891 = vrot.lane.b32.xlu0 %v1887, 32
        %v1892 = vpop.permute.xlu0 %1891
        %v1894 = vsel %vm1417, %v1878, %v1892
        %s1895 = scalar_lea.vmem %s6, 32
        %v1896 = vld [vmem:[%s1895] sm:$0xf]
        %v1897 = vld [vmem:[%s1895 + $0x4] sm:$0xf]
        %v1898 = vld [vmem:[%s1895 + $0x8] sm:$0xf]
        %v1899 = vld [vmem:[%s1895 + $0xc] sm:$0xf]
        %v1900 = vld [vmem:[%s1895 + $0x10] sm:$0xf]
        %v1901 = vld [vmem:[%s1895 + $0x14] sm:$0xf]
        %v1902 = vld [vmem:[%s1895 + $0x18] sm:$0xf]
        %v1903 = vld [vmem:[%s1895 + $0x1c] sm:$0xf]
        %v1904 = vpack.c.bf16 %v1894, %v1894
        %s1905 = scalar_lea.vmem %s7, 1
        %v1906 = vld [vmem:[%s1905] sm:$0x1]
        %v1908 = vlaneseq
        %v1909 = vshrl.u32 %v1908, 7
        %v1910 = vsub.s32 0, %v1909
        %v1911 = vrot.slane %v1906, %v1910
        %v1921 = vunpack.c.l.b16 %v1896
        %v1922 = vunpack.c.l.b16 %v1897
        %v1923 = vunpack.c.l.b16 %v1898
        %v1924 = vunpack.c.l.b16 %v1899
        %v1925 = vunpack.c.l.b16 %v1900
        %v1926 = vunpack.c.l.b16 %v1901
        %v1927 = vunpack.c.l.b16 %v1902
        %v1928 = vunpack.c.l.b16 %v1903
        %v1929 = vpack.c.b16 %v1922, %v1921
        %v1930 = vpack.c.b16 %v1924, %v1923
        %v1931 = vpack.c.b16 %v1926, %v1925
        %v1932 = vpack.c.b16 %v1928, %v1927
        %v1938 = vsel %vm1542, %v1904, 0
        %1940 = vmatprep.subr.bf16.mxu0 0
        %1941 = vmatpush1.bf16.msra.mxu0 %v1929
        %1942 = vmatprep.subr.bf16.mxu0 0
        %1943 = vmatpush1.bf16.msra.mxu0 %v1930
        %1944 = vmatprep.subr.bf16.mxu0 0
        %1945 = vmatpush1.bf16.msra.mxu0 %v1931
        %1946 = vmatprep.subr.bf16.mxu0 0
        %1947 = vmatpush1.bf16.msra.mxu0 %v1932
        %1948 = vmatprep.subr.bf16.mxu0 0
        %1949 = vmatpush1.bf16.msra.mxu0 0
        %1950 = vmatprep.subr.bf16.mxu0 0
        %1951 = vmatpush1.bf16.msra.mxu0 0
        %1952 = vmatprep.subr.bf16.mxu0 0
        %1953 = vmatpush1.bf16.msra.mxu0 0
        %1954 = vmatprep.subr.bf16.mxu0 0
        %1955 = vmatpush1.bf16.msra.mxu0 0
        %1956 = vmatprep.subr.bf16.mxu0 0
        %1957 = vmatpush1.bf16.msra.mxu0 0
        %1958 = vmatprep.subr.bf16.mxu0 0
        %1959 = vmatpush1.bf16.msra.mxu0 0
        %1960 = vmatprep.subr.bf16.mxu0 0
        %1961 = vmatpush1.bf16.msra.mxu0 0
        %1962 = vmatprep.subr.bf16.mxu0 0
        %1963 = vmatpush1.bf16.msra.mxu0 0
        %1964 = vmatprep.subr.bf16.mxu0 0
        %1965 = vmatpush1.bf16.msra.mxu0 0
        %1966 = vmatprep.subr.bf16.mxu0 0
        %1967 = vmatpush1.bf16.msra.mxu0 0
        %1968 = vmatprep.subr.bf16.mxu0 0
        %1969 = vmatpush1.bf16.msra.mxu0 0
        %1970 = vmatprep.subr.bf16.mxu0 0
        %1971 = vmatpush1.bf16.msra.mxu0 0
        %1972 = vmatprep.mubr.bf16.mxu0 0
        %1973 = vmatmul.mubr.bf16.gmra.mrb[0].mxu0 %v1938
        %v1974 = vpop.f32.mrb[0].mxu0
        %v1975 = vadd.f32 %v1911, %v1974
        %v1976 = vpop.f32.mrb[0].mxu0
        %v1977 = vpop.f32.mrb[0].mxu0
        %v1978 = vpop.f32.mrb[0].mxu0
        %1979 = vdwg.mxu0
        %v1980 = vxor.u32 %v1975, 2147483648
        %v1981 = vmul.f32 %v1980, 1.442695
        %v1982 = vpow.pop %v1981
        %v1983 = vadd.f32 %v1982, 1.0
        %v1984 = vrcp.pop %v1983
        %v1985 = vmul.f32 1.0, %v1984
        %v1986 = vtanh.pop %v1975
        %1988 = vrot.lane.b32.xlu0 %v1889, 32
        %v1989 = vpop.permute.xlu0 %1988
        %v1991 = vmul.f32 %v1985, %v1989
        %1993 = vrot.lane.b32.xlu0 %v1986, 64
        %v1994 = vpop.permute.xlu0 %1993
        %v1996 = vmul.f32 %v1985, %v1994
        %1998 = vrot.lane.b32.xlu0 %v1996, 32
        %v1999 = vpop.permute.xlu0 %1998
        %v2001 = vadd.f32 %v1991, %v1999
        %v2002 = vtanh.pop %v2001
        %2004 = vrot.lane.b32.xlu0 %v2002, 64
        %v2005 = vpop.permute.xlu0 %2004
        %v2007 = vmul.f32 %v1985, %v2005
        %2009 = vrot.lane.b32.xlu0 %v2007, 32
        %v2010 = vpop.permute.xlu0 %2009
        %2012 = vst.msk [vmem:[%s1886] sm:$0xff] %vm1417, %v2010
        %2014 = vrot.lane.b32.xlu0 %v2001, 96
        %v2015 = vpop.permute.xlu0 %2014
        %2017 = vst.msk [vmem:[%s1888] sm:$0xff] %vm1417, %v2015
        %v2018 = vld [vmem:[%s8] sm:$0xf]
        %v2019 = vld [vmem:[%s8 + $0x4] sm:$0xf]
        %v2020 = vld [vmem:[%s8 + $0x8] sm:$0xf]
        %v2021 = vld [vmem:[%s8 + $0xc] sm:$0xf]
        %v2022 = vpack.c.bf16 %v2007, %v2007
        %v2023 = vld [vmem:[%s9] sm:$0x1]
        %v2025 = vlaneseq
        %v2026 = vshrl.u32 %v2025, 7
        %v2027 = vsub.s32 0, %v2026
        %v2028 = vrot.slane %v2023, %v2027
        %2031 = vrot.lane.b32.xlu0 %v2022, 32
        %v2032 = vpop.permute.xlu0 %2031
        %v2037 = vunpack.c.l.b16 %v2018
        %v2038 = vunpack.c.l.b16 %v2019
        %v2039 = vunpack.c.l.b16 %v2020
        %v2040 = vunpack.c.l.b16 %v2021
        %v2041 = vpack.c.b16 %v2038, %v2037
        %v2042 = vpack.c.b16 %v2040, %v2039
        %v2046 = vsel %vm1417, %v2032, 0
        %2048 = vmatprep.subr.bf16.mxu0 0
        %2049 = vmatpush1.bf16.msra.mxu0 %v2041
        %2050 = vmatprep.subr.bf16.mxu0 0
        %2051 = vmatpush1.bf16.msra.mxu0 %v2042
        %2052 = vmatprep.subr.bf16.mxu0 0
        %2053 = vmatpush1.bf16.msra.mxu0 0
        %2054 = vmatprep.subr.bf16.mxu0 0
        %2055 = vmatpush1.bf16.msra.mxu0 0
        %2056 = vmatprep.subr.bf16.mxu0 0
        %2057 = vmatpush1.bf16.msra.mxu0 0
        %2058 = vmatprep.subr.bf16.mxu0 0
        %2059 = vmatpush1.bf16.msra.mxu0 0
        %2060 = vmatprep.subr.bf16.mxu0 0
        %2061 = vmatpush1.bf16.msra.mxu0 0
        %2062 = vmatprep.subr.bf16.mxu0 0
        %2063 = vmatpush1.bf16.msra.mxu0 0
        %2064 = vmatprep.subr.bf16.mxu0 0
        %2065 = vmatpush1.bf16.msra.mxu0 0
        %2066 = vmatprep.subr.bf16.mxu0 0
        %2067 = vmatpush1.bf16.msra.mxu0 0
        %2068 = vmatprep.subr.bf16.mxu0 0
        %2069 = vmatpush1.bf16.msra.mxu0 0
        %2070 = vmatprep.subr.bf16.mxu0 0
        %2071 = vmatpush1.bf16.msra.mxu0 0
        %2072 = vmatprep.subr.bf16.mxu0 0
        %2073 = vmatpush1.bf16.msra.mxu0 0
        %2074 = vmatprep.subr.bf16.mxu0 0
        %2075 = vmatpush1.bf16.msra.mxu0 0
        %2076 = vmatprep.subr.bf16.mxu0 0
        %2077 = vmatpush1.bf16.msra.mxu0 0
        %2078 = vmatprep.subr.bf16.mxu0 0
        %2079 = vmatpush1.bf16.msra.mxu0 0
        %2080 = vmatprep.mubr.bf16.mxu0 0
        %2081 = vmatmul.mubr.bf16.gmra.mrb[0].mxu0 %v2046
        %v2082 = vpop.f32.mrb[0].mxu0
        %v2083 = vadd.f32 %v2028, %v2082
        %v2084 = vpop.f32.mrb[0].mxu0
        %v2085 = vpop.f32.mrb[0].mxu0
        %v2086 = vpop.f32.mrb[0].mxu0
        %2087 = vdwg.mxu0
        %v2088 = vmax.f32 %v2083, 0.0
        %v2089 = vld [vmem:[%s11] sm:$0xf]
        %v2090 = vld [vmem:[%s11 + $0x4] sm:$0xf]
        %v2091 = vld [vmem:[%s11 + $0x8] sm:$0xf]
        %v2092 = vld [vmem:[%s11 + $0xc] sm:$0xf]
        %v2093 = vld [vmem:[%s11 + $0x10] sm:$0xf]
        %v2094 = vld [vmem:[%s11 + $0x14] sm:$0xf]
        %v2095 = vld [vmem:[%s11 + $0x18] sm:$0xf]
        %v2096 = vld [vmem:[%s11 + $0x1c] sm:$0xf]
        %v2097 = vpack.c.bf16 %v2088, %v2088
        %v2098 = vld [vmem:[%s12] sm:$0x1]
        %v2100 = vlaneseq
        %v2101 = vshrl.u32 %v2100, 7
        %v2102 = vsub.s32 0, %v2101
        %v2103 = vrot.slane %v2098, %v2102
        %v2113 = vunpack.c.l.b16 %v2089
        %v2114 = vunpack.c.l.b16 %v2090
        %v2115 = vunpack.c.l.b16 %v2091
        %v2116 = vunpack.c.l.b16 %v2092
        %v2117 = vunpack.c.l.b16 %v2093
        %v2118 = vunpack.c.l.b16 %v2094
        %v2119 = vunpack.c.l.b16 %v2095
        %v2120 = vunpack.c.l.b16 %v2096
        %v2121 = vpack.c.b16 %v2114, %v2113
        %v2122 = vpack.c.b16 %v2116, %v2115
        %v2123 = vpack.c.b16 %v2118, %v2117
        %v2124 = vpack.c.b16 %v2120, %v2119
        %v2130 = vsel %vm1542, %v2097, 0
        %2132 = vmatprep.subr.bf16.mxu0 0
        %2133 = vmatpush1.bf16.msra.mxu0 %v2121
        %2134 = vmatprep.subr.bf16.mxu0 0
        %2135 = vmatpush1.bf16.msra.mxu0 %v2122
        %2136 = vmatprep.subr.bf16.mxu0 0
        %2137 = vmatpush1.bf16.msra.mxu0 %v2123
        %2138 = vmatprep.subr.bf16.mxu0 0
        %2139 = vmatpush1.bf16.msra.mxu0 %v2124
        %2140 = vmatprep.subr.bf16.mxu0 0
        %2141 = vmatpush1.bf16.msra.mxu0 0
        %2142 = vmatprep.subr.bf16.mxu0 0
        %2143 = vmatpush1.bf16.msra.mxu0 0
        %2144 = vmatprep.subr.bf16.mxu0 0
        %2145 = vmatpush1.bf16.msra.mxu0 0
        %2146 = vmatprep.subr.bf16.mxu0 0
        %2147 = vmatpush1.bf16.msra.mxu0 0
        %2148 = vmatprep.subr.bf16.mxu0 0
        %2149 = vmatpush1.bf16.msra.mxu0 0
        %2150 = vmatprep.subr.bf16.mxu0 0
        %2151 = vmatpush1.bf16.msra.mxu0 0
        %2152 = vmatprep.subr.bf16.mxu0 0
        %2153 = vmatpush1.bf16.msra.mxu0 0
        %2154 = vmatprep.subr.bf16.mxu0 0
        %2155 = vmatpush1.bf16.msra.mxu0 0
        %2156 = vmatprep.subr.bf16.mxu0 0
        %2157 = vmatpush1.bf16.msra.mxu0 0
        %2158 = vmatprep.subr.bf16.mxu0 0
        %2159 = vmatpush1.bf16.msra.mxu0 0
        %2160 = vmatprep.subr.bf16.mxu0 0
        %2161 = vmatpush1.bf16.msra.mxu0 0
        %2162 = vmatprep.subr.bf16.mxu0 0
        %2163 = vmatpush1.bf16.msra.mxu0 0
        %2164 = vmatprep.mubr.bf16.mxu0 0
        %2165 = vmatmul.mubr.bf16.gmra.mrb[0].mxu0 %v2130
        %v2166 = vpop.f32.mrb[0].mxu0
        %v2167 = vadd.f32 %v2103, %v2166
        %v2168 = vpop.f32.mrb[0].mxu0
        %v2169 = vpop.f32.mrb[0].mxu0
        %v2170 = vpop.f32.mrb[0].mxu0
        %2171 = vdwg.mxu0
        %2172 = vrot.lane.b32.xlu0 %v1336, 77
        %v2173 = vpop.permute.xlu0 %2172
        %vm2175 = vcmask 130048
        %v2176 = vsel %vm2175, %v2173, 0.0
        %vm2177 = vcmp.lt.s32.totalorder %v89, 16
        %2178 = vset.pattern.permute.xlu0 50
        %2179 = vperm.xlu0 %2178, %v1336
        %v2180 = vpop.permute.xlu0 %2179
        %v2182 = vsel %vm2177, %v2176, %v2180
        %vm2183 = vcmp.gt.f32.partialorder %v2182, 0.5
        %v2184 = vsel %vm2183, -inf, %v2167
        %2185 = vset.pattern.permute.xlu0 49
        %2186 = vperm.xlu0 %2185, %v1655
        %v2187 = vpop.permute.xlu0 %2186
        %vm2188 = vcmp.eq.s32.totalorder %v2187, 1
        %v2189 = vsel %vm2188, %v2184, -1.0
        %s2190 = scalar_lea.vmem [#allocation7], %s1334
        %2191 = vst [vmem:[%s2190] sm:$0xff] %v2189
        %v2193 = vcombine.high %v2083, %v2083
        %v2195 = vunpack.c.l.s4 1966171168
        %v2196 = vunpack.c.0.s8 %v2195
        %v2197 = vlaneseq
        %v2198 = vshrl.u32 %v2197, 7
        %v2199 = vsub.s32 %v2196, %v2198
        %v2200 = vrot.slane %v2083, %v2199
        %v2202 = vunpack.c.l.s4 1966171168
        %v2203 = vunpack.c.0.s8 %v2202
        %v2204 = vlaneseq
        %v2205 = vshrl.u32 %v2204, 7
        %v2206 = vsub.s32 %v2203, %v2205
        %v2207 = vrot.slane %v2193, %v2206
        %v2208 = vcombine.high %v2200, %v2200
        %v2209 = vcombine.high %v2207, %v2207
        %v2211 = vunpack.c.l.s4 1966171168
        %v2212 = vunpack.c.0.s8 %v2211
        %v2213 = vlaneseq
        %v2214 = vshrl.u32 %v2213, 7
        %v2215 = vsub.s32 %v2212, %v2214
        %v2216 = vrot.slane %v2200, %v2215
        %v2218 = vunpack.c.l.s4 1966171168
        %v2219 = vunpack.c.0.s8 %v2218
        %v2220 = vlaneseq
        %v2221 = vshrl.u32 %v2220, 7
        %v2222 = vsub.s32 %v2219, %v2221
        %v2223 = vrot.slane %v2207, %v2222
        %v2225 = vunpack.c.l.s4 1966171168
        %v2226 = vunpack.c.0.s8 %v2225
        %v2227 = vlaneseq
        %v2228 = vshrl.u32 %v2227, 7
        %v2229 = vsub.s32 %v2226, %v2228
        %v2230 = vrot.slane %v2208, %v2229
        %v2232 = vunpack.c.l.s4 1966171168
        %v2233 = vunpack.c.0.s8 %v2232
        %v2234 = vlaneseq
        %v2235 = vshrl.u32 %v2234, 7
        %v2236 = vsub.s32 %v2233, %v2235
        %v2237 = vrot.slane %v2209, %v2236
        %v2238 = vcombine.high %v2216, %v2216
        %v2239 = vcombine.high %v2223, %v2223
        %v2240 = vcombine.high %v2230, %v2230
        %v2241 = vcombine.high %v2237, %v2237
        %v2242 = vlaneseq
        %v2243 = vshrl.u32 %v2242, 7
        %v2244 = vsub.s32 0, %v2243
        %v2245 = vrot.slane %v2216, %v2244
        %v2246 = vlaneseq
        %v2247 = vshrl.u32 %v2246, 7
        %v2248 = vsub.s32 0, %v2247
        %v2249 = vrot.slane %v2230, %v2248
        %v2250 = vlaneseq
        %v2251 = vshrl.u32 %v2250, 7
        %v2252 = vsub.s32 0, %v2251
        %v2253 = vrot.slane %v2238, %v2252
        %v2254 = vlaneseq
        %v2255 = vshrl.u32 %v2254, 7
        %v2256 = vsub.s32 0, %v2255
        %v2257 = vrot.slane %v2240, %v2256
        %v2258 = vlaneseq
        %v2259 = vshrl.u32 %v2258, 7
        %v2260 = vsub.s32 0, %v2259
        %v2261 = vrot.slane %v2223, %v2260
        %v2262 = vlaneseq
        %v2263 = vshrl.u32 %v2262, 7
        %v2264 = vsub.s32 0, %v2263
        %v2265 = vrot.slane %v2237, %v2264
        %v2266 = vlaneseq
        %v2267 = vshrl.u32 %v2266, 7
        %v2268 = vsub.s32 0, %v2267
        %v2269 = vrot.slane %v2239, %v2268
        %v2270 = vlaneseq
        %v2271 = vshrl.u32 %v2270, 7
        %v2272 = vsub.s32 0, %v2271
        %v2273 = vrot.slane %v2241, %v2272
        %2274 = vrot.lane.b32.xlu0 %v2245, 64
        %v2275 = vpop.permute.xlu0 %2274
        %2276 = vrot.lane.b32.xlu0 %v2249, 64
        %v2277 = vpop.permute.xlu0 %2276
        %2278 = vrot.lane.b32.xlu0 %v2253, 64
        %v2279 = vpop.permute.xlu0 %2278
        %2280 = vrot.lane.b32.xlu0 %v2257, 64
        %v2281 = vpop.permute.xlu0 %2280
        %2282 = vrot.lane.b32.xlu0 %v2261, 64
        %v2283 = vpop.permute.xlu0 %2282
        %2284 = vrot.lane.b32.xlu0 %v2265, 64
        %v2285 = vpop.permute.xlu0 %2284
        %2286 = vrot.lane.b32.xlu0 %v2269, 64
        %v2287 = vpop.permute.xlu0 %2286
        %2288 = vrot.lane.b32.xlu0 %v2273, 64
        %v2289 = vpop.permute.xlu0 %2288
        %v2298 = vadd.f32 %v1728, %v2275
        %v2299 = vadd.f32 %v1731, %v2277
        %v2300 = vadd.f32 %v1736, %v2279
        %v2301 = vadd.f32 %v1739, %v2281
        %v2302 = vadd.f32 %v1744, %v2283
        %v2303 = vadd.f32 %v1747, %v2285
        %v2304 = vadd.f32 %v1752, %v2287
        %v2305 = vadd.f32 %v1755, %v2289
        %v2306 = vtanh.pop %v2298
        %v2307 = vtanh.pop %v2299
        %v2308 = vtanh.pop %v2300
        %v2309 = vtanh.pop %v2301
        %v2310 = vtanh.pop %v2302
        %v2311 = vtanh.pop %v2303
        %v2312 = vtanh.pop %v2304
        %v2313 = vtanh.pop %v2305
        %v2314 = vxor.u32 %v2298, 2147483648
        %v2315 = vxor.u32 %v2299, 2147483648
        %v2316 = vxor.u32 %v2300, 2147483648
        %v2317 = vxor.u32 %v2301, 2147483648
        %v2318 = vxor.u32 %v2302, 2147483648
        %v2319 = vxor.u32 %v2303, 2147483648
        %v2320 = vxor.u32 %v2304, 2147483648
        %v2321 = vxor.u32 %v2305, 2147483648
        %v2322 = vmul.f32 %v2314, 1.442695
        %v2323 = vpow.pop %v2322
        %v2324 = vmul.f32 %v2315, 1.442695
        %v2325 = vpow.pop %v2324
        %v2326 = vmul.f32 %v2316, 1.442695
        %v2327 = vpow.pop %v2326
        %v2328 = vmul.f32 %v2317, 1.442695
        %v2329 = vpow.pop %v2328
        %v2330 = vmul.f32 %v2318, 1.442695
        %v2331 = vpow.pop %v2330
        %v2332 = vmul.f32 %v2319, 1.442695
        %v2333 = vpow.pop %v2332
        %v2334 = vmul.f32 %v2320, 1.442695
        %v2335 = vpow.pop %v2334
        %v2336 = vmul.f32 %v2321, 1.442695
        %v2337 = vpow.pop %v2336
        %v2338 = vadd.f32 %v2323, 1.0
        %v2339 = vadd.f32 %v2325, 1.0
        %v2340 = vadd.f32 %v2327, 1.0
        %v2341 = vadd.f32 %v2329, 1.0
        %v2342 = vadd.f32 %v2331, 1.0
        %v2343 = vadd.f32 %v2333, 1.0
        %v2344 = vadd.f32 %v2335, 1.0
        %v2345 = vadd.f32 %v2337, 1.0
        %v2346 = vrcp.pop %v2338
        %v2347 = vmul.f32 1.0, %v2346
        %v2348 = vrcp.pop %v2339
        %v2349 = vmul.f32 1.0, %v2348
        %v2350 = vrcp.pop %v2340
        %v2351 = vmul.f32 1.0, %v2350
        %v2352 = vrcp.pop %v2341
        %v2353 = vmul.f32 1.0, %v2352
        %v2354 = vrcp.pop %v2342
        %v2355 = vmul.f32 1.0, %v2354
        %v2356 = vrcp.pop %v2343
        %v2357 = vmul.f32 1.0, %v2356
        %v2358 = vrcp.pop %v2344
        %v2359 = vmul.f32 1.0, %v2358
        %v2360 = vrcp.pop %v2345
        %v2361 = vmul.f32 1.0, %v2360
        %v2362 = vsub.f32 1.0, %v2347
        %v2363 = vsub.f32 1.0, %v2349
        %v2364 = vsub.f32 1.0, %v2351
        %v2365 = vsub.f32 1.0, %v2353
        %v2366 = vsub.f32 1.0, %v2355
        %v2367 = vsub.f32 1.0, %v2357
        %v2368 = vsub.f32 1.0, %v2359
        %v2369 = vsub.f32 1.0, %v2361
        %2378 = vrot.lane.b32.xlu0 %v2362, 96
        %v2379 = vpop.permute.xlu0 %2378
        %2380 = vrot.lane.b32.xlu0 %v2363, 96
        %v2381 = vpop.permute.xlu0 %2380
        %2382 = vrot.lane.b32.xlu0 %v2364, 96
        %v2383 = vpop.permute.xlu0 %2382
        %2384 = vrot.lane.b32.xlu0 %v2365, 96
        %v2385 = vpop.permute.xlu0 %2384
        %2386 = vrot.lane.b32.xlu0 %v2366, 96
        %v2387 = vpop.permute.xlu0 %2386
        %2388 = vrot.lane.b32.xlu0 %v2367, 96
        %v2389 = vpop.permute.xlu0 %2388
        %2390 = vrot.lane.b32.xlu0 %v2368, 96
        %v2391 = vpop.permute.xlu0 %2390
        %2392 = vrot.lane.b32.xlu0 %v2369, 96
        %v2393 = vpop.permute.xlu0 %2392
        %v2402 = vmul.f32 %v1337, %v2379
        %v2403 = vmul.f32 %v1338, %v2381
        %v2404 = vmul.f32 %v1339, %v2383
        %v2405 = vmul.f32 %v1340, %v2385
        %v2406 = vmul.f32 %v1341, %v2387
        %v2407 = vmul.f32 %v1342, %v2389
        %v2408 = vmul.f32 %v1343, %v2391
        %v2409 = vmul.f32 %v1344, %v2393
        %2418 = vrot.lane.b32.xlu0 %v2306, 32
        %v2419 = vpop.permute.xlu0 %2418
        %2420 = vrot.lane.b32.xlu0 %v2307, 32
        %v2421 = vpop.permute.xlu0 %2420
        %2422 = vrot.lane.b32.xlu0 %v2308, 32
        %v2423 = vpop.permute.xlu0 %2422
        %2424 = vrot.lane.b32.xlu0 %v2309, 32
        %v2425 = vpop.permute.xlu0 %2424
        %2426 = vrot.lane.b32.xlu0 %v2310, 32
        %v2427 = vpop.permute.xlu0 %2426
        %2428 = vrot.lane.b32.xlu0 %v2311, 32
        %v2429 = vpop.permute.xlu0 %2428
        %2430 = vrot.lane.b32.xlu0 %v2312, 32
        %v2431 = vpop.permute.xlu0 %2430
        %2432 = vrot.lane.b32.xlu0 %v2313, 32
        %v2433 = vpop.permute.xlu0 %2432
        %v2442 = vmul.f32 %v2347, %v2419
        %v2443 = vmul.f32 %v2349, %v2421
        %v2444 = vmul.f32 %v2351, %v2423
        %v2445 = vmul.f32 %v2353, %v2425
        %v2446 = vmul.f32 %v2355, %v2427
        %v2447 = vmul.f32 %v2357, %v2429
        %v2448 = vmul.f32 %v2359, %v2431
        %v2449 = vmul.f32 %v2361, %v2433
        %2458 = vrot.lane.b32.xlu0 %v2442, 96
        %v2459 = vpop.permute.xlu0 %2458
        %2460 = vrot.lane.b32.xlu0 %v2443, 96
        %v2461 = vpop.permute.xlu0 %2460
        %2462 = vrot.lane.b32.xlu0 %v2444, 96
        %v2463 = vpop.permute.xlu0 %2462
        %2464 = vrot.lane.b32.xlu0 %v2445, 96
        %v2465 = vpop.permute.xlu0 %2464
        %2466 = vrot.lane.b32.xlu0 %v2446, 96
        %v2467 = vpop.permute.xlu0 %2466
        %2468 = vrot.lane.b32.xlu0 %v2447, 96
        %v2469 = vpop.permute.xlu0 %2468
        %2470 = vrot.lane.b32.xlu0 %v2448, 96
        %v2471 = vpop.permute.xlu0 %2470
        %2472 = vrot.lane.b32.xlu0 %v2449, 96
        %v2473 = vpop.permute.xlu0 %2472
        %v2482 = vadd.f32 %v2402, %v2459
        %v2483 = vadd.f32 %v2403, %v2461
        %v2484 = vadd.f32 %v2404, %v2463
        %v2485 = vadd.f32 %v2405, %v2465
        %v2486 = vadd.f32 %v2406, %v2467
        %v2487 = vadd.f32 %v2407, %v2469
        %v2488 = vadd.f32 %v2408, %v2471
        %v2489 = vadd.f32 %v2409, %v2473
        %s2491 = sor.u32 256, 40
        %2492 = vbcast.lane.b32.xlu0 %v1348, %s2491
        %v2493 = vpop.permute.xlu0 %2492
        %s2495 = sor.u32 256, 40
        %2496 = vbcast.lane.b32.xlu0 %v1356, %s2495
        %v2497 = vpop.permute.xlu0 %2496
        %s2499 = sor.u32 256, 40
        %2500 = vbcast.lane.b32.xlu0 %v1364, %s2499
        %v2501 = vpop.permute.xlu0 %2500
        %s2503 = sor.u32 256, 40
        %2504 = vbcast.lane.b32.xlu0 %v1372, %s2503
        %v2505 = vpop.permute.xlu0 %2504
        %s2507 = sor.u32 256, 40
        %2508 = vbcast.lane.b32.xlu0 %v1380, %s2507
        %v2509 = vpop.permute.xlu0 %2508
        %s2511 = sor.u32 256, 40
        %2512 = vbcast.lane.b32.xlu0 %v1388, %s2511
        %v2513 = vpop.permute.xlu0 %2512
        %s2515 = sor.u32 256, 40
        %2516 = vbcast.lane.b32.xlu0 %v1396, %s2515
        %v2517 = vpop.permute.xlu0 %2516
        %s2519 = sor.u32 256, 40
        %2520 = vbcast.lane.b32.xlu0 %v1404, %s2519
        %v2521 = vpop.permute.xlu0 %2520
        %vm2522 = vcmp.gt.f32.partialorder %v2493, 0.5
        %vm2523 = vcmp.gt.f32.partialorder %v2497, 0.5
        %vm2524 = vcmp.gt.f32.partialorder %v2501, 0.5
        %vm2525 = vcmp.gt.f32.partialorder %v2505, 0.5
        %vm2526 = vcmp.gt.f32.partialorder %v2509, 0.5
        %vm2527 = vcmp.gt.f32.partialorder %v2513, 0.5
        %vm2528 = vcmp.gt.f32.partialorder %v2517, 0.5
        %vm2529 = vcmp.gt.f32.partialorder %v2521, 0.5
        %v2530 = vsel %vm2522, 1, 0
        %v2531 = vsel %vm2523, 1, 0
        %v2532 = vsel %vm2524, 1, 0
        %v2533 = vsel %vm2525, 1, 0
        %v2534 = vsel %vm2526, 1, 0
        %v2535 = vsel %vm2527, 1, 0
        %v2536 = vsel %vm2528, 1, 0
        %v2537 = vsel %vm2529, 1, 0
        %vm2538 = vcmp.eq.s32.totalorder %v2530, 1
        %vm2539 = vcmp.eq.s32.totalorder %v2531, 1
        %vm2540 = vcmp.eq.s32.totalorder %v2532, 1
        %vm2541 = vcmp.eq.s32.totalorder %v2533, 1
        %vm2542 = vcmp.eq.s32.totalorder %v2534, 1
        %vm2543 = vcmp.eq.s32.totalorder %v2535, 1
        %vm2544 = vcmp.eq.s32.totalorder %v2536, 1
        %vm2545 = vcmp.eq.s32.totalorder %v2537, 1
        %v2546 = vsel %vm2538, %v2482, 0.0
        %v2547 = vsel %vm2539, %v2483, 0.0
        %v2548 = vsel %vm2540, %v2484, 0.0
        %v2549 = vsel %vm2541, %v2485, 0.0
        %v2550 = vsel %vm2542, %v2486, 0.0
        %v2551 = vsel %vm2543, %v2487, 0.0
        %v2552 = vsel %vm2544, %v2488, 0.0
        %v2553 = vsel %vm2545, %v2489, 0.0
        %2554 = vst.msk [vmem:[#allocation4] sm:$0xff] %vm1417, %v2546
        %2555 = vst.msk [vmem:[#allocation4 + $0x8] sm:$0xff] %vm1417, %v2547
        %2556 = vst.msk [vmem:[#allocation4 + $0x10] sm:$0xff] %vm1417, %v2548
        %2557 = vst.msk [vmem:[#allocation4 + $0x18] sm:$0xff] %vm1417, %v2549
        %2558 = vst.msk [vmem:[#allocation4 + $0x20] sm:$0xff] %vm1417, %v2550
        %2559 = vst.msk [vmem:[#allocation4 + $0x28] sm:$0xff] %vm1417, %v2551
        %2560 = vst.msk [vmem:[#allocation4 + $0x30] sm:$0xff] %vm1417, %v2552
        %2561 = vst.msk [vmem:[#allocation4 + $0x38] sm:$0xff] %vm1417, %v2553
      $region80: #{scope_grammar_lm_forward.1} parent=69 // pred_fallthru
        _
    $region70: #{scope_grammar_lm_forward.1} parent=1 // loop_footer
      %s95 = sadd.s32 1, %s91
    $region71: #{scope_grammar_lm_forward.1} parent=1 // loop_footer_branch
      %90 = sbr.rel target = $region67
    $region72: #{scope_grammar_lm_forward.1} parent=1 // loop_exit
      _
    // Predicated region
    $region81: #{scope_grammar_lm_forward.1} parent=1 // pred_check
      _
    $region82: #{scope_grammar_lm_forward.1} parent=1 // pred_check_branch
      %2563 = sbr.rel (0) target = $region84
    $region83: #{scope_grammar_lm_forward.1} parent=1 // pred_region
      %s2565 = ssub.s32 1280, 1280
      %2566 = vsyncadd [#allocation8], %s2565
      %s2567 = sshll.u32 [#allocation7], 4
      %s2568 = int_to_ptr.vmem [resolvable:$true] %s2567
      %2573 = dma.vmem_to_hbm [thread:$0]  %s2568, 1280, %s16, [#allocation8], 128, 128, 8
    $region84: #{scope_grammar_lm_forward.1} parent=1 // pred_fallthru
      _
    // Predicated region
    $region85: #{scope_grammar_lm_forward.1} parent=1 // pred_check
      _
    $region86: #{scope_grammar_lm_forward.1} parent=1 // pred_check_branch
      %2575 = sbr.rel (0) target = $region88
    $region87: #{scope_grammar_lm_forward.1} parent=1 // pred_region
      %2576 = dma.done [#allocation8], 1280
    $region88: #{scope_grammar_lm_forward.1} parent=1 // pred_fallthru
      _
    %2577 = vsyncpa [#allocation8], 1

</llo_original>
